<compile_context>
chip_gen: v6e
topology: v6e:2x2x1
jax: 0.10.0
libtpu: 0.0.40
codegen_flags: <defaults>
</compile_context>

<pallas_src>
import functools

import jax
import jax.numpy as jnp
from jax import lax
from jax.experimental import pallas as pl
from jax.experimental.pallas import tpu as pltpu


def _rnn_kernel(x_ref, wih_ref, whh_ref, b_ref, wout_ref, bout_ref, out_ref,
                *, mxu_bf16):
    # x_ref is time-major: (T, TB, I).
    T, TB, I = x_ref.shape
    H = whh_ref.shape[0]
    O = out_ref.shape[1]

    # Hoisted input projection: ONE (T*TB, I) x (I, H) MXU matmul off the
    # serial chain, plus the combined RNN bias.  Kept at HIGHEST precision in
    # both modes (off the critical chain, K=I is tiny).
    xp = (
        lax.dot_general(
            x_ref[...].reshape(T * TB, I), wih_ref[...],
            (((1,), (0,)), ((), ())),
            preferred_element_type=jnp.float32,
            precision=lax.Precision.HIGHEST,
        )
        + b_ref[...]
    ).reshape(T, TB, H)

    # Recurrent weight loaded once.  In perf mode it is cast to bf16 so each
    # serial step is a single MXU pass (f32 accumulate via
    # preferred_element_type).
    whh = whh_ref[...].astype(jnp.bfloat16) if mxu_bf16 else whh_ref[...]

    # h_0 = 0  =>  first step needs no recurrent matmul.
    h = jnp.tanh(xp[0])

    # Fully-unrolled static recurrence; h stays in vregs across steps and
    # xp[t] is a zero-cost whole-vreg read thanks to the time-major layout.
    # TODO(synk): hold W_hh stationary across steps with
    # pltpu.matmul_push_rhs / matmul_acc_lhs / matmul_pop once the explicit
    # MXU API is validated on this toolchain; for now we rely on Mosaic
    # hoisting the loop-invariant RHS push across the unrolled steps.
    for t in range(1, T):
        if mxu_bf16:
            rec = jnp.dot(h.astype(jnp.bfloat16), whh,
                          preferred_element_type=jnp.float32)
        else:
            rec = jnp.dot(h, whh, preferred_element_type=jnp.float32,
                          precision=lax.Precision.HIGHEST)
        h = jnp.tanh(xp[t] + rec)

    # Linear head on the last hidden state only (out[:, -1, :] in PyTorch).
    if O == 1:
        # VPU multiply + lane reduction instead of an N=1 MXU matmul; frees
        # the MXU tail and makes the lane-width-1 store cost irrelevant.
        out = jnp.sum(h * wout_ref[...], axis=-1, keepdims=True) + bout_ref[...]
    else:
        out = lax.dot_general(h, wout_ref[...], (((1,), (1,)), ((), ())),
                              preferred_element_type=jnp.float32,
                              precision=lax.Precision.HIGHEST) + bout_ref[...]
    out_ref[...] = out.astype(out_ref.dtype)


def prepare_params(w_ih, w_hh, b_ih, b_hh, w_lin, b_lin):
    """One-time (parameter-load-time) transforms so the per-call path has no
    extra transpose/add launches.

    PyTorch shapes in: w_ih (H, I), w_hh (H, H), b_ih (H,), b_hh (H,),
                       w_lin (O, H), b_lin (O,).
    """
    H = w_ih.shape[0]
    O = w_lin.shape[0]
    return (
        jnp.transpose(w_ih),            # (I, H)
        jnp.transpose(w_hh),            # (H, H)  so rec = h @ W_hh^T
        (b_ih + b_hh).reshape(1, H),    # combined RNN bias
        jnp.asarray(w_lin),             # (O, H) un-transposed (VPU head, O=1)
        b_lin.reshape(1, O),            # (1, O)
    )


@functools.partial(jax.jit, static_argnames=("mxu_bf16",))
def weather_rnn_forward(x, wih_t, whh_t, b_comb, w_lin, b_lin, *, mxu_bf16=False):
    """x: (B, T, I) float32, batch_first like PyTorch.  Returns (B, O) float32."""
    B, T, I = x.shape
    H = whh_t.shape[0]
    O = w_lin.shape[0]
    if T < 1:
        raise ValueError("sequence length must be >= 1")

    # Time-major layout for the kernel: (T, B, I).
    x_tm = jnp.transpose(x, (1, 0, 2))

    # Pad batch to a full sublane tile (multiple of 8) and pick a batch tile
    # size.  For small B this is one tile (grid of 1); for large B the batch
    # is tiled over a parallel grid axis (v7x megacore + bounded VMEM).
    MAX_TB = 512
    B_pad = -(-B // 8) * 8
    if B_pad <= MAX_TB:
        TB = B_pad
    else:
        TB = MAX_TB
        B_pad = -(-B_pad // TB) * TB
    if B_pad != B:
        x_tm = jnp.pad(x_tm, ((0, 0), (0, B_pad - B), (0, 0)))

    grid = (B_pad // TB,)

    flops = 2 * B_pad * T * I * H + 2 * B_pad * (T - 1) * H * H + 2 * B_pad * H * O
    transcendentals = B_pad * T * H  # tanh
    bytes_accessed = 4 * (x_tm.size + wih_t.size + whh_t.size + b_comb.size
                          + w_lin.size + b_lin.size + B_pad * O)

    kernel = functools.partial(_rnn_kernel, mxu_bf16=mxu_bf16)

    out = pl.pallas_call(
        kernel,
        out_shape=jax.ShapeDtypeStruct((B_pad, O), jnp.float32),
        grid=grid,
        in_specs=[
            pl.BlockSpec((T, TB, I), lambda i: (0, i, 0)),  # x, time-major
            pl.BlockSpec((I, H), lambda i: (0, 0)),          # W_ih^T
            pl.BlockSpec((H, H), lambda i: (0, 0)),          # W_hh^T
            pl.BlockSpec((1, H), lambda i: (0, 0)),          # b_ih + b_hh
            pl.BlockSpec((O, H), lambda i: (0, 0)),          # W_lin (un-transposed)
            pl.BlockSpec((1, O), lambda i: (0, 0)),          # b_lin
        ],
        out_specs=pl.BlockSpec((TB, O), lambda i: (i, 0)),
        compiler_params=pltpu.CompilerParams(
            dimension_semantics=("parallel",)),
        cost_estimate=pl.CostEstimate(
            flops=flops,
            transcendentals=transcendentals,
            bytes_accessed=bytes_accessed),
    )(x_tm, wih_t, whh_t, b_comb, w_lin, b_lin)

    return out[:B]


def _reference_forward(x, w_ih, w_hh, b_ih, b_hh, w_lin, b_lin):
    """Pure-JAX reference mirroring PyTorch nn.RNN(batch_first=True) + Linear,
    with matmul precision pinned to HIGHEST (f32 parity)."""
    B, T, I = x.shape
    H = w_ih.shape[0]
    hp = lax.Precision.HIGHEST
    h = jnp.zeros((B, H), jnp.float32)
    for t in range(T):
        h = jnp.tanh(jnp.dot(x[:, t, :], w_ih.T, precision=hp) + b_ih
                     + jnp.dot(h, w_hh.T, precision=hp) + b_hh)
    return jnp.dot(h, w_lin.T, precision=hp) + b_lin


if __name__ == "__main__":
    # Small shapes consistent with the module: 10 weather features, short seq.
    B, T, I, H, O = 8, 8, 10, 128, 1

    key = jax.random.PRNGKey(0)
    ks = jax.random.split(key, 7)
    scale = 0.1
    x = jax.random.normal(ks[0], (B, T, I), jnp.float32)
    w_ih = scale * jax.random.normal(ks[1], (H, I), jnp.float32)   # rnn.weight_ih_l0
    w_hh = scale * jax.random.normal(ks[2], (H, H), jnp.float32)   # rnn.weight_hh_l0
    b_ih = scale * jax.random.normal(ks[3], (H,), jnp.float32)     # rnn.bias_ih_l0
    b_hh = scale * jax.random.normal(ks[4], (H,), jnp.float32)     # rnn.bias_hh_l0
    w_lin = scale * jax.random.normal(ks[5], (O, H), jnp.float32)  # linear.weight
    b_lin = scale * jax.random.normal(ks[6], (O,), jnp.float32)    # linear.bias

    # Load-time parameter prep (outside the per-call path).
    params = prepare_params(w_ih, w_hh, b_ih, b_hh, w_lin, b_lin)

    ref = _reference_forward(x, w_ih, w_hh, b_ih, b_hh, w_lin, b_lin)

    # Default (parity) mode: f32 matmuls at HIGHEST precision -> tight check.
    out = jax.block_until_ready(weather_rnn_forward(x, *params))
    assert out.shape == (B, O)
    assert jnp.allclose(out, ref, atol=1e-4, rtol=1e-4), "mismatch vs reference (f32 mode)"

    # Perf mode: single-pass bf16 MXU multiplies on the serial chain
    # (f32 accumulate); only bf16 input-rounding error vs the f32 reference.
    out_fast = jax.block_until_ready(weather_rnn_forward(x, *params, mxu_bf16=True))
    assert out_fast.shape == (B, O)
    assert jnp.allclose(out_fast, ref, atol=5e-2, rtol=5e-2), "mismatch vs reference (bf16 mode)"

    print("KERNEL_OK")
</pallas_src>

<mosaic_0001>
module attributes {stable_mosaic.version = 11 : i64} {
  func.func @_rnn_kernel(%arg0: i32, %arg1: memref<8x8x10xf32, #tpu.memory_space<vmem>>, %arg2: memref<10x128xf32, #tpu.memory_space<vmem>>, %arg3: memref<128x128xf32, #tpu.memory_space<vmem>>, %arg4: memref<1x128xf32, #tpu.memory_space<vmem>>, %arg5: memref<1x128xf32, #tpu.memory_space<vmem>>, %arg6: memref<1x1xf32, #tpu.memory_space<vmem>>, %arg7: memref<8x1xf32, #tpu.memory_space<vmem>>) attributes {dimension_semantics = [#tpu.dimension_semantics<parallel>], iteration_bounds = array<i64: 1>, scalar_prefetch = 0 : i64, scratch_operands = 0 : i64, tpu.core_type = #tpu.core_type<tc>, window_params = [{transform_indices = @transform_0, window_bounds = array<i64: 8, 8, 10>}, {pipeline_mode = #tpu.pipeline_mode<synchronous>, transform_indices = @transform_1, window_bounds = array<i64: 10, 128>}, {pipeline_mode = #tpu.pipeline_mode<synchronous>, transform_indices = @transform_2, window_bounds = array<i64: 128, 128>}, {pipeline_mode = #tpu.pipeline_mode<synchronous>, transform_indices = @transform_3, window_bounds = array<i64: 1, 128>}, {pipeline_mode = #tpu.pipeline_mode<synchronous>, transform_indices = @transform_4, window_bounds = array<i64: 1, 128>}, {pipeline_mode = #tpu.pipeline_mode<synchronous>, transform_indices = @transform_5, window_bounds = array<i64: 1, 1>}, {transform_indices = @transform_6, window_bounds = array<i64: 8, 1>}]} {
    %c0 = arith.constant 0 : index
    %c0_0 = arith.constant 0 : index
    %c0_1 = arith.constant 0 : index
    %0 = vector.load %arg1[%c0, %c0_0, %c0_1] : memref<8x8x10xf32, #tpu.memory_space<vmem>>, vector<8x8x10xf32>
    %1 = vector.shape_cast %0 : vector<8x8x10xf32> to vector<64x10xf32>
    %c0_2 = arith.constant 0 : index
    %c0_3 = arith.constant 0 : index
    %2 = vector.load %arg2[%c0_2, %c0_3] : memref<10x128xf32, #tpu.memory_space<vmem>>, vector<10x128xf32>
    %cst = arith.constant dense<0.000000e+00> : vector<64x128xf32>
    %3 = tpu.matmul %1, %2, %cst {dimension_numbers = #tpu.dot_dimension_numbers<[1], [0], [0], [1], [0, 0, 1, 1], [], []>, precision = #tpu.contract_precision<fp32>} : vector<64x10xf32>, vector<10x128xf32>, vector<64x128xf32> -> vector<64x128xf32>
    %c0_4 = arith.constant 0 : index
    %c0_5 = arith.constant 0 : index
    %4 = vector.load %arg4[%c0_4, %c0_5] : memref<1x128xf32, #tpu.memory_space<vmem>>, vector<1x128xf32>
    %5 = vector.broadcast %4 : vector<1x128xf32> to vector<64x128xf32>
    %6 = arith.addf %3, %5 : vector<64x128xf32>
    %7 = vector.shape_cast %6 : vector<64x128xf32> to vector<8x8x128xf32>
    %c0_6 = arith.constant 0 : index
    %c0_7 = arith.constant 0 : index
    %8 = vector.load %arg3[%c0_6, %c0_7] : memref<128x128xf32, #tpu.memory_space<vmem>>, vector<128x128xf32>
    %9 = vector.extract_strided_slice %7 {offsets = [0, 0, 0], sizes = [1, 8, 128], strides = [1, 1, 1]} : vector<8x8x128xf32> to vector<1x8x128xf32>
    %10 = vector.shape_cast %9 : vector<1x8x128xf32> to vector<8x128xf32>
    %11 = math.tanh %10 : vector<8x128xf32>
    %cst_8 = arith.constant dense<0.000000e+00> : vector<8x128xf32>
    %12 = tpu.matmul %11, %8, %cst_8 {dimension_numbers = #tpu.dot_dimension_numbers<[1], [0], [0], [1], [0, 0, 1, 1], [], []>, precision = #tpu.contract_precision<fp32>} : vector<8x128xf32>, vector<128x128xf32>, vector<8x128xf32> -> vector<8x128xf32>
    %13 = vector.extract_strided_slice %7 {offsets = [1, 0, 0], sizes = [1, 8, 128], strides = [1, 1, 1]} : vector<8x8x128xf32> to vector<1x8x128xf32>
    %14 = vector.shape_cast %13 : vector<1x8x128xf32> to vector<8x128xf32>
    %15 = arith.addf %14, %12 : vector<8x128xf32>
    %16 = math.tanh %15 : vector<8x128xf32>
    %cst_9 = arith.constant dense<0.000000e+00> : vector<8x128xf32>
    %17 = tpu.matmul %16, %8, %cst_9 {dimension_numbers = #tpu.dot_dimension_numbers<[1], [0], [0], [1], [0, 0, 1, 1], [], []>, precision = #tpu.contract_precision<fp32>} : vector<8x128xf32>, vector<128x128xf32>, vector<8x128xf32> -> vector<8x128xf32>
    %18 = vector.extract_strided_slice %7 {offsets = [2, 0, 0], sizes = [1, 8, 128], strides = [1, 1, 1]} : vector<8x8x128xf32> to vector<1x8x128xf32>
    %19 = vector.shape_cast %18 : vector<1x8x128xf32> to vector<8x128xf32>
    %20 = arith.addf %19, %17 : vector<8x128xf32>
    %21 = math.tanh %20 : vector<8x128xf32>
    %cst_10 = arith.constant dense<0.000000e+00> : vector<8x128xf32>
    %22 = tpu.matmul %21, %8, %cst_10 {dimension_numbers = #tpu.dot_dimension_numbers<[1], [0], [0], [1], [0, 0, 1, 1], [], []>, precision = #tpu.contract_precision<fp32>} : vector<8x128xf32>, vector<128x128xf32>, vector<8x128xf32> -> vector<8x128xf32>
    %23 = vector.extract_strided_slice %7 {offsets = [3, 0, 0], sizes = [1, 8, 128], strides = [1, 1, 1]} : vector<8x8x128xf32> to vector<1x8x128xf32>
    %24 = vector.shape_cast %23 : vector<1x8x128xf32> to vector<8x128xf32>
    %25 = arith.addf %24, %22 : vector<8x128xf32>
    %26 = math.tanh %25 : vector<8x128xf32>
    %cst_11 = arith.constant dense<0.000000e+00> : vector<8x128xf32>
    %27 = tpu.matmul %26, %8, %cst_11 {dimension_numbers = #tpu.dot_dimension_numbers<[1], [0], [0], [1], [0, 0, 1, 1], [], []>, precision = #tpu.contract_precision<fp32>} : vector<8x128xf32>, vector<128x128xf32>, vector<8x128xf32> -> vector<8x128xf32>
    %28 = vector.extract_strided_slice %7 {offsets = [4, 0, 0], sizes = [1, 8, 128], strides = [1, 1, 1]} : vector<8x8x128xf32> to vector<1x8x128xf32>
    %29 = vector.shape_cast %28 : vector<1x8x128xf32> to vector<8x128xf32>
    %30 = arith.addf %29, %27 : vector<8x128xf32>
    %31 = math.tanh %30 : vector<8x128xf32>
    %cst_12 = arith.constant dense<0.000000e+00> : vector<8x128xf32>
    %32 = tpu.matmul %31, %8, %cst_12 {dimension_numbers = #tpu.dot_dimension_numbers<[1], [0], [0], [1], [0, 0, 1, 1], [], []>, precision = #tpu.contract_precision<fp32>} : vector<8x128xf32>, vector<128x128xf32>, vector<8x128xf32> -> vector<8x128xf32>
    %33 = vector.extract_strided_slice %7 {offsets = [5, 0, 0], sizes = [1, 8, 128], strides = [1, 1, 1]} : vector<8x8x128xf32> to vector<1x8x128xf32>
    %34 = vector.shape_cast %33 : vector<1x8x128xf32> to vector<8x128xf32>
    %35 = arith.addf %34, %32 : vector<8x128xf32>
    %36 = math.tanh %35 : vector<8x128xf32>
    %cst_13 = arith.constant dense<0.000000e+00> : vector<8x128xf32>
    %37 = tpu.matmul %36, %8, %cst_13 {dimension_numbers = #tpu.dot_dimension_numbers<[1], [0], [0], [1], [0, 0, 1, 1], [], []>, precision = #tpu.contract_precision<fp32>} : vector<8x128xf32>, vector<128x128xf32>, vector<8x128xf32> -> vector<8x128xf32>
    %38 = vector.extract_strided_slice %7 {offsets = [6, 0, 0], sizes = [1, 8, 128], strides = [1, 1, 1]} : vector<8x8x128xf32> to vector<1x8x128xf32>
    %39 = vector.shape_cast %38 : vector<1x8x128xf32> to vector<8x128xf32>
    %40 = arith.addf %39, %37 : vector<8x128xf32>
    %41 = math.tanh %40 : vector<8x128xf32>
    %cst_14 = arith.constant dense<0.000000e+00> : vector<8x128xf32>
    %42 = tpu.matmul %41, %8, %cst_14 {dimension_numbers = #tpu.dot_dimension_numbers<[1], [0], [0], [1], [0, 0, 1, 1], [], []>, precision = #tpu.contract_precision<fp32>} : vector<8x128xf32>, vector<128x128xf32>, vector<8x128xf32> -> vector<8x128xf32>
    %43 = vector.extract_strided_slice %7 {offsets = [7, 0, 0], sizes = [1, 8, 128], strides = [1, 1, 1]} : vector<8x8x128xf32> to vector<1x8x128xf32>
    %44 = vector.shape_cast %43 : vector<1x8x128xf32> to vector<8x128xf32>
    %45 = arith.addf %44, %42 : vector<8x128xf32>
    %46 = math.tanh %45 : vector<8x128xf32>
    %c0_15 = arith.constant 0 : index
    %c0_16 = arith.constant 0 : index
    %47 = vector.load %arg5[%c0_15, %c0_16] : memref<1x128xf32, #tpu.memory_space<vmem>>, vector<1x128xf32>
    %48 = vector.broadcast %47 : vector<1x128xf32> to vector<8x128xf32>
    %49 = arith.mulf %46, %48 : vector<8x128xf32>
    %cst_17 = arith.constant dense<0.000000e+00> : vector<8xf32>
    %50 = vector.multi_reduction <add>, %49, %cst_17 [1] : vector<8x128xf32> to vector<8xf32>
    %51 = vector.shape_cast %50 : vector<8xf32> to vector<8x1xf32>
    %c0_18 = arith.constant 0 : index
    %c0_19 = arith.constant 0 : index
    %52 = vector.load %arg6[%c0_18, %c0_19] : memref<1x1xf32, #tpu.memory_space<vmem>>, vector<1x1xf32>
    %53 = vector.broadcast %52 : vector<1x1xf32> to vector<8x1xf32>
    %54 = arith.addf %51, %53 : vector<8x1xf32>
    %c0_20 = arith.constant 0 : index
    %c0_21 = arith.constant 0 : index
    %55 = vector.load %arg7[%c0_20, %c0_21] : memref<8x1xf32, #tpu.memory_space<vmem>>, vector<8x1xf32>
    tpu.vector_store %arg7[%c0_20, %c0_21], %54 {strides = array<i32>} : memref<8x1xf32, #tpu.memory_space<vmem>>, vector<8x1xf32>,
    return
  }
  func.func @transform_0(%arg0: i32) -> (i32, i32, i32) {
    %c0_i32 = arith.constant 0 : i32
    %c0_i32_0 = arith.constant 0 : i32
    %c0_i32_1 = arith.constant 0 : i32
    return %c0_i32, %arg0, %c0_i32_0 : i32, i32, i32
  }
  func.func @transform_1(%arg0: i32) -> (i32, i32) {
    %c0_i32 = arith.constant 0 : i32
    %c0_i32_0 = arith.constant 0 : i32
    %c0_i32_1 = arith.constant 0 : i32
    return %c0_i32, %c0_i32_0 : i32, i32
  }
  func.func @transform_2(%arg0: i32) -> (i32, i32) {
    %c0_i32 = arith.constant 0 : i32
    %c0_i32_0 = arith.constant 0 : i32
    %c0_i32_1 = arith.constant 0 : i32
    return %c0_i32, %c0_i32_0 : i32, i32
  }
  func.func @transform_3(%arg0: i32) -> (i32, i32) {
    %c0_i32 = arith.constant 0 : i32
    %c0_i32_0 = arith.constant 0 : i32
    %c0_i32_1 = arith.constant 0 : i32
    return %c0_i32, %c0_i32_0 : i32, i32
  }
  func.func @transform_4(%arg0: i32) -> (i32, i32) {
    %c0_i32 = arith.constant 0 : i32
    %c0_i32_0 = arith.constant 0 : i32
    %c0_i32_1 = arith.constant 0 : i32
    return %c0_i32, %c0_i32_0 : i32, i32
  }
  func.func @transform_5(%arg0: i32) -> (i32, i32) {
    %c0_i32 = arith.constant 0 : i32
    %c0_i32_0 = arith.constant 0 : i32
    %c0_i32_1 = arith.constant 0 : i32
    return %c0_i32, %c0_i32_0 : i32, i32
  }
  func.func @transform_6(%arg0: i32) -> (i32, i32) {
    %c0_i32 = arith.constant 0 : i32
    %c0_i32_0 = arith.constant 0 : i32
    return %arg0, %c0_i32 : i32, i32
  }
}

</mosaic_0001>

<llo_original>
// kernel: weather_rnn_forward.1
$region0: #{weather_rnn_forward.1}
  #allocation0 [shape = 'u32[]', space=smem, size = 0x4, offset = 0x4, fixed_abs, tag = 'smem constant byte address 0x4 - core index']
  #allocation1 [shape = 'u32[144,128]{1,0:T(1,128)}', space=vmem, size = 0x12000, scoped, tag = 'internal scratch']
  #allocation2 [shape = 'f32[1,1]{1,0:T(1,128)S(1)}', space=vmem, size = 0x200, scoped, tag = 'scoped memory for weather_rnn_forward.1']
  %s0 = inlined_call_operand.vmem [shape: f32[8,8,10], index: 0, kind: input, shape index: {}]
  %s1 = inlined_call_operand.hbm [shape: f32[10,128], index: 1, kind: input, shape index: {}]
  %s2 = inlined_call_operand.vmem [shape: f32[128,128], index: 2, kind: input, shape index: {}]
  %s3 = inlined_call_operand.vmem [shape: f32[1,128], index: 3, kind: input, shape index: {}]
  %s4 = inlined_call_operand.vmem [shape: f32[1,128], index: 4, kind: input, shape index: {}]
  %s5 = inlined_call_operand.<no memory space> [shape: f32[1,1], index: 5, kind: input, shape index: {}]
  %s6 = inlined_call_operand.vmem [shape: f32[8,1], index: 6, kind: output, shape index: {}]
  %s7 = sld [smem:[#allocation0]]
  $region38: #{weather_rnn_forward.1} parent=0
    _
  %s9 = ssub.s32 1, %s7
  %s10 = scalar_select 0, %s9, %s7
  %v11 = vstv %s5
  %12 = vst [vmem:[#allocation2] sm:$0x1] %v11
  $region1: #{weather_rnn_forward.1} parent=0
    #allocation3 [shape = 'u8[8192]{0}', space=vmem, size = 0x2000, scoped, tag = 'input window, operand 1, single buffered']
    #allocation4 [shape = 's32[1]{0}', space=sflag, size = 0x4, scoped, tag = 'scoped memory for weather_rnn_forward.1']
    %13 = vsyncpa [#allocation4], 0
    // Predicated region
    $region2: #{weather_rnn_forward.1} parent=1 // pred_check
      _
    $region3: #{weather_rnn_forward.1} parent=1 // pred_check_branch
      %15 = sbr.rel (0) target = $region5
    $region4: #{weather_rnn_forward.1} parent=1 // pred_region
      _
    $region5: #{weather_rnn_forward.1} parent=1 // pred_fallthru
      _
    // Predicated region
    $region6: #{weather_rnn_forward.1} parent=1 // pred_check
      _
    $region7: #{weather_rnn_forward.1} parent=1 // pred_check_branch
      %17 = sbr.rel (0) target = $region9
    $region8: #{weather_rnn_forward.1} parent=1 // pred_region
      %s19 = ssub.s32 256, 256
      %20 = vsyncadd [#allocation4], %s19
      %s21 = sshll.u32 [#allocation3], 4
      %s22 = int_to_ptr.vmem [resolvable:$true] %s21
      %27 = dma.hbm_to_vmem [thread:$0]  %s1, 256, %s22, [#allocation4], 128, 128, 8
    $region9: #{weather_rnn_forward.1} parent=1 // pred_fallthru
      _
    // Predicated region
    $region10: #{weather_rnn_forward.1} parent=1 // pred_check
      _
    $region11: #{weather_rnn_forward.1} parent=1 // pred_check_branch
      %29 = sbr.rel (0) target = $region13
    $region12: #{weather_rnn_forward.1} parent=1 // pred_region
      _
    $region13: #{weather_rnn_forward.1} parent=1 // pred_fallthru
      _
    // Predicated region
    $region14: #{weather_rnn_forward.1} parent=1 // pred_check
      _
    $region15: #{weather_rnn_forward.1} parent=1 // pred_check_branch
      %31 = sbr.rel (0) target = $region17
    $region16: #{weather_rnn_forward.1} parent=1 // pred_region
      _
    $region17: #{weather_rnn_forward.1} parent=1 // pred_fallthru
      _
    // Predicated region
    $region18: #{weather_rnn_forward.1} parent=1 // pred_check
      _
    $region19: #{weather_rnn_forward.1} parent=1 // pred_check_branch
      %33 = sbr.rel (0) target = $region21
    $region20: #{weather_rnn_forward.1} parent=1 // pred_region
      _
    $region21: #{weather_rnn_forward.1} parent=1 // pred_fallthru
      _
    // Predicated region
    $region22: #{weather_rnn_forward.1} parent=1 // pred_check
      _
    $region23: #{weather_rnn_forward.1} parent=1 // pred_check_branch
      %35 = sbr.rel (0) target = $region25
    $region24: #{weather_rnn_forward.1} parent=1 // pred_region
      _
    $region25: #{weather_rnn_forward.1} parent=1 // pred_fallthru
      _
    // Predicated region
    $region26: #{weather_rnn_forward.1} parent=1 // pred_check
      _
    $region27: #{weather_rnn_forward.1} parent=1 // pred_check_branch
      %37 = sbr.rel (0) target = $region29
    $region28: #{weather_rnn_forward.1} parent=1 // pred_region
      %38 = dma.done [#allocation4], 256
    $region29: #{weather_rnn_forward.1} parent=1 // pred_fallthru
      _
    %v39 = vld [vmem:[%s0] sm:$0xff]
    %v40 = vld [vmem:[%s0 + $0x8] sm:$0xff]
    %v41 = vld [vmem:[%s0 + $0x10] sm:$0xff]
    %v42 = vld [vmem:[%s0 + $0x18] sm:$0xff]
    %v43 = vld [vmem:[%s0 + $0x20] sm:$0xff]
    %v44 = vld [vmem:[%s0 + $0x28] sm:$0xff]
    %v45 = vld [vmem:[%s0 + $0x30] sm:$0xff]
    %v46 = vld [vmem:[%s0 + $0x38] sm:$0xff]
    %v47 = vld [vmem:[#allocation3] sm:$0xff]
    %v48 = vld [vmem:[#allocation3 + $0x8] sm:$0x3]
    %v49 = vld [vmem:[%s3] sm:$0x1]
    %v51 = vlaneseq
    %v52 = vshrl.u32 %v51, 7
    %v53 = vsub.s32 0, %v52
    %v54 = vrot.slane %v49, %v53
    %vm56 = vcmask 80896
    %v58 = vsel %vm56, %v39, 0
    %v61 = vsel %vm56, %v40, 0
    %v64 = vsel %vm56, %v41, 0
    %v67 = vsel %vm56, %v42, 0
    %v70 = vsel %vm56, %v43, 0
    %v73 = vsel %vm56, %v44, 0
    %v76 = vsel %vm56, %v45, 0
    %v79 = vsel %vm56, %v46, 0
    %vm81 = vcmask 1041408
    %v83 = vsel %vm81, %v48, 0
    %85 = vmatprep.subr.mxu0 0.0
    %86 = vmatpush1.msra.mxu0 0.0
    %87 = vmatprep.subr.mxu0 0.0
    %88 = vmatpush1.msra.mxu0 0.0
    %89 = vmatprep.subr.mxu0 0.0
    %90 = vmatpush1.msra.mxu0 0.0
    %91 = vmatprep.subr.mxu0 0.0
    %92 = vmatpush1.msra.mxu0 0.0
    %93 = vmatprep.subr.mxu0 0.0
    %94 = vmatpush1.msra.mxu0 0.0
    %95 = vmatprep.subr.mxu0 0.0
    %96 = vmatpush1.msra.mxu0 0.0
    %97 = vmatprep.subr.mxu0 0.0
    %98 = vmatpush1.msra.mxu0 0.0
    %99 = vmatprep.subr.mxu0 0.0
    %100 = vmatpush1.msra.mxu0 0.0
    %101 = vmatprep.subr.mxu0 0.0
    %102 = vmatpush1.msra.mxu0 0.0
    %103 = vmatprep.subr.mxu0 0.0
    %104 = vmatpush1.msra.mxu0 0.0
    %105 = vmatprep.subr.mxu0 0.0
    %106 = vmatpush1.msra.mxu0 0.0
    %107 = vmatprep.subr.mxu0 0.0
    %108 = vmatpush1.msra.mxu0 0.0
    %109 = vmatprep.subr.mxu0 0.0
    %110 = vmatpush1.msra.mxu0 0.0
    %111 = vmatprep.subr.mxu0 0.0
    %112 = vmatpush1.msra.mxu0 0.0
    %113 = vmatprep.subr.mxu0 0.0
    %v114 = vand.u32 %v83, 4294901760
    %115 = vmatpush1.msra.mxu0 %v114
    %116 = vmatprep.subr.mxu0 0.0
    %v117 = vand.u32 %v47, 4294901760
    %118 = vmatpush1.msra.mxu0 %v117
    %119 = vmatprep.subr.mxu0 0.0
    %120 = vmatpush2.msra.mxu0 0.0
    %121 = vmatprep.subr.mxu0 0.0
    %122 = vmatpush2.msra.mxu0 0.0
    %123 = vmatprep.subr.mxu0 0.0
    %124 = vmatpush2.msra.mxu0 0.0
    %125 = vmatprep.subr.mxu0 0.0
    %126 = vmatpush2.msra.mxu0 0.0
    %127 = vmatprep.subr.mxu0 0.0
    %128 = vmatpush2.msra.mxu0 0.0
    %129 = vmatprep.subr.mxu0 0.0
    %130 = vmatpush2.msra.mxu0 0.0
    %131 = vmatprep.subr.mxu0 0.0
    %132 = vmatpush2.msra.mxu0 0.0
    %133 = vmatprep.subr.mxu0 0.0
    %134 = vmatpush2.msra.mxu0 0.0
    %135 = vmatprep.subr.mxu0 0.0
    %136 = vmatpush2.msra.mxu0 0.0
    %137 = vmatprep.subr.mxu0 0.0
    %138 = vmatpush2.msra.mxu0 0.0
    %139 = vmatprep.subr.mxu0 0.0
    %140 = vmatpush2.msra.mxu0 0.0
    %141 = vmatprep.subr.mxu0 0.0
    %142 = vmatpush2.msra.mxu0 0.0
    %143 = vmatprep.subr.mxu0 0.0
    %144 = vmatpush2.msra.mxu0 0.0
    %145 = vmatprep.subr.mxu0 0.0
    %146 = vmatpush2.msra.mxu0 0.0
    %147 = vmatprep.subr.mxu0 0.0
    %148 = vmatpush2.msra.mxu0 0.0
    %149 = vmatprep.subr.mxu0 0.0
    %150 = vmatpush2.msra.mxu0 0.0
    %151 = vmatprep.mubr.f32.mxu0 0.0
    %v152 = vand.u32 %v58, 4294901760
    %v153 = vsub.f32 %v58, %v152
    %v154 = vand.u32 %v153, 4294901760
    %v155 = vsub.f32 %v153, %v154
    %v156 = vand.u32 %v155, 4294901760
    %157 = vmatmul.mubr.f32.gmra.mxu0 %v156
    %v158 = vpop.f32.mrf.mxu0
    %v159 = vadd.f32 %v54, %v158
    %v160 = vpop.f32.mrf.mxu0
    %161 = vmatprep.mubr.f32.mxu0 0.0
    %v162 = vand.u32 %v61, 4294901760
    %v163 = vsub.f32 %v61, %v162
    %v164 = vand.u32 %v163, 4294901760
    %v165 = vsub.f32 %v163, %v164
    %v166 = vand.u32 %v165, 4294901760
    %167 = vmatmul.mubr.f32.gmra.mxu0 %v166
    %v168 = vpop.f32.mrf.mxu0
    %v169 = vadd.f32 %v54, %v168
    %v170 = vpop.f32.mrf.mxu0
    %171 = vmatprep.mubr.f32.mxu0 0.0
    %v172 = vand.u32 %v64, 4294901760
    %v173 = vsub.f32 %v64, %v172
    %v174 = vand.u32 %v173, 4294901760
    %v175 = vsub.f32 %v173, %v174
    %v176 = vand.u32 %v175, 4294901760
    %177 = vmatmul.mubr.f32.gmra.mxu0 %v176
    %v178 = vpop.f32.mrf.mxu0
    %v179 = vadd.f32 %v54, %v178
    %v180 = vpop.f32.mrf.mxu0
    %181 = vmatprep.mubr.f32.mxu0 0.0
    %v182 = vand.u32 %v67, 4294901760
    %v183 = vsub.f32 %v67, %v182
    %v184 = vand.u32 %v183, 4294901760
    %v185 = vsub.f32 %v183, %v184
    %v186 = vand.u32 %v185, 4294901760
    %187 = vmatmul.mubr.f32.gmra.mxu0 %v186
    %v188 = vpop.f32.mrf.mxu0
    %v189 = vadd.f32 %v54, %v188
    %v190 = vpop.f32.mrf.mxu0
    %191 = vmatprep.mubr.f32.mxu0 0.0
    %v192 = vand.u32 %v70, 4294901760
    %v193 = vsub.f32 %v70, %v192
    %v194 = vand.u32 %v193, 4294901760
    %v195 = vsub.f32 %v193, %v194
    %v196 = vand.u32 %v195, 4294901760
    %197 = vmatmul.mubr.f32.gmra.mxu0 %v196
    %v198 = vpop.f32.mrf.mxu0
    %v199 = vadd.f32 %v54, %v198
    %v200 = vpop.f32.mrf.mxu0
    %201 = vmatprep.mubr.f32.mxu0 0.0
    %v202 = vand.u32 %v73, 4294901760
    %v203 = vsub.f32 %v73, %v202
    %v204 = vand.u32 %v203, 4294901760
    %v205 = vsub.f32 %v203, %v204
    %v206 = vand.u32 %v205, 4294901760
    %207 = vmatmul.mubr.f32.gmra.mxu0 %v206
    %v208 = vpop.f32.mrf.mxu0
    %v209 = vadd.f32 %v54, %v208
    %v210 = vpop.f32.mrf.mxu0
    %211 = vmatprep.mubr.f32.mxu0 0.0
    %v212 = vand.u32 %v76, 4294901760
    %v213 = vsub.f32 %v76, %v212
    %v214 = vand.u32 %v213, 4294901760
    %v215 = vsub.f32 %v213, %v214
    %v216 = vand.u32 %v215, 4294901760
    %217 = vmatmul.mubr.f32.gmra.mxu0 %v216
    %v218 = vpop.f32.mrf.mxu0
    %v219 = vadd.f32 %v54, %v218
    %v220 = vpop.f32.mrf.mxu0
    %221 = vmatprep.mubr.f32.mxu0 0.0
    %v222 = vand.u32 %v79, 4294901760
    %v223 = vsub.f32 %v79, %v222
    %v224 = vand.u32 %v223, 4294901760
    %v225 = vsub.f32 %v223, %v224
    %v226 = vand.u32 %v225, 4294901760
    %227 = vmatmul.mubr.f32.gmra.mxu0 %v226
    %v228 = vpop.f32.mrf.mxu0
    %v229 = vadd.f32 %v54, %v228
    %v230 = vpop.f32.mrf.mxu0
    %231 = vdwg.mxu0
    %232 = vmatprep.subr.mxu0 0.0
    %233 = vmatpush1.msra.mxu0 0.0
    %234 = vmatprep.subr.mxu0 0.0
    %235 = vmatpush1.msra.mxu0 0.0
    %236 = vmatprep.subr.mxu0 0.0
    %237 = vmatpush1.msra.mxu0 0.0
    %238 = vmatprep.subr.mxu0 0.0
    %239 = vmatpush1.msra.mxu0 0.0
    %240 = vmatprep.subr.mxu0 0.0
    %241 = vmatpush1.msra.mxu0 0.0
    %242 = vmatprep.subr.mxu0 0.0
    %243 = vmatpush1.msra.mxu0 0.0
    %244 = vmatprep.subr.mxu0 0.0
    %245 = vmatpush1.msra.mxu0 0.0
    %246 = vmatprep.subr.mxu0 0.0
    %247 = vmatpush1.msra.mxu0 0.0
    %248 = vmatprep.subr.mxu0 0.0
    %249 = vmatpush1.msra.mxu0 0.0
    %250 = vmatprep.subr.mxu0 0.0
    %251 = vmatpush1.msra.mxu0 0.0
    %252 = vmatprep.subr.mxu0 0.0
    %253 = vmatpush1.msra.mxu0 0.0
    %254 = vmatprep.subr.mxu0 0.0
    %255 = vmatpush1.msra.mxu0 0.0
    %256 = vmatprep.subr.mxu0 0.0
    %257 = vmatpush1.msra.mxu0 0.0
    %258 = vmatprep.subr.mxu0 0.0
    %259 = vmatpush1.msra.mxu0 0.0
    %260 = vmatprep.subr.mxu0 0.0
    %v261 = vand.u32 %v83, 4294901760
    %v262 = vsub.f32 %v83, %v261
    %v263 = vand.u32 %v262, 4294901760
    %v264 = vsub.f32 %v262, %v263
    %v265 = vand.u32 %v264, 4294901760
    %266 = vmatpush1.msra.mxu0 %v265
    %267 = vmatprep.subr.mxu0 0.0
    %v268 = vand.u32 %v47, 4294901760
    %v269 = vsub.f32 %v47, %v268
    %v270 = vand.u32 %v269, 4294901760
    %v271 = vsub.f32 %v269, %v270
    %v272 = vand.u32 %v271, 4294901760
    %273 = vmatpush1.msra.mxu0 %v272
    %274 = vmatprep.subr.mxu0 0.0
    %275 = vmatpush2.msra.mxu0 0.0
    %276 = vmatprep.subr.mxu0 0.0
    %277 = vmatpush2.msra.mxu0 0.0
    %278 = vmatprep.subr.mxu0 0.0
    %279 = vmatpush2.msra.mxu0 0.0
    %280 = vmatprep.subr.mxu0 0.0
    %281 = vmatpush2.msra.mxu0 0.0
    %282 = vmatprep.subr.mxu0 0.0
    %283 = vmatpush2.msra.mxu0 0.0
    %284 = vmatprep.subr.mxu0 0.0
    %285 = vmatpush2.msra.mxu0 0.0
    %286 = vmatprep.subr.mxu0 0.0
    %287 = vmatpush2.msra.mxu0 0.0
    %288 = vmatprep.subr.mxu0 0.0
    %289 = vmatpush2.msra.mxu0 0.0
    %290 = vmatprep.subr.mxu0 0.0
    %291 = vmatpush2.msra.mxu0 0.0
    %292 = vmatprep.subr.mxu0 0.0
    %293 = vmatpush2.msra.mxu0 0.0
    %294 = vmatprep.subr.mxu0 0.0
    %295 = vmatpush2.msra.mxu0 0.0
    %296 = vmatprep.subr.mxu0 0.0
    %297 = vmatpush2.msra.mxu0 0.0
    %298 = vmatprep.subr.mxu0 0.0
    %299 = vmatpush2.msra.mxu0 0.0
    %300 = vmatprep.subr.mxu0 0.0
    %301 = vmatpush2.msra.mxu0 0.0
    %302 = vmatprep.subr.mxu0 0.0
    %303 = vmatpush2.msra.mxu0 0.0
    %304 = vmatprep.subr.mxu0 0.0
    %305 = vmatpush2.msra.mxu0 0.0
    %306 = vmatprep.mubr.f32.mxu0 0.0
    %v307 = vand.u32 %v58, 4294901760
    %308 = vmatmul.mubr.f32.gmra.mxu0 %v307
    %v309 = vpop.f32.mrf.mxu0
    %v310 = vadd.f32 %v159, %v309
    %v311 = vpop.f32.mrf.mxu0
    %312 = vmatprep.mubr.f32.mxu0 0.0
    %v313 = vand.u32 %v61, 4294901760
    %314 = vmatmul.mubr.f32.gmra.mxu0 %v313
    %v315 = vpop.f32.mrf.mxu0
    %v316 = vadd.f32 %v169, %v315
    %v317 = vpop.f32.mrf.mxu0
    %318 = vmatprep.mubr.f32.mxu0 0.0
    %v319 = vand.u32 %v64, 4294901760
    %320 = vmatmul.mubr.f32.gmra.mxu0 %v319
    %v321 = vpop.f32.mrf.mxu0
    %v322 = vadd.f32 %v179, %v321
    %v323 = vpop.f32.mrf.mxu0
    %324 = vmatprep.mubr.f32.mxu0 0.0
    %v325 = vand.u32 %v67, 4294901760
    %326 = vmatmul.mubr.f32.gmra.mxu0 %v325
    %v327 = vpop.f32.mrf.mxu0
    %v328 = vadd.f32 %v189, %v327
    %v329 = vpop.f32.mrf.mxu0
    %330 = vmatprep.mubr.f32.mxu0 0.0
    %v331 = vand.u32 %v70, 4294901760
    %332 = vmatmul.mubr.f32.gmra.mxu0 %v331
    %v333 = vpop.f32.mrf.mxu0
    %v334 = vadd.f32 %v199, %v333
    %v335 = vpop.f32.mrf.mxu0
    %336 = vmatprep.mubr.f32.mxu0 0.0
    %v337 = vand.u32 %v73, 4294901760
    %338 = vmatmul.mubr.f32.gmra.mxu0 %v337
    %v339 = vpop.f32.mrf.mxu0
    %v340 = vadd.f32 %v209, %v339
    %v341 = vpop.f32.mrf.mxu0
    %342 = vmatprep.mubr.f32.mxu0 0.0
    %v343 = vand.u32 %v76, 4294901760
    %344 = vmatmul.mubr.f32.gmra.mxu0 %v343
    %v345 = vpop.f32.mrf.mxu0
    %v346 = vadd.f32 %v219, %v345
    %v347 = vpop.f32.mrf.mxu0
    %348 = vmatprep.mubr.f32.mxu0 0.0
    %v349 = vand.u32 %v79, 4294901760
    %350 = vmatmul.mubr.f32.gmra.mxu0 %v349
    %v351 = vpop.f32.mrf.mxu0
    %v352 = vadd.f32 %v229, %v351
    %v353 = vpop.f32.mrf.mxu0
    %354 = vdwg.mxu0
    %355 = vmatprep.subr.mxu0 0.0
    %356 = vmatpush1.msra.mxu0 0.0
    %357 = vmatprep.subr.mxu0 0.0
    %358 = vmatpush1.msra.mxu0 0.0
    %359 = vmatprep.subr.mxu0 0.0
    %360 = vmatpush1.msra.mxu0 0.0
    %361 = vmatprep.subr.mxu0 0.0
    %362 = vmatpush1.msra.mxu0 0.0
    %363 = vmatprep.subr.mxu0 0.0
    %364 = vmatpush1.msra.mxu0 0.0
    %365 = vmatprep.subr.mxu0 0.0
    %366 = vmatpush1.msra.mxu0 0.0
    %367 = vmatprep.subr.mxu0 0.0
    %368 = vmatpush1.msra.mxu0 0.0
    %369 = vmatprep.subr.mxu0 0.0
    %370 = vmatpush1.msra.mxu0 0.0
    %371 = vmatprep.subr.mxu0 0.0
    %372 = vmatpush1.msra.mxu0 0.0
    %373 = vmatprep.subr.mxu0 0.0
    %374 = vmatpush1.msra.mxu0 0.0
    %375 = vmatprep.subr.mxu0 0.0
    %376 = vmatpush1.msra.mxu0 0.0
    %377 = vmatprep.subr.mxu0 0.0
    %378 = vmatpush1.msra.mxu0 0.0
    %379 = vmatprep.subr.mxu0 0.0
    %380 = vmatpush1.msra.mxu0 0.0
    %381 = vmatprep.subr.mxu0 0.0
    %382 = vmatpush1.msra.mxu0 0.0
    %383 = vmatprep.subr.mxu0 0.0
    %v384 = vand.u32 %v83, 4294901760
    %v385 = vsub.f32 %v83, %v384
    %386 = vmatpush1.msra.mxu0 %v385
    %387 = vmatprep.subr.mxu0 0.0
    %v388 = vand.u32 %v47, 4294901760
    %v389 = vsub.f32 %v47, %v388
    %390 = vmatpush1.msra.mxu0 %v389
    %391 = vmatprep.subr.mxu0 0.0
    %392 = vmatpush2.msra.mxu0 0.0
    %393 = vmatprep.subr.mxu0 0.0
    %394 = vmatpush2.msra.mxu0 0.0
    %395 = vmatprep.subr.mxu0 0.0
    %396 = vmatpush2.msra.mxu0 0.0
    %397 = vmatprep.subr.mxu0 0.0
    %398 = vmatpush2.msra.mxu0 0.0
    %399 = vmatprep.subr.mxu0 0.0
    %400 = vmatpush2.msra.mxu0 0.0
    %401 = vmatprep.subr.mxu0 0.0
    %402 = vmatpush2.msra.mxu0 0.0
    %403 = vmatprep.subr.mxu0 0.0
    %404 = vmatpush2.msra.mxu0 0.0
    %405 = vmatprep.subr.mxu0 0.0
    %406 = vmatpush2.msra.mxu0 0.0
    %407 = vmatprep.subr.mxu0 0.0
    %408 = vmatpush2.msra.mxu0 0.0
    %409 = vmatprep.subr.mxu0 0.0
    %410 = vmatpush2.msra.mxu0 0.0
    %411 = vmatprep.subr.mxu0 0.0
    %412 = vmatpush2.msra.mxu0 0.0
    %413 = vmatprep.subr.mxu0 0.0
    %414 = vmatpush2.msra.mxu0 0.0
    %415 = vmatprep.subr.mxu0 0.0
    %416 = vmatpush2.msra.mxu0 0.0
    %417 = vmatprep.subr.mxu0 0.0
    %418 = vmatpush2.msra.mxu0 0.0
    %419 = vmatprep.subr.mxu0 0.0
    %420 = vmatpush2.msra.mxu0 0.0
    %421 = vmatprep.subr.mxu0 0.0
    %422 = vmatpush2.msra.mxu0 0.0
    %423 = vmatprep.mubr.f32.mxu0 0.0
    %v424 = vand.u32 %v58, 4294901760
    %v425 = vsub.f32 %v58, %v424
    %426 = vmatmul.mubr.f32.gmra.mxu0 %v425
    %v427 = vpop.f32.mrf.mxu0
    %v428 = vadd.f32 %v310, %v427
    %v429 = vpop.f32.mrf.mxu0
    %430 = vmatprep.mubr.f32.mxu0 0.0
    %v431 = vand.u32 %v61, 4294901760
    %v432 = vsub.f32 %v61, %v431
    %433 = vmatmul.mubr.f32.gmra.mxu0 %v432
    %v434 = vpop.f32.mrf.mxu0
    %v435 = vadd.f32 %v316, %v434
    %v436 = vpop.f32.mrf.mxu0
    %437 = vmatprep.mubr.f32.mxu0 0.0
    %v438 = vand.u32 %v64, 4294901760
    %v439 = vsub.f32 %v64, %v438
    %440 = vmatmul.mubr.f32.gmra.mxu0 %v439
    %v441 = vpop.f32.mrf.mxu0
    %v442 = vadd.f32 %v322, %v441
    %v443 = vpop.f32.mrf.mxu0
    %444 = vmatprep.mubr.f32.mxu0 0.0
    %v445 = vand.u32 %v67, 4294901760
    %v446 = vsub.f32 %v67, %v445
    %447 = vmatmul.mubr.f32.gmra.mxu0 %v446
    %v448 = vpop.f32.mrf.mxu0
    %v449 = vadd.f32 %v328, %v448
    %v450 = vpop.f32.mrf.mxu0
    %451 = vmatprep.mubr.f32.mxu0 0.0
    %v452 = vand.u32 %v70, 4294901760
    %v453 = vsub.f32 %v70, %v452
    %454 = vmatmul.mubr.f32.gmra.mxu0 %v453
    %v455 = vpop.f32.mrf.mxu0
    %v456 = vadd.f32 %v334, %v455
    %v457 = vpop.f32.mrf.mxu0
    %458 = vmatprep.mubr.f32.mxu0 0.0
    %v459 = vand.u32 %v73, 4294901760
    %v460 = vsub.f32 %v73, %v459
    %461 = vmatmul.mubr.f32.gmra.mxu0 %v460
    %v462 = vpop.f32.mrf.mxu0
    %v463 = vadd.f32 %v340, %v462
    %v464 = vpop.f32.mrf.mxu0
    %465 = vmatprep.mubr.f32.mxu0 0.0
    %v466 = vand.u32 %v76, 4294901760
    %v467 = vsub.f32 %v76, %v466
    %468 = vmatmul.mubr.f32.gmra.mxu0 %v467
    %v469 = vpop.f32.mrf.mxu0
    %v470 = vadd.f32 %v346, %v469
    %v471 = vpop.f32.mrf.mxu0
    %472 = vmatprep.mubr.f32.mxu0 0.0
    %v473 = vand.u32 %v79, 4294901760
    %v474 = vsub.f32 %v79, %v473
    %475 = vmatmul.mubr.f32.gmra.mxu0 %v474
    %v476 = vpop.f32.mrf.mxu0
    %v477 = vadd.f32 %v352, %v476
    %v478 = vpop.f32.mrf.mxu0
    %479 = vdwg.mxu0
    %480 = vmatprep.subr.mxu0 0.0
    %481 = vmatpush1.msra.mxu0 0.0
    %482 = vmatprep.subr.mxu0 0.0
    %483 = vmatpush1.msra.mxu0 0.0
    %484 = vmatprep.subr.mxu0 0.0
    %485 = vmatpush1.msra.mxu0 0.0
    %486 = vmatprep.subr.mxu0 0.0
    %487 = vmatpush1.msra.mxu0 0.0
    %488 = vmatprep.subr.mxu0 0.0
    %489 = vmatpush1.msra.mxu0 0.0
    %490 = vmatprep.subr.mxu0 0.0
    %491 = vmatpush1.msra.mxu0 0.0
    %492 = vmatprep.subr.mxu0 0.0
    %493 = vmatpush1.msra.mxu0 0.0
    %494 = vmatprep.subr.mxu0 0.0
    %495 = vmatpush1.msra.mxu0 0.0
    %496 = vmatprep.subr.mxu0 0.0
    %497 = vmatpush1.msra.mxu0 0.0
    %498 = vmatprep.subr.mxu0 0.0
    %499 = vmatpush1.msra.mxu0 0.0
    %500 = vmatprep.subr.mxu0 0.0
    %501 = vmatpush1.msra.mxu0 0.0
    %502 = vmatprep.subr.mxu0 0.0
    %503 = vmatpush1.msra.mxu0 0.0
    %504 = vmatprep.subr.mxu0 0.0
    %505 = vmatpush1.msra.mxu0 0.0
    %506 = vmatprep.subr.mxu0 0.0
    %507 = vmatpush1.msra.mxu0 0.0
    %508 = vmatprep.subr.mxu0 0.0
    %v509 = vand.u32 %v83, 4294901760
    %510 = vmatpush1.msra.mxu0 %v509
    %511 = vmatprep.subr.mxu0 0.0
    %v512 = vand.u32 %v47, 4294901760
    %513 = vmatpush1.msra.mxu0 %v512
    %514 = vmatprep.subr.mxu0 0.0
    %515 = vmatpush2.msra.mxu0 0.0
    %516 = vmatprep.subr.mxu0 0.0
    %517 = vmatpush2.msra.mxu0 0.0
    %518 = vmatprep.subr.mxu0 0.0
    %519 = vmatpush2.msra.mxu0 0.0
    %520 = vmatprep.subr.mxu0 0.0
    %521 = vmatpush2.msra.mxu0 0.0
    %522 = vmatprep.subr.mxu0 0.0
    %523 = vmatpush2.msra.mxu0 0.0
    %524 = vmatprep.subr.mxu0 0.0
    %525 = vmatpush2.msra.mxu0 0.0
    %526 = vmatprep.subr.mxu0 0.0
    %527 = vmatpush2.msra.mxu0 0.0
    %528 = vmatprep.subr.mxu0 0.0
    %529 = vmatpush2.msra.mxu0 0.0
    %530 = vmatprep.subr.mxu0 0.0
    %531 = vmatpush2.msra.mxu0 0.0
    %532 = vmatprep.subr.mxu0 0.0
    %533 = vmatpush2.msra.mxu0 0.0
    %534 = vmatprep.subr.mxu0 0.0
    %535 = vmatpush2.msra.mxu0 0.0
    %536 = vmatprep.subr.mxu0 0.0
    %537 = vmatpush2.msra.mxu0 0.0
    %538 = vmatprep.subr.mxu0 0.0
    %539 = vmatpush2.msra.mxu0 0.0
    %540 = vmatprep.subr.mxu0 0.0
    %541 = vmatpush2.msra.mxu0 0.0
    %542 = vmatprep.subr.mxu0 0.0
    %543 = vmatpush2.msra.mxu0 0.0
    %544 = vmatprep.subr.mxu0 0.0
    %545 = vmatpush2.msra.mxu0 0.0
    %546 = vmatprep.mubr.f32.mxu0 0.0
    %v547 = vand.u32 %v58, 4294901760
    %v548 = vsub.f32 %v58, %v547
    %v549 = vand.u32 %v548, 4294901760
    %550 = vmatmul.mubr.f32.gmra.mxu0 %v549
    %v551 = vpop.f32.mrf.mxu0
    %v552 = vadd.f32 %v428, %v551
    %v553 = vpop.f32.mrf.mxu0
    %554 = vmatprep.mubr.f32.mxu0 0.0
    %v555 = vand.u32 %v61, 4294901760
    %v556 = vsub.f32 %v61, %v555
    %v557 = vand.u32 %v556, 4294901760
    %558 = vmatmul.mubr.f32.gmra.mxu0 %v557
    %v559 = vpop.f32.mrf.mxu0
    %v560 = vadd.f32 %v435, %v559
    %v561 = vpop.f32.mrf.mxu0
    %562 = vmatprep.mubr.f32.mxu0 0.0
    %v563 = vand.u32 %v64, 4294901760
    %v564 = vsub.f32 %v64, %v563
    %v565 = vand.u32 %v564, 4294901760
    %566 = vmatmul.mubr.f32.gmra.mxu0 %v565
    %v567 = vpop.f32.mrf.mxu0
    %v568 = vadd.f32 %v442, %v567
    %v569 = vpop.f32.mrf.mxu0
    %570 = vmatprep.mubr.f32.mxu0 0.0
    %v571 = vand.u32 %v67, 4294901760
    %v572 = vsub.f32 %v67, %v571
    %v573 = vand.u32 %v572, 4294901760
    %574 = vmatmul.mubr.f32.gmra.mxu0 %v573
    %v575 = vpop.f32.mrf.mxu0
    %v576 = vadd.f32 %v449, %v575
    %v577 = vpop.f32.mrf.mxu0
    %578 = vmatprep.mubr.f32.mxu0 0.0
    %v579 = vand.u32 %v70, 4294901760
    %v580 = vsub.f32 %v70, %v579
    %v581 = vand.u32 %v580, 4294901760
    %582 = vmatmul.mubr.f32.gmra.mxu0 %v581
    %v583 = vpop.f32.mrf.mxu0
    %v584 = vadd.f32 %v456, %v583
    %v585 = vpop.f32.mrf.mxu0
    %586 = vmatprep.mubr.f32.mxu0 0.0
    %v587 = vand.u32 %v73, 4294901760
    %v588 = vsub.f32 %v73, %v587
    %v589 = vand.u32 %v588, 4294901760
    %590 = vmatmul.mubr.f32.gmra.mxu0 %v589
    %v591 = vpop.f32.mrf.mxu0
    %v592 = vadd.f32 %v463, %v591
    %v593 = vpop.f32.mrf.mxu0
    %594 = vmatprep.mubr.f32.mxu0 0.0
    %v595 = vand.u32 %v76, 4294901760
    %v596 = vsub.f32 %v76, %v595
    %v597 = vand.u32 %v596, 4294901760
    %598 = vmatmul.mubr.f32.gmra.mxu0 %v597
    %v599 = vpop.f32.mrf.mxu0
    %v600 = vadd.f32 %v470, %v599
    %v601 = vpop.f32.mrf.mxu0
    %602 = vmatprep.mubr.f32.mxu0 0.0
    %v603 = vand.u32 %v79, 4294901760
    %v604 = vsub.f32 %v79, %v603
    %v605 = vand.u32 %v604, 4294901760
    %606 = vmatmul.mubr.f32.gmra.mxu0 %v605
    %v607 = vpop.f32.mrf.mxu0
    %v608 = vadd.f32 %v477, %v607
    %v609 = vpop.f32.mrf.mxu0
    %610 = vdwg.mxu0
    %611 = vmatprep.subr.mxu0 0.0
    %612 = vmatpush1.msra.mxu0 0.0
    %613 = vmatprep.subr.mxu0 0.0
    %614 = vmatpush1.msra.mxu0 0.0
    %615 = vmatprep.subr.mxu0 0.0
    %616 = vmatpush1.msra.mxu0 0.0
    %617 = vmatprep.subr.mxu0 0.0
    %618 = vmatpush1.msra.mxu0 0.0
    %619 = vmatprep.subr.mxu0 0.0
    %620 = vmatpush1.msra.mxu0 0.0
    %621 = vmatprep.subr.mxu0 0.0
    %622 = vmatpush1.msra.mxu0 0.0
    %623 = vmatprep.subr.mxu0 0.0
    %624 = vmatpush1.msra.mxu0 0.0
    %625 = vmatprep.subr.mxu0 0.0
    %626 = vmatpush1.msra.mxu0 0.0
    %627 = vmatprep.subr.mxu0 0.0
    %628 = vmatpush1.msra.mxu0 0.0
    %629 = vmatprep.subr.mxu0 0.0
    %630 = vmatpush1.msra.mxu0 0.0
    %631 = vmatprep.subr.mxu0 0.0
    %632 = vmatpush1.msra.mxu0 0.0
    %633 = vmatprep.subr.mxu0 0.0
    %634 = vmatpush1.msra.mxu0 0.0
    %635 = vmatprep.subr.mxu0 0.0
    %636 = vmatpush1.msra.mxu0 0.0
    %637 = vmatprep.subr.mxu0 0.0
    %638 = vmatpush1.msra.mxu0 0.0
    %639 = vmatprep.subr.mxu0 0.0
    %v640 = vand.u32 %v83, 4294901760
    %v641 = vsub.f32 %v83, %v640
    %v642 = vand.u32 %v641, 4294901760
    %643 = vmatpush1.msra.mxu0 %v642
    %644 = vmatprep.subr.mxu0 0.0
    %v645 = vand.u32 %v47, 4294901760
    %v646 = vsub.f32 %v47, %v645
    %v647 = vand.u32 %v646, 4294901760
    %648 = vmatpush1.msra.mxu0 %v647
    %649 = vmatprep.subr.mxu0 0.0
    %650 = vmatpush2.msra.mxu0 0.0
    %651 = vmatprep.subr.mxu0 0.0
    %652 = vmatpush2.msra.mxu0 0.0
    %653 = vmatprep.subr.mxu0 0.0
    %654 = vmatpush2.msra.mxu0 0.0
    %655 = vmatprep.subr.mxu0 0.0
    %656 = vmatpush2.msra.mxu0 0.0
    %657 = vmatprep.subr.mxu0 0.0
    %658 = vmatpush2.msra.mxu0 0.0
    %659 = vmatprep.subr.mxu0 0.0
    %660 = vmatpush2.msra.mxu0 0.0
    %661 = vmatprep.subr.mxu0 0.0
    %662 = vmatpush2.msra.mxu0 0.0
    %663 = vmatprep.subr.mxu0 0.0
    %664 = vmatpush2.msra.mxu0 0.0
    %665 = vmatprep.subr.mxu0 0.0
    %666 = vmatpush2.msra.mxu0 0.0
    %667 = vmatprep.subr.mxu0 0.0
    %668 = vmatpush2.msra.mxu0 0.0
    %669 = vmatprep.subr.mxu0 0.0
    %670 = vmatpush2.msra.mxu0 0.0
    %671 = vmatprep.subr.mxu0 0.0
    %672 = vmatpush2.msra.mxu0 0.0
    %673 = vmatprep.subr.mxu0 0.0
    %674 = vmatpush2.msra.mxu0 0.0
    %675 = vmatprep.subr.mxu0 0.0
    %676 = vmatpush2.msra.mxu0 0.0
    %677 = vmatprep.subr.mxu0 0.0
    %678 = vmatpush2.msra.mxu0 0.0
    %679 = vmatprep.subr.mxu0 0.0
    %680 = vmatpush2.msra.mxu0 0.0
    %681 = vmatprep.mubr.f32.mxu0 0.0
    %v682 = vand.u32 %v58, 4294901760
    %683 = vmatmul.mubr.f32.gmra.mxu0 %v682
    %v684 = vpop.f32.mrf.mxu0
    %v685 = vadd.f32 %v552, %v684
    %v686 = vpop.f32.mrf.mxu0
    %687 = vmatprep.mubr.f32.mxu0 0.0
    %v688 = vand.u32 %v61, 4294901760
    %689 = vmatmul.mubr.f32.gmra.mxu0 %v688
    %v690 = vpop.f32.mrf.mxu0
    %v691 = vadd.f32 %v560, %v690
    %v692 = vpop.f32.mrf.mxu0
    %693 = vmatprep.mubr.f32.mxu0 0.0
    %v694 = vand.u32 %v64, 4294901760
    %695 = vmatmul.mubr.f32.gmra.mxu0 %v694
    %v696 = vpop.f32.mrf.mxu0
    %v697 = vadd.f32 %v568, %v696
    %v698 = vpop.f32.mrf.mxu0
    %699 = vmatprep.mubr.f32.mxu0 0.0
    %v700 = vand.u32 %v67, 4294901760
    %701 = vmatmul.mubr.f32.gmra.mxu0 %v700
    %v702 = vpop.f32.mrf.mxu0
    %v703 = vadd.f32 %v576, %v702
    %v704 = vpop.f32.mrf.mxu0
    %705 = vmatprep.mubr.f32.mxu0 0.0
    %v706 = vand.u32 %v70, 4294901760
    %707 = vmatmul.mubr.f32.gmra.mxu0 %v706
    %v708 = vpop.f32.mrf.mxu0
    %v709 = vadd.f32 %v584, %v708
    %v710 = vpop.f32.mrf.mxu0
    %711 = vmatprep.mubr.f32.mxu0 0.0
    %v712 = vand.u32 %v73, 4294901760
    %713 = vmatmul.mubr.f32.gmra.mxu0 %v712
    %v714 = vpop.f32.mrf.mxu0
    %v715 = vadd.f32 %v592, %v714
    %v716 = vpop.f32.mrf.mxu0
    %717 = vmatprep.mubr.f32.mxu0 0.0
    %v718 = vand.u32 %v76, 4294901760
    %719 = vmatmul.mubr.f32.gmra.mxu0 %v718
    %v720 = vpop.f32.mrf.mxu0
    %v721 = vadd.f32 %v600, %v720
    %v722 = vpop.f32.mrf.mxu0
    %723 = vmatprep.mubr.f32.mxu0 0.0
    %v724 = vand.u32 %v79, 4294901760
    %725 = vmatmul.mubr.f32.gmra.mxu0 %v724
    %v726 = vpop.f32.mrf.mxu0
    %v727 = vadd.f32 %v608, %v726
    %v728 = vpop.f32.mrf.mxu0
    %729 = vdwg.mxu0
    %730 = vmatprep.subr.mxu0 0.0
    %731 = vmatpush1.msra.mxu0 0.0
    %732 = vmatprep.subr.mxu0 0.0
    %733 = vmatpush1.msra.mxu0 0.0
    %734 = vmatprep.subr.mxu0 0.0
    %735 = vmatpush1.msra.mxu0 0.0
    %736 = vmatprep.subr.mxu0 0.0
    %737 = vmatpush1.msra.mxu0 0.0
    %738 = vmatprep.subr.mxu0 0.0
    %739 = vmatpush1.msra.mxu0 0.0
    %740 = vmatprep.subr.mxu0 0.0
    %741 = vmatpush1.msra.mxu0 0.0
    %742 = vmatprep.subr.mxu0 0.0
    %743 = vmatpush1.msra.mxu0 0.0
    %744 = vmatprep.subr.mxu0 0.0
    %745 = vmatpush1.msra.mxu0 0.0
    %746 = vmatprep.subr.mxu0 0.0
    %747 = vmatpush1.msra.mxu0 0.0
    %748 = vmatprep.subr.mxu0 0.0
    %749 = vmatpush1.msra.mxu0 0.0
    %750 = vmatprep.subr.mxu0 0.0
    %751 = vmatpush1.msra.mxu0 0.0
    %752 = vmatprep.subr.mxu0 0.0
    %753 = vmatpush1.msra.mxu0 0.0
    %754 = vmatprep.subr.mxu0 0.0
    %755 = vmatpush1.msra.mxu0 0.0
    %756 = vmatprep.subr.mxu0 0.0
    %757 = vmatpush1.msra.mxu0 0.0
    %758 = vmatprep.subr.mxu0 0.0
    %v759 = vand.u32 %v83, 4294901760
    %760 = vmatpush1.msra.mxu0 %v759
    %761 = vmatprep.subr.mxu0 0.0
    %v762 = vand.u32 %v47, 4294901760
    %763 = vmatpush1.msra.mxu0 %v762
    %764 = vmatprep.subr.mxu0 0.0
    %765 = vmatpush2.msra.mxu0 0.0
    %766 = vmatprep.subr.mxu0 0.0
    %767 = vmatpush2.msra.mxu0 0.0
    %768 = vmatprep.subr.mxu0 0.0
    %769 = vmatpush2.msra.mxu0 0.0
    %770 = vmatprep.subr.mxu0 0.0
    %771 = vmatpush2.msra.mxu0 0.0
    %772 = vmatprep.subr.mxu0 0.0
    %773 = vmatpush2.msra.mxu0 0.0
    %774 = vmatprep.subr.mxu0 0.0
    %775 = vmatpush2.msra.mxu0 0.0
    %776 = vmatprep.subr.mxu0 0.0
    %777 = vmatpush2.msra.mxu0 0.0
    %778 = vmatprep.subr.mxu0 0.0
    %779 = vmatpush2.msra.mxu0 0.0
    %780 = vmatprep.subr.mxu0 0.0
    %781 = vmatpush2.msra.mxu0 0.0
    %782 = vmatprep.subr.mxu0 0.0
    %783 = vmatpush2.msra.mxu0 0.0
    %784 = vmatprep.subr.mxu0 0.0
    %785 = vmatpush2.msra.mxu0 0.0
    %786 = vmatprep.subr.mxu0 0.0
    %787 = vmatpush2.msra.mxu0 0.0
    %788 = vmatprep.subr.mxu0 0.0
    %789 = vmatpush2.msra.mxu0 0.0
    %790 = vmatprep.subr.mxu0 0.0
    %791 = vmatpush2.msra.mxu0 0.0
    %792 = vmatprep.subr.mxu0 0.0
    %793 = vmatpush2.msra.mxu0 0.0
    %794 = vmatprep.subr.mxu0 0.0
    %795 = vmatpush2.msra.mxu0 0.0
    %796 = vmatprep.mubr.f32.mxu0 0.0
    %v797 = vand.u32 %v58, 4294901760
    %798 = vmatmul.mubr.f32.gmra.mxu0 %v797
    %v799 = vpop.f32.mrf.mxu0
    %v800 = vadd.f32 %v685, %v799
    %v801 = vpop.f32.mrf.mxu0
    %802 = vmatprep.mubr.f32.mxu0 0.0
    %v803 = vand.u32 %v61, 4294901760
    %804 = vmatmul.mubr.f32.gmra.mxu0 %v803
    %v805 = vpop.f32.mrf.mxu0
    %v806 = vadd.f32 %v691, %v805
    %v807 = vpop.f32.mrf.mxu0
    %808 = vmatprep.mubr.f32.mxu0 0.0
    %v809 = vand.u32 %v64, 4294901760
    %810 = vmatmul.mubr.f32.gmra.mxu0 %v809
    %v811 = vpop.f32.mrf.mxu0
    %v812 = vadd.f32 %v697, %v811
    %v813 = vpop.f32.mrf.mxu0
    %814 = vmatprep.mubr.f32.mxu0 0.0
    %v815 = vand.u32 %v67, 4294901760
    %816 = vmatmul.mubr.f32.gmra.mxu0 %v815
    %v817 = vpop.f32.mrf.mxu0
    %v818 = vadd.f32 %v703, %v817
    %v819 = vpop.f32.mrf.mxu0
    %820 = vmatprep.mubr.f32.mxu0 0.0
    %v821 = vand.u32 %v70, 4294901760
    %822 = vmatmul.mubr.f32.gmra.mxu0 %v821
    %v823 = vpop.f32.mrf.mxu0
    %v824 = vadd.f32 %v709, %v823
    %v825 = vpop.f32.mrf.mxu0
    %826 = vmatprep.mubr.f32.mxu0 0.0
    %v827 = vand.u32 %v73, 4294901760
    %828 = vmatmul.mubr.f32.gmra.mxu0 %v827
    %v829 = vpop.f32.mrf.mxu0
    %v830 = vadd.f32 %v715, %v829
    %v831 = vpop.f32.mrf.mxu0
    %832 = vmatprep.mubr.f32.mxu0 0.0
    %v833 = vand.u32 %v76, 4294901760
    %834 = vmatmul.mubr.f32.gmra.mxu0 %v833
    %v835 = vpop.f32.mrf.mxu0
    %v836 = vadd.f32 %v721, %v835
    %v837 = vpop.f32.mrf.mxu0
    %838 = vmatprep.mubr.f32.mxu0 0.0
    %v839 = vand.u32 %v79, 4294901760
    %840 = vmatmul.mubr.f32.gmra.mxu0 %v839
    %v841 = vpop.f32.mrf.mxu0
    %v842 = vadd.f32 %v727, %v841
    %v843 = vpop.f32.mrf.mxu0
    %844 = vdwg.mxu0
    %v845 = vld [vmem:[%s2] sm:$0xff]
    %v846 = vld [vmem:[%s2 + $0x8] sm:$0xff]
    %v847 = vld [vmem:[%s2 + $0x10] sm:$0xff]
    %v848 = vld [vmem:[%s2 + $0x18] sm:$0xff]
    %v849 = vld [vmem:[%s2 + $0x20] sm:$0xff]
    %v850 = vld [vmem:[%s2 + $0x28] sm:$0xff]
    %v851 = vld [vmem:[%s2 + $0x30] sm:$0xff]
    %v852 = vld [vmem:[%s2 + $0x38] sm:$0xff]
    %v853 = vld [vmem:[%s2 + $0x40] sm:$0xff]
    %v854 = vld [vmem:[%s2 + $0x48] sm:$0xff]
    %v855 = vld [vmem:[%s2 + $0x50] sm:$0xff]
    %v856 = vld [vmem:[%s2 + $0x58] sm:$0xff]
    %v857 = vld [vmem:[%s2 + $0x60] sm:$0xff]
    %v858 = vld [vmem:[%s2 + $0x68] sm:$0xff]
    %v859 = vld [vmem:[%s2 + $0x70] sm:$0xff]
    %v860 = vld [vmem:[%s2 + $0x78] sm:$0xff]
    %v861 = vtanh.pop %v800
    %862 = vmatprep.subr.mxu0 0.0
    %v863 = vand.u32 %v860, 4294901760
    %864 = vmatpush1.msra.mxu0 %v863
    %865 = vmatprep.subr.mxu0 0.0
    %v866 = vand.u32 %v859, 4294901760
    %867 = vmatpush1.msra.mxu0 %v866
    %868 = vmatprep.subr.mxu0 0.0
    %v869 = vand.u32 %v858, 4294901760
    %870 = vmatpush1.msra.mxu0 %v869
    %871 = vmatprep.subr.mxu0 0.0
    %v872 = vand.u32 %v857, 4294901760
    %873 = vmatpush1.msra.mxu0 %v872
    %874 = vmatprep.subr.mxu0 0.0
    %v875 = vand.u32 %v856, 4294901760
    %876 = vmatpush1.msra.mxu0 %v875
    %877 = vmatprep.subr.mxu0 0.0
    %v878 = vand.u32 %v855, 4294901760
    %879 = vmatpush1.msra.mxu0 %v878
    %880 = vmatprep.subr.mxu0 0.0
    %v881 = vand.u32 %v854, 4294901760
    %882 = vmatpush1.msra.mxu0 %v881
    %883 = vmatprep.subr.mxu0 0.0
    %v884 = vand.u32 %v853, 4294901760
    %885 = vmatpush1.msra.mxu0 %v884
    %886 = vmatprep.subr.mxu0 0.0
    %v887 = vand.u32 %v852, 4294901760
    %888 = vmatpush1.msra.mxu0 %v887
    %889 = vmatprep.subr.mxu0 0.0
    %v890 = vand.u32 %v851, 4294901760
    %891 = vmatpush1.msra.mxu0 %v890
    %892 = vmatprep.subr.mxu0 0.0
    %v893 = vand.u32 %v850, 4294901760
    %894 = vmatpush1.msra.mxu0 %v893
    %895 = vmatprep.subr.mxu0 0.0
    %v896 = vand.u32 %v849, 4294901760
    %897 = vmatpush1.msra.mxu0 %v896
    %898 = vmatprep.subr.mxu0 0.0
    %v899 = vand.u32 %v848, 4294901760
    %900 = vmatpush1.msra.mxu0 %v899
    %901 = vmatprep.subr.mxu0 0.0
    %v902 = vand.u32 %v847, 4294901760
    %903 = vmatpush1.msra.mxu0 %v902
    %904 = vmatprep.subr.mxu0 0.0
    %v905 = vand.u32 %v846, 4294901760
    %906 = vmatpush1.msra.mxu0 %v905
    %907 = vmatprep.subr.mxu0 0.0
    %v908 = vand.u32 %v845, 4294901760
    %909 = vmatpush1.msra.mxu0 %v908
    %910 = vmatprep.subr.mxu0 0.0
    %911 = vmatpush2.msra.mxu0 0.0
    %912 = vmatprep.subr.mxu0 0.0
    %913 = vmatpush2.msra.mxu0 0.0
    %914 = vmatprep.subr.mxu0 0.0
    %915 = vmatpush2.msra.mxu0 0.0
    %916 = vmatprep.subr.mxu0 0.0
    %917 = vmatpush2.msra.mxu0 0.0
    %918 = vmatprep.subr.mxu0 0.0
    %919 = vmatpush2.msra.mxu0 0.0
    %920 = vmatprep.subr.mxu0 0.0
    %921 = vmatpush2.msra.mxu0 0.0
    %922 = vmatprep.subr.mxu0 0.0
    %923 = vmatpush2.msra.mxu0 0.0
    %924 = vmatprep.subr.mxu0 0.0
    %925 = vmatpush2.msra.mxu0 0.0
    %926 = vmatprep.subr.mxu0 0.0
    %927 = vmatpush2.msra.mxu0 0.0
    %928 = vmatprep.subr.mxu0 0.0
    %929 = vmatpush2.msra.mxu0 0.0
    %930 = vmatprep.subr.mxu0 0.0
    %931 = vmatpush2.msra.mxu0 0.0
    %932 = vmatprep.subr.mxu0 0.0
    %933 = vmatpush2.msra.mxu0 0.0
    %934 = vmatprep.subr.mxu0 0.0
    %935 = vmatpush2.msra.mxu0 0.0
    %936 = vmatprep.subr.mxu0 0.0
    %937 = vmatpush2.msra.mxu0 0.0
    %938 = vmatprep.subr.mxu0 0.0
    %939 = vmatpush2.msra.mxu0 0.0
    %940 = vmatprep.subr.mxu0 0.0
    %941 = vmatpush2.msra.mxu0 0.0
    %942 = vmatprep.mubr.f32.mxu0 0.0
    %v943 = vand.u32 %v861, 4294901760
    %v944 = vsub.f32 %v861, %v943
    %v945 = vand.u32 %v944, 4294901760
    %v946 = vsub.f32 %v944, %v945
    %v947 = vand.u32 %v946, 4294901760
    %948 = vmatmul.mubr.f32.gmra.mxu0 %v947
    %v949 = vpop.f32.mrf.mxu0
    %v950 = vadd.f32 0.0, %v949
    %v951 = vpop.f32.mrf.mxu0
    %952 = vdwg.mxu0
    %953 = vmatprep.subr.mxu0 0.0
    %v954 = vand.u32 %v860, 4294901760
    %v955 = vsub.f32 %v860, %v954
    %v956 = vand.u32 %v955, 4294901760
    %v957 = vsub.f32 %v955, %v956
    %v958 = vand.u32 %v957, 4294901760
    %959 = vmatpush1.msra.mxu0 %v958
    %960 = vmatprep.subr.mxu0 0.0
    %v961 = vand.u32 %v859, 4294901760
    %v962 = vsub.f32 %v859, %v961
    %v963 = vand.u32 %v962, 4294901760
    %v964 = vsub.f32 %v962, %v963
    %v965 = vand.u32 %v964, 4294901760
    %966 = vmatpush1.msra.mxu0 %v965
    %967 = vmatprep.subr.mxu0 0.0
    %v968 = vand.u32 %v858, 4294901760
    %v969 = vsub.f32 %v858, %v968
    %v970 = vand.u32 %v969, 4294901760
    %v971 = vsub.f32 %v969, %v970
    %v972 = vand.u32 %v971, 4294901760
    %973 = vmatpush1.msra.mxu0 %v972
    %974 = vmatprep.subr.mxu0 0.0
    %v975 = vand.u32 %v857, 4294901760
    %v976 = vsub.f32 %v857, %v975
    %v977 = vand.u32 %v976, 4294901760
    %v978 = vsub.f32 %v976, %v977
    %v979 = vand.u32 %v978, 4294901760
    %980 = vmatpush1.msra.mxu0 %v979
    %981 = vmatprep.subr.mxu0 0.0
    %v982 = vand.u32 %v856, 4294901760
    %v983 = vsub.f32 %v856, %v982
    %v984 = vand.u32 %v983, 4294901760
    %v985 = vsub.f32 %v983, %v984
    %v986 = vand.u32 %v985, 4294901760
    %987 = vmatpush1.msra.mxu0 %v986
    %988 = vmatprep.subr.mxu0 0.0
    %v989 = vand.u32 %v855, 4294901760
    %v990 = vsub.f32 %v855, %v989
    %v991 = vand.u32 %v990, 4294901760
    %v992 = vsub.f32 %v990, %v991
    %v993 = vand.u32 %v992, 4294901760
    %994 = vmatpush1.msra.mxu0 %v993
    %995 = vmatprep.subr.mxu0 0.0
    %v996 = vand.u32 %v854, 4294901760
    %v997 = vsub.f32 %v854, %v996
    %v998 = vand.u32 %v997, 4294901760
    %v999 = vsub.f32 %v997, %v998
    %v1000 = vand.u32 %v999, 4294901760
    %1001 = vmatpush1.msra.mxu0 %v1000
    %1002 = vmatprep.subr.mxu0 0.0
    %v1003 = vand.u32 %v853, 4294901760
    %v1004 = vsub.f32 %v853, %v1003
    %v1005 = vand.u32 %v1004, 4294901760
    %v1006 = vsub.f32 %v1004, %v1005
    %v1007 = vand.u32 %v1006, 4294901760
    %1008 = vmatpush1.msra.mxu0 %v1007
    %1009 = vmatprep.subr.mxu0 0.0
    %v1010 = vand.u32 %v852, 4294901760
    %v1011 = vsub.f32 %v852, %v1010
    %v1012 = vand.u32 %v1011, 4294901760
    %v1013 = vsub.f32 %v1011, %v1012
    %v1014 = vand.u32 %v1013, 4294901760
    %1015 = vmatpush1.msra.mxu0 %v1014
    %1016 = vmatprep.subr.mxu0 0.0
    %v1017 = vand.u32 %v851, 4294901760
    %v1018 = vsub.f32 %v851, %v1017
    %v1019 = vand.u32 %v1018, 4294901760
    %v1020 = vsub.f32 %v1018, %v1019
    %v1021 = vand.u32 %v1020, 4294901760
    %1022 = vmatpush1.msra.mxu0 %v1021
    %1023 = vmatprep.subr.mxu0 0.0
    %v1024 = vand.u32 %v850, 4294901760
    %v1025 = vsub.f32 %v850, %v1024
    %v1026 = vand.u32 %v1025, 4294901760
    %v1027 = vsub.f32 %v1025, %v1026
    %v1028 = vand.u32 %v1027, 4294901760
    %1029 = vmatpush1.msra.mxu0 %v1028
    %1030 = vmatprep.subr.mxu0 0.0
    %v1031 = vand.u32 %v849, 4294901760
    %v1032 = vsub.f32 %v849, %v1031
    %v1033 = vand.u32 %v1032, 4294901760
    %v1034 = vsub.f32 %v1032, %v1033
    %v1035 = vand.u32 %v1034, 4294901760
    %1036 = vmatpush1.msra.mxu0 %v1035
    %1037 = vmatprep.subr.mxu0 0.0
    %v1038 = vand.u32 %v848, 4294901760
    %v1039 = vsub.f32 %v848, %v1038
    %v1040 = vand.u32 %v1039, 4294901760
    %v1041 = vsub.f32 %v1039, %v1040
    %v1042 = vand.u32 %v1041, 4294901760
    %1043 = vmatpush1.msra.mxu0 %v1042
    %1044 = vmatprep.subr.mxu0 0.0
    %v1045 = vand.u32 %v847, 4294901760
    %v1046 = vsub.f32 %v847, %v1045
    %v1047 = vand.u32 %v1046, 4294901760
    %v1048 = vsub.f32 %v1046, %v1047
    %v1049 = vand.u32 %v1048, 4294901760
    %1050 = vmatpush1.msra.mxu0 %v1049
    %1051 = vmatprep.subr.mxu0 0.0
    %v1052 = vand.u32 %v846, 4294901760
    %v1053 = vsub.f32 %v846, %v1052
    %v1054 = vand.u32 %v1053, 4294901760
    %v1055 = vsub.f32 %v1053, %v1054
    %v1056 = vand.u32 %v1055, 4294901760
    %1057 = vmatpush1.msra.mxu0 %v1056
    %1058 = vmatprep.subr.mxu0 0.0
    %v1059 = vand.u32 %v845, 4294901760
    %v1060 = vsub.f32 %v845, %v1059
    %v1061 = vand.u32 %v1060, 4294901760
    %v1062 = vsub.f32 %v1060, %v1061
    %v1063 = vand.u32 %v1062, 4294901760
    %1064 = vmatpush1.msra.mxu0 %v1063
    %1065 = vmatprep.subr.mxu0 0.0
    %1066 = vmatpush2.msra.mxu0 0.0
    %1067 = vmatprep.subr.mxu0 0.0
    %1068 = vmatpush2.msra.mxu0 0.0
    %1069 = vmatprep.subr.mxu0 0.0
    %1070 = vmatpush2.msra.mxu0 0.0
    %1071 = vmatprep.subr.mxu0 0.0
    %1072 = vmatpush2.msra.mxu0 0.0
    %1073 = vmatprep.subr.mxu0 0.0
    %1074 = vmatpush2.msra.mxu0 0.0
    %1075 = vmatprep.subr.mxu0 0.0
    %1076 = vmatpush2.msra.mxu0 0.0
    %1077 = vmatprep.subr.mxu0 0.0
    %1078 = vmatpush2.msra.mxu0 0.0
    %1079 = vmatprep.subr.mxu0 0.0
    %1080 = vmatpush2.msra.mxu0 0.0
    %1081 = vmatprep.subr.mxu0 0.0
    %1082 = vmatpush2.msra.mxu0 0.0
    %1083 = vmatprep.subr.mxu0 0.0
    %1084 = vmatpush2.msra.mxu0 0.0
    %1085 = vmatprep.subr.mxu0 0.0
    %1086 = vmatpush2.msra.mxu0 0.0
    %1087 = vmatprep.subr.mxu0 0.0
    %1088 = vmatpush2.msra.mxu0 0.0
    %1089 = vmatprep.subr.mxu0 0.0
    %1090 = vmatpush2.msra.mxu0 0.0
    %1091 = vmatprep.subr.mxu0 0.0
    %1092 = vmatpush2.msra.mxu0 0.0
    %1093 = vmatprep.subr.mxu0 0.0
    %1094 = vmatpush2.msra.mxu0 0.0
    %1095 = vmatprep.subr.mxu0 0.0
    %1096 = vmatpush2.msra.mxu0 0.0
    %1097 = vmatprep.mubr.f32.mxu0 0.0
    %v1098 = vand.u32 %v861, 4294901760
    %1099 = vmatmul.mubr.f32.gmra.mxu0 %v1098
    %v1100 = vpop.f32.mrf.mxu0
    %v1101 = vadd.f32 %v950, %v1100
    %v1102 = vpop.f32.mrf.mxu0
    %1103 = vdwg.mxu0
    %1104 = vmatprep.subr.mxu0 0.0
    %v1105 = vand.u32 %v860, 4294901760
    %v1106 = vsub.f32 %v860, %v1105
    %1107 = vmatpush1.msra.mxu0 %v1106
    %1108 = vmatprep.subr.mxu0 0.0
    %v1109 = vand.u32 %v859, 4294901760
    %v1110 = vsub.f32 %v859, %v1109
    %1111 = vmatpush1.msra.mxu0 %v1110
    %1112 = vmatprep.subr.mxu0 0.0
    %v1113 = vand.u32 %v858, 4294901760
    %v1114 = vsub.f32 %v858, %v1113
    %1115 = vmatpush1.msra.mxu0 %v1114
    %1116 = vmatprep.subr.mxu0 0.0
    %v1117 = vand.u32 %v857, 4294901760
    %v1118 = vsub.f32 %v857, %v1117
    %1119 = vmatpush1.msra.mxu0 %v1118
    %1120 = vmatprep.subr.mxu0 0.0
    %v1121 = vand.u32 %v856, 4294901760
    %v1122 = vsub.f32 %v856, %v1121
    %1123 = vmatpush1.msra.mxu0 %v1122
    %1124 = vmatprep.subr.mxu0 0.0
    %v1125 = vand.u32 %v855, 4294901760
    %v1126 = vsub.f32 %v855, %v1125
    %1127 = vmatpush1.msra.mxu0 %v1126
    %1128 = vmatprep.subr.mxu0 0.0
    %v1129 = vand.u32 %v854, 4294901760
    %v1130 = vsub.f32 %v854, %v1129
    %1131 = vmatpush1.msra.mxu0 %v1130
    %1132 = vmatprep.subr.mxu0 0.0
    %v1133 = vand.u32 %v853, 4294901760
    %v1134 = vsub.f32 %v853, %v1133
    %1135 = vmatpush1.msra.mxu0 %v1134
    %1136 = vmatprep.subr.mxu0 0.0
    %v1137 = vand.u32 %v852, 4294901760
    %v1138 = vsub.f32 %v852, %v1137
    %1139 = vmatpush1.msra.mxu0 %v1138
    %1140 = vmatprep.subr.mxu0 0.0
    %v1141 = vand.u32 %v851, 4294901760
    %v1142 = vsub.f32 %v851, %v1141
    %1143 = vmatpush1.msra.mxu0 %v1142
    %1144 = vmatprep.subr.mxu0 0.0
    %v1145 = vand.u32 %v850, 4294901760
    %v1146 = vsub.f32 %v850, %v1145
    %1147 = vmatpush1.msra.mxu0 %v1146
    %1148 = vmatprep.subr.mxu0 0.0
    %v1149 = vand.u32 %v849, 4294901760
    %v1150 = vsub.f32 %v849, %v1149
    %1151 = vmatpush1.msra.mxu0 %v1150
    %1152 = vmatprep.subr.mxu0 0.0
    %v1153 = vand.u32 %v848, 4294901760
    %v1154 = vsub.f32 %v848, %v1153
    %1155 = vmatpush1.msra.mxu0 %v1154
    %1156 = vmatprep.subr.mxu0 0.0
    %v1157 = vand.u32 %v847, 4294901760
    %v1158 = vsub.f32 %v847, %v1157
    %1159 = vmatpush1.msra.mxu0 %v1158
    %1160 = vmatprep.subr.mxu0 0.0
    %v1161 = vand.u32 %v846, 4294901760
    %v1162 = vsub.f32 %v846, %v1161
    %1163 = vmatpush1.msra.mxu0 %v1162
    %1164 = vmatprep.subr.mxu0 0.0
    %v1165 = vand.u32 %v845, 4294901760
    %v1166 = vsub.f32 %v845, %v1165
    %1167 = vmatpush1.msra.mxu0 %v1166
    %1168 = vmatprep.subr.mxu0 0.0
    %1169 = vmatpush2.msra.mxu0 0.0
    %1170 = vmatprep.subr.mxu0 0.0
    %1171 = vmatpush2.msra.mxu0 0.0
    %1172 = vmatprep.subr.mxu0 0.0
    %1173 = vmatpush2.msra.mxu0 0.0
    %1174 = vmatprep.subr.mxu0 0.0
    %1175 = vmatpush2.msra.mxu0 0.0
    %1176 = vmatprep.subr.mxu0 0.0
    %1177 = vmatpush2.msra.mxu0 0.0
    %1178 = vmatprep.subr.mxu0 0.0
    %1179 = vmatpush2.msra.mxu0 0.0
    %1180 = vmatprep.subr.mxu0 0.0
    %1181 = vmatpush2.msra.mxu0 0.0
    %1182 = vmatprep.subr.mxu0 0.0
    %1183 = vmatpush2.msra.mxu0 0.0
    %1184 = vmatprep.subr.mxu0 0.0
    %1185 = vmatpush2.msra.mxu0 0.0
    %1186 = vmatprep.subr.mxu0 0.0
    %1187 = vmatpush2.msra.mxu0 0.0
    %1188 = vmatprep.subr.mxu0 0.0
    %1189 = vmatpush2.msra.mxu0 0.0
    %1190 = vmatprep.subr.mxu0 0.0
    %1191 = vmatpush2.msra.mxu0 0.0
    %1192 = vmatprep.subr.mxu0 0.0
    %1193 = vmatpush2.msra.mxu0 0.0
    %1194 = vmatprep.subr.mxu0 0.0
    %1195 = vmatpush2.msra.mxu0 0.0
    %1196 = vmatprep.subr.mxu0 0.0
    %1197 = vmatpush2.msra.mxu0 0.0
    %1198 = vmatprep.subr.mxu0 0.0
    %1199 = vmatpush2.msra.mxu0 0.0
    %1200 = vmatprep.mubr.f32.mxu0 0.0
    %v1201 = vand.u32 %v861, 4294901760
    %v1202 = vsub.f32 %v861, %v1201
    %1203 = vmatmul.mubr.f32.gmra.mxu0 %v1202
    %v1204 = vpop.f32.mrf.mxu0
    %v1205 = vadd.f32 %v1101, %v1204
    %v1206 = vpop.f32.mrf.mxu0
    %1207 = vdwg.mxu0
    %1208 = vmatprep.subr.mxu0 0.0
    %v1209 = vand.u32 %v860, 4294901760
    %1210 = vmatpush1.msra.mxu0 %v1209
    %1211 = vmatprep.subr.mxu0 0.0
    %v1212 = vand.u32 %v859, 4294901760
    %1213 = vmatpush1.msra.mxu0 %v1212
    %1214 = vmatprep.subr.mxu0 0.0
    %v1215 = vand.u32 %v858, 4294901760
    %1216 = vmatpush1.msra.mxu0 %v1215
    %1217 = vmatprep.subr.mxu0 0.0
    %v1218 = vand.u32 %v857, 4294901760
    %1219 = vmatpush1.msra.mxu0 %v1218
    %1220 = vmatprep.subr.mxu0 0.0
    %v1221 = vand.u32 %v856, 4294901760
    %1222 = vmatpush1.msra.mxu0 %v1221
    %1223 = vmatprep.subr.mxu0 0.0
    %v1224 = vand.u32 %v855, 4294901760
    %1225 = vmatpush1.msra.mxu0 %v1224
    %1226 = vmatprep.subr.mxu0 0.0
    %v1227 = vand.u32 %v854, 4294901760
    %1228 = vmatpush1.msra.mxu0 %v1227
    %1229 = vmatprep.subr.mxu0 0.0
    %v1230 = vand.u32 %v853, 4294901760
    %1231 = vmatpush1.msra.mxu0 %v1230
    %1232 = vmatprep.subr.mxu0 0.0
    %v1233 = vand.u32 %v852, 4294901760
    %1234 = vmatpush1.msra.mxu0 %v1233
    %1235 = vmatprep.subr.mxu0 0.0
    %v1236 = vand.u32 %v851, 4294901760
    %1237 = vmatpush1.msra.mxu0 %v1236
    %1238 = vmatprep.subr.mxu0 0.0
    %v1239 = vand.u32 %v850, 4294901760
    %1240 = vmatpush1.msra.mxu0 %v1239
    %1241 = vmatprep.subr.mxu0 0.0
    %v1242 = vand.u32 %v849, 4294901760
    %1243 = vmatpush1.msra.mxu0 %v1242
    %1244 = vmatprep.subr.mxu0 0.0
    %v1245 = vand.u32 %v848, 4294901760
    %1246 = vmatpush1.msra.mxu0 %v1245
    %1247 = vmatprep.subr.mxu0 0.0
    %v1248 = vand.u32 %v847, 4294901760
    %1249 = vmatpush1.msra.mxu0 %v1248
    %1250 = vmatprep.subr.mxu0 0.0
    %v1251 = vand.u32 %v846, 4294901760
    %1252 = vmatpush1.msra.mxu0 %v1251
    %1253 = vmatprep.subr.mxu0 0.0
    %v1254 = vand.u32 %v845, 4294901760
    %1255 = vmatpush1.msra.mxu0 %v1254
    %1256 = vmatprep.subr.mxu0 0.0
    %1257 = vmatpush2.msra.mxu0 0.0
    %1258 = vmatprep.subr.mxu0 0.0
    %1259 = vmatpush2.msra.mxu0 0.0
    %1260 = vmatprep.subr.mxu0 0.0
    %1261 = vmatpush2.msra.mxu0 0.0
    %1262 = vmatprep.subr.mxu0 0.0
    %1263 = vmatpush2.msra.mxu0 0.0
    %1264 = vmatprep.subr.mxu0 0.0
    %1265 = vmatpush2.msra.mxu0 0.0
    %1266 = vmatprep.subr.mxu0 0.0
    %1267 = vmatpush2.msra.mxu0 0.0
    %1268 = vmatprep.subr.mxu0 0.0
    %1269 = vmatpush2.msra.mxu0 0.0
    %1270 = vmatprep.subr.mxu0 0.0
    %1271 = vmatpush2.msra.mxu0 0.0
    %1272 = vmatprep.subr.mxu0 0.0
    %1273 = vmatpush2.msra.mxu0 0.0
    %1274 = vmatprep.subr.mxu0 0.0
    %1275 = vmatpush2.msra.mxu0 0.0
    %1276 = vmatprep.subr.mxu0 0.0
    %1277 = vmatpush2.msra.mxu0 0.0
    %1278 = vmatprep.subr.mxu0 0.0
    %1279 = vmatpush2.msra.mxu0 0.0
    %1280 = vmatprep.subr.mxu0 0.0
    %1281 = vmatpush2.msra.mxu0 0.0
    %1282 = vmatprep.subr.mxu0 0.0
    %1283 = vmatpush2.msra.mxu0 0.0
    %1284 = vmatprep.subr.mxu0 0.0
    %1285 = vmatpush2.msra.mxu0 0.0
    %1286 = vmatprep.subr.mxu0 0.0
    %1287 = vmatpush2.msra.mxu0 0.0
    %1288 = vmatprep.mubr.f32.mxu0 0.0
    %v1289 = vand.u32 %v861, 4294901760
    %v1290 = vsub.f32 %v861, %v1289
    %v1291 = vand.u32 %v1290, 4294901760
    %1292 = vmatmul.mubr.f32.gmra.mxu0 %v1291
    %v1293 = vpop.f32.mrf.mxu0
    %v1294 = vadd.f32 %v1205, %v1293
    %v1295 = vpop.f32.mrf.mxu0
    %1296 = vdwg.mxu0
    %1297 = vmatprep.subr.mxu0 0.0
    %v1298 = vand.u32 %v860, 4294901760
    %v1299 = vsub.f32 %v860, %v1298
    %v1300 = vand.u32 %v1299, 4294901760
    %1301 = vmatpush1.msra.mxu0 %v1300
    %1302 = vmatprep.subr.mxu0 0.0
    %v1303 = vand.u32 %v859, 4294901760
    %v1304 = vsub.f32 %v859, %v1303
    %v1305 = vand.u32 %v1304, 4294901760
    %1306 = vmatpush1.msra.mxu0 %v1305
    %1307 = vmatprep.subr.mxu0 0.0
    %v1308 = vand.u32 %v858, 4294901760
    %v1309 = vsub.f32 %v858, %v1308
    %v1310 = vand.u32 %v1309, 4294901760
    %1311 = vmatpush1.msra.mxu0 %v1310
    %1312 = vmatprep.subr.mxu0 0.0
    %v1313 = vand.u32 %v857, 4294901760
    %v1314 = vsub.f32 %v857, %v1313
    %v1315 = vand.u32 %v1314, 4294901760
    %1316 = vmatpush1.msra.mxu0 %v1315
    %1317 = vmatprep.subr.mxu0 0.0
    %v1318 = vand.u32 %v856, 4294901760
    %v1319 = vsub.f32 %v856, %v1318
    %v1320 = vand.u32 %v1319, 4294901760
    %1321 = vmatpush1.msra.mxu0 %v1320
    %1322 = vmatprep.subr.mxu0 0.0
    %v1323 = vand.u32 %v855, 4294901760
    %v1324 = vsub.f32 %v855, %v1323
    %v1325 = vand.u32 %v1324, 4294901760
    %1326 = vmatpush1.msra.mxu0 %v1325
    %1327 = vmatprep.subr.mxu0 0.0
    %v1328 = vand.u32 %v854, 4294901760
    %v1329 = vsub.f32 %v854, %v1328
    %v1330 = vand.u32 %v1329, 4294901760
    %1331 = vmatpush1.msra.mxu0 %v1330
    %1332 = vmatprep.subr.mxu0 0.0
    %v1333 = vand.u32 %v853, 4294901760
    %v1334 = vsub.f32 %v853, %v1333
    %v1335 = vand.u32 %v1334, 4294901760
    %1336 = vmatpush1.msra.mxu0 %v1335
    %1337 = vmatprep.subr.mxu0 0.0
    %v1338 = vand.u32 %v852, 4294901760
    %v1339 = vsub.f32 %v852, %v1338
    %v1340 = vand.u32 %v1339, 4294901760
    %1341 = vmatpush1.msra.mxu0 %v1340
    %1342 = vmatprep.subr.mxu0 0.0
    %v1343 = vand.u32 %v851, 4294901760
    %v1344 = vsub.f32 %v851, %v1343
    %v1345 = vand.u32 %v1344, 4294901760
    %1346 = vmatpush1.msra.mxu0 %v1345
    %1347 = vmatprep.subr.mxu0 0.0
    %v1348 = vand.u32 %v850, 4294901760
    %v1349 = vsub.f32 %v850, %v1348
    %v1350 = vand.u32 %v1349, 4294901760
    %1351 = vmatpush1.msra.mxu0 %v1350
    %1352 = vmatprep.subr.mxu0 0.0
    %v1353 = vand.u32 %v849, 4294901760
    %v1354 = vsub.f32 %v849, %v1353
    %v1355 = vand.u32 %v1354, 4294901760
    %1356 = vmatpush1.msra.mxu0 %v1355
    %1357 = vmatprep.subr.mxu0 0.0
    %v1358 = vand.u32 %v848, 4294901760
    %v1359 = vsub.f32 %v848, %v1358
    %v1360 = vand.u32 %v1359, 4294901760
    %1361 = vmatpush1.msra.mxu0 %v1360
    %1362 = vmatprep.subr.mxu0 0.0
    %v1363 = vand.u32 %v847, 4294901760
    %v1364 = vsub.f32 %v847, %v1363
    %v1365 = vand.u32 %v1364, 4294901760
    %1366 = vmatpush1.msra.mxu0 %v1365
    %1367 = vmatprep.subr.mxu0 0.0
    %v1368 = vand.u32 %v846, 4294901760
    %v1369 = vsub.f32 %v846, %v1368
    %v1370 = vand.u32 %v1369, 4294901760
    %1371 = vmatpush1.msra.mxu0 %v1370
    %1372 = vmatprep.subr.mxu0 0.0
    %v1373 = vand.u32 %v845, 4294901760
    %v1374 = vsub.f32 %v845, %v1373
    %v1375 = vand.u32 %v1374, 4294901760
    %1376 = vmatpush1.msra.mxu0 %v1375
    %1377 = vmatprep.subr.mxu0 0.0
    %1378 = vmatpush2.msra.mxu0 0.0
    %1379 = vmatprep.subr.mxu0 0.0
    %1380 = vmatpush2.msra.mxu0 0.0
    %1381 = vmatprep.subr.mxu0 0.0
    %1382 = vmatpush2.msra.mxu0 0.0
    %1383 = vmatprep.subr.mxu0 0.0
    %1384 = vmatpush2.msra.mxu0 0.0
    %1385 = vmatprep.subr.mxu0 0.0
    %1386 = vmatpush2.msra.mxu0 0.0
    %1387 = vmatprep.subr.mxu0 0.0
    %1388 = vmatpush2.msra.mxu0 0.0
    %1389 = vmatprep.subr.mxu0 0.0
    %1390 = vmatpush2.msra.mxu0 0.0
    %1391 = vmatprep.subr.mxu0 0.0
    %1392 = vmatpush2.msra.mxu0 0.0
    %1393 = vmatprep.subr.mxu0 0.0
    %1394 = vmatpush2.msra.mxu0 0.0
    %1395 = vmatprep.subr.mxu0 0.0
    %1396 = vmatpush2.msra.mxu0 0.0
    %1397 = vmatprep.subr.mxu0 0.0
    %1398 = vmatpush2.msra.mxu0 0.0
    %1399 = vmatprep.subr.mxu0 0.0
    %1400 = vmatpush2.msra.mxu0 0.0
    %1401 = vmatprep.subr.mxu0 0.0
    %1402 = vmatpush2.msra.mxu0 0.0
    %1403 = vmatprep.subr.mxu0 0.0
    %1404 = vmatpush2.msra.mxu0 0.0
    %1405 = vmatprep.subr.mxu0 0.0
    %1406 = vmatpush2.msra.mxu0 0.0
    %1407 = vmatprep.subr.mxu0 0.0
    %1408 = vmatpush2.msra.mxu0 0.0
    %1409 = vmatprep.mubr.f32.mxu0 0.0
    %v1410 = vand.u32 %v861, 4294901760
    %1411 = vmatmul.mubr.f32.gmra.mxu0 %v1410
    %v1412 = vpop.f32.mrf.mxu0
    %v1413 = vadd.f32 %v1294, %v1412
    %v1414 = vpop.f32.mrf.mxu0
    %1415 = vdwg.mxu0
    %1416 = vmatprep.subr.mxu0 0.0
    %v1417 = vand.u32 %v860, 4294901760
    %1418 = vmatpush1.msra.mxu0 %v1417
    %1419 = vmatprep.subr.mxu0 0.0
    %v1420 = vand.u32 %v859, 4294901760
    %1421 = vmatpush1.msra.mxu0 %v1420
    %1422 = vmatprep.subr.mxu0 0.0
    %v1423 = vand.u32 %v858, 4294901760
    %1424 = vmatpush1.msra.mxu0 %v1423
    %1425 = vmatprep.subr.mxu0 0.0
    %v1426 = vand.u32 %v857, 4294901760
    %1427 = vmatpush1.msra.mxu0 %v1426
    %1428 = vmatprep.subr.mxu0 0.0
    %v1429 = vand.u32 %v856, 4294901760
    %1430 = vmatpush1.msra.mxu0 %v1429
    %1431 = vmatprep.subr.mxu0 0.0
    %v1432 = vand.u32 %v855, 4294901760
    %1433 = vmatpush1.msra.mxu0 %v1432
    %1434 = vmatprep.subr.mxu0 0.0
    %v1435 = vand.u32 %v854, 4294901760
    %1436 = vmatpush1.msra.mxu0 %v1435
    %1437 = vmatprep.subr.mxu0 0.0
    %v1438 = vand.u32 %v853, 4294901760
    %1439 = vmatpush1.msra.mxu0 %v1438
    %1440 = vmatprep.subr.mxu0 0.0
    %v1441 = vand.u32 %v852, 4294901760
    %1442 = vmatpush1.msra.mxu0 %v1441
    %1443 = vmatprep.subr.mxu0 0.0
    %v1444 = vand.u32 %v851, 4294901760
    %1445 = vmatpush1.msra.mxu0 %v1444
    %1446 = vmatprep.subr.mxu0 0.0
    %v1447 = vand.u32 %v850, 4294901760
    %1448 = vmatpush1.msra.mxu0 %v1447
    %1449 = vmatprep.subr.mxu0 0.0
    %v1450 = vand.u32 %v849, 4294901760
    %1451 = vmatpush1.msra.mxu0 %v1450
    %1452 = vmatprep.subr.mxu0 0.0
    %v1453 = vand.u32 %v848, 4294901760
    %1454 = vmatpush1.msra.mxu0 %v1453
    %1455 = vmatprep.subr.mxu0 0.0
    %v1456 = vand.u32 %v847, 4294901760
    %1457 = vmatpush1.msra.mxu0 %v1456
    %1458 = vmatprep.subr.mxu0 0.0
    %v1459 = vand.u32 %v846, 4294901760
    %1460 = vmatpush1.msra.mxu0 %v1459
    %1461 = vmatprep.subr.mxu0 0.0
    %v1462 = vand.u32 %v845, 4294901760
    %1463 = vmatpush1.msra.mxu0 %v1462
    %1464 = vmatprep.subr.mxu0 0.0
    %1465 = vmatpush2.msra.mxu0 0.0
    %1466 = vmatprep.subr.mxu0 0.0
    %1467 = vmatpush2.msra.mxu0 0.0
    %1468 = vmatprep.subr.mxu0 0.0
    %1469 = vmatpush2.msra.mxu0 0.0
    %1470 = vmatprep.subr.mxu0 0.0
    %1471 = vmatpush2.msra.mxu0 0.0
    %1472 = vmatprep.subr.mxu0 0.0
    %1473 = vmatpush2.msra.mxu0 0.0
    %1474 = vmatprep.subr.mxu0 0.0
    %1475 = vmatpush2.msra.mxu0 0.0
    %1476 = vmatprep.subr.mxu0 0.0
    %1477 = vmatpush2.msra.mxu0 0.0
    %1478 = vmatprep.subr.mxu0 0.0
    %1479 = vmatpush2.msra.mxu0 0.0
    %1480 = vmatprep.subr.mxu0 0.0
    %1481 = vmatpush2.msra.mxu0 0.0
    %1482 = vmatprep.subr.mxu0 0.0
    %1483 = vmatpush2.msra.mxu0 0.0
    %1484 = vmatprep.subr.mxu0 0.0
    %1485 = vmatpush2.msra.mxu0 0.0
    %1486 = vmatprep.subr.mxu0 0.0
    %1487 = vmatpush2.msra.mxu0 0.0
    %1488 = vmatprep.subr.mxu0 0.0
    %1489 = vmatpush2.msra.mxu0 0.0
    %1490 = vmatprep.subr.mxu0 0.0
    %1491 = vmatpush2.msra.mxu0 0.0
    %1492 = vmatprep.subr.mxu0 0.0
    %1493 = vmatpush2.msra.mxu0 0.0
    %1494 = vmatprep.subr.mxu0 0.0
    %1495 = vmatpush2.msra.mxu0 0.0
    %1496 = vmatprep.mubr.f32.mxu0 0.0
    %v1497 = vand.u32 %v861, 4294901760
    %1498 = vmatmul.mubr.f32.gmra.mxu0 %v1497
    %v1499 = vpop.f32.mrf.mxu0
    %v1500 = vadd.f32 %v1413, %v1499
    %v1501 = vpop.f32.mrf.mxu0
    %1502 = vdwg.mxu0
    %v1503 = vadd.f32 %v806, %v1500
    %v1504 = vtanh.pop %v1503
    %1505 = vmatprep.subr.mxu0 0.0
    %v1506 = vand.u32 %v860, 4294901760
    %1507 = vmatpush1.msra.mxu0 %v1506
    %1508 = vmatprep.subr.mxu0 0.0
    %v1509 = vand.u32 %v859, 4294901760
    %1510 = vmatpush1.msra.mxu0 %v1509
    %1511 = vmatprep.subr.mxu0 0.0
    %v1512 = vand.u32 %v858, 4294901760
    %1513 = vmatpush1.msra.mxu0 %v1512
    %1514 = vmatprep.subr.mxu0 0.0
    %v1515 = vand.u32 %v857, 4294901760
    %1516 = vmatpush1.msra.mxu0 %v1515
    %1517 = vmatprep.subr.mxu0 0.0
    %v1518 = vand.u32 %v856, 4294901760
    %1519 = vmatpush1.msra.mxu0 %v1518
    %1520 = vmatprep.subr.mxu0 0.0
    %v1521 = vand.u32 %v855, 4294901760
    %1522 = vmatpush1.msra.mxu0 %v1521
    %1523 = vmatprep.subr.mxu0 0.0
    %v1524 = vand.u32 %v854, 4294901760
    %1525 = vmatpush1.msra.mxu0 %v1524
    %1526 = vmatprep.subr.mxu0 0.0
    %v1527 = vand.u32 %v853, 4294901760
    %1528 = vmatpush1.msra.mxu0 %v1527
    %1529 = vmatprep.subr.mxu0 0.0
    %v1530 = vand.u32 %v852, 4294901760
    %1531 = vmatpush1.msra.mxu0 %v1530
    %1532 = vmatprep.subr.mxu0 0.0
    %v1533 = vand.u32 %v851, 4294901760
    %1534 = vmatpush1.msra.mxu0 %v1533
    %1535 = vmatprep.subr.mxu0 0.0
    %v1536 = vand.u32 %v850, 4294901760
    %1537 = vmatpush1.msra.mxu0 %v1536
    %1538 = vmatprep.subr.mxu0 0.0
    %v1539 = vand.u32 %v849, 4294901760
    %1540 = vmatpush1.msra.mxu0 %v1539
    %1541 = vmatprep.subr.mxu0 0.0
    %v1542 = vand.u32 %v848, 4294901760
    %1543 = vmatpush1.msra.mxu0 %v1542
    %1544 = vmatprep.subr.mxu0 0.0
    %v1545 = vand.u32 %v847, 4294901760
    %1546 = vmatpush1.msra.mxu0 %v1545
    %1547 = vmatprep.subr.mxu0 0.0
    %v1548 = vand.u32 %v846, 4294901760
    %1549 = vmatpush1.msra.mxu0 %v1548
    %1550 = vmatprep.subr.mxu0 0.0
    %v1551 = vand.u32 %v845, 4294901760
    %1552 = vmatpush1.msra.mxu0 %v1551
    %1553 = vmatprep.subr.mxu0 0.0
    %1554 = vmatpush2.msra.mxu0 0.0
    %1555 = vmatprep.subr.mxu0 0.0
    %1556 = vmatpush2.msra.mxu0 0.0
    %1557 = vmatprep.subr.mxu0 0.0
    %1558 = vmatpush2.msra.mxu0 0.0
    %1559 = vmatprep.subr.mxu0 0.0
    %1560 = vmatpush2.msra.mxu0 0.0
    %1561 = vmatprep.subr.mxu0 0.0
    %1562 = vmatpush2.msra.mxu0 0.0
    %1563 = vmatprep.subr.mxu0 0.0
    %1564 = vmatpush2.msra.mxu0 0.0
    %1565 = vmatprep.subr.mxu0 0.0
    %1566 = vmatpush2.msra.mxu0 0.0
    %1567 = vmatprep.subr.mxu0 0.0
    %1568 = vmatpush2.msra.mxu0 0.0
    %1569 = vmatprep.subr.mxu0 0.0
    %1570 = vmatpush2.msra.mxu0 0.0
    %1571 = vmatprep.subr.mxu0 0.0
    %1572 = vmatpush2.msra.mxu0 0.0
    %1573 = vmatprep.subr.mxu0 0.0
    %1574 = vmatpush2.msra.mxu0 0.0
    %1575 = vmatprep.subr.mxu0 0.0
    %1576 = vmatpush2.msra.mxu0 0.0
    %1577 = vmatprep.subr.mxu0 0.0
    %1578 = vmatpush2.msra.mxu0 0.0
    %1579 = vmatprep.subr.mxu0 0.0
    %1580 = vmatpush2.msra.mxu0 0.0
    %1581 = vmatprep.subr.mxu0 0.0
    %1582 = vmatpush2.msra.mxu0 0.0
    %1583 = vmatprep.subr.mxu0 0.0
    %1584 = vmatpush2.msra.mxu0 0.0
    %1585 = vmatprep.mubr.f32.mxu0 0.0
    %v1586 = vand.u32 %v1504, 4294901760
    %v1587 = vsub.f32 %v1504, %v1586
    %v1588 = vand.u32 %v1587, 4294901760
    %v1589 = vsub.f32 %v1587, %v1588
    %v1590 = vand.u32 %v1589, 4294901760
    %1591 = vmatmul.mubr.f32.gmra.mxu0 %v1590
    %v1592 = vpop.f32.mrf.mxu0
    %v1593 = vadd.f32 0.0, %v1592
    %v1594 = vpop.f32.mrf.mxu0
    %1595 = vdwg.mxu0
    %1596 = vmatprep.subr.mxu0 0.0
    %v1597 = vand.u32 %v860, 4294901760
    %v1598 = vsub.f32 %v860, %v1597
    %v1599 = vand.u32 %v1598, 4294901760
    %v1600 = vsub.f32 %v1598, %v1599
    %v1601 = vand.u32 %v1600, 4294901760
    %1602 = vmatpush1.msra.mxu0 %v1601
    %1603 = vmatprep.subr.mxu0 0.0
    %v1604 = vand.u32 %v859, 4294901760
    %v1605 = vsub.f32 %v859, %v1604
    %v1606 = vand.u32 %v1605, 4294901760
    %v1607 = vsub.f32 %v1605, %v1606
    %v1608 = vand.u32 %v1607, 4294901760
    %1609 = vmatpush1.msra.mxu0 %v1608
    %1610 = vmatprep.subr.mxu0 0.0
    %v1611 = vand.u32 %v858, 4294901760
    %v1612 = vsub.f32 %v858, %v1611
    %v1613 = vand.u32 %v1612, 4294901760
    %v1614 = vsub.f32 %v1612, %v1613
    %v1615 = vand.u32 %v1614, 4294901760
    %1616 = vmatpush1.msra.mxu0 %v1615
    %1617 = vmatprep.subr.mxu0 0.0
    %v1618 = vand.u32 %v857, 4294901760
    %v1619 = vsub.f32 %v857, %v1618
    %v1620 = vand.u32 %v1619, 4294901760
    %v1621 = vsub.f32 %v1619, %v1620
    %v1622 = vand.u32 %v1621, 4294901760
    %1623 = vmatpush1.msra.mxu0 %v1622
    %1624 = vmatprep.subr.mxu0 0.0
    %v1625 = vand.u32 %v856, 4294901760
    %v1626 = vsub.f32 %v856, %v1625
    %v1627 = vand.u32 %v1626, 4294901760
    %v1628 = vsub.f32 %v1626, %v1627
    %v1629 = vand.u32 %v1628, 4294901760
    %1630 = vmatpush1.msra.mxu0 %v1629
    %1631 = vmatprep.subr.mxu0 0.0
    %v1632 = vand.u32 %v855, 4294901760
    %v1633 = vsub.f32 %v855, %v1632
    %v1634 = vand.u32 %v1633, 4294901760
    %v1635 = vsub.f32 %v1633, %v1634
    %v1636 = vand.u32 %v1635, 4294901760
    %1637 = vmatpush1.msra.mxu0 %v1636
    %1638 = vmatprep.subr.mxu0 0.0
    %v1639 = vand.u32 %v854, 4294901760
    %v1640 = vsub.f32 %v854, %v1639
    %v1641 = vand.u32 %v1640, 4294901760
    %v1642 = vsub.f32 %v1640, %v1641
    %v1643 = vand.u32 %v1642, 4294901760
    %1644 = vmatpush1.msra.mxu0 %v1643
    %1645 = vmatprep.subr.mxu0 0.0
    %v1646 = vand.u32 %v853, 4294901760
    %v1647 = vsub.f32 %v853, %v1646
    %v1648 = vand.u32 %v1647, 4294901760
    %v1649 = vsub.f32 %v1647, %v1648
    %v1650 = vand.u32 %v1649, 4294901760
    %1651 = vmatpush1.msra.mxu0 %v1650
    %1652 = vmatprep.subr.mxu0 0.0
    %v1653 = vand.u32 %v852, 4294901760
    %v1654 = vsub.f32 %v852, %v1653
    %v1655 = vand.u32 %v1654, 4294901760
    %v1656 = vsub.f32 %v1654, %v1655
    %v1657 = vand.u32 %v1656, 4294901760
    %1658 = vmatpush1.msra.mxu0 %v1657
    %1659 = vmatprep.subr.mxu0 0.0
    %v1660 = vand.u32 %v851, 4294901760
    %v1661 = vsub.f32 %v851, %v1660
    %v1662 = vand.u32 %v1661, 4294901760
    %v1663 = vsub.f32 %v1661, %v1662
    %v1664 = vand.u32 %v1663, 4294901760
    %1665 = vmatpush1.msra.mxu0 %v1664
    %1666 = vmatprep.subr.mxu0 0.0
    %v1667 = vand.u32 %v850, 4294901760
    %v1668 = vsub.f32 %v850, %v1667
    %v1669 = vand.u32 %v1668, 4294901760
    %v1670 = vsub.f32 %v1668, %v1669
    %v1671 = vand.u32 %v1670, 4294901760
    %1672 = vmatpush1.msra.mxu0 %v1671
    %1673 = vmatprep.subr.mxu0 0.0
    %v1674 = vand.u32 %v849, 4294901760
    %v1675 = vsub.f32 %v849, %v1674
    %v1676 = vand.u32 %v1675, 4294901760
    %v1677 = vsub.f32 %v1675, %v1676
    %v1678 = vand.u32 %v1677, 4294901760
    %1679 = vmatpush1.msra.mxu0 %v1678
    %1680 = vmatprep.subr.mxu0 0.0
    %v1681 = vand.u32 %v848, 4294901760
    %v1682 = vsub.f32 %v848, %v1681
    %v1683 = vand.u32 %v1682, 4294901760
    %v1684 = vsub.f32 %v1682, %v1683
    %v1685 = vand.u32 %v1684, 4294901760
    %1686 = vmatpush1.msra.mxu0 %v1685
    %1687 = vmatprep.subr.mxu0 0.0
    %v1688 = vand.u32 %v847, 4294901760
    %v1689 = vsub.f32 %v847, %v1688
    %v1690 = vand.u32 %v1689, 4294901760
    %v1691 = vsub.f32 %v1689, %v1690
    %v1692 = vand.u32 %v1691, 4294901760
    %1693 = vmatpush1.msra.mxu0 %v1692
    %1694 = vmatprep.subr.mxu0 0.0
    %v1695 = vand.u32 %v846, 4294901760
    %v1696 = vsub.f32 %v846, %v1695
    %v1697 = vand.u32 %v1696, 4294901760
    %v1698 = vsub.f32 %v1696, %v1697
    %v1699 = vand.u32 %v1698, 4294901760
    %1700 = vmatpush1.msra.mxu0 %v1699
    %1701 = vmatprep.subr.mxu0 0.0
    %v1702 = vand.u32 %v845, 4294901760
    %v1703 = vsub.f32 %v845, %v1702
    %v1704 = vand.u32 %v1703, 4294901760
    %v1705 = vsub.f32 %v1703, %v1704
    %v1706 = vand.u32 %v1705, 4294901760
    %1707 = vmatpush1.msra.mxu0 %v1706
    %1708 = vmatprep.subr.mxu0 0.0
    %1709 = vmatpush2.msra.mxu0 0.0
    %1710 = vmatprep.subr.mxu0 0.0
    %1711 = vmatpush2.msra.mxu0 0.0
    %1712 = vmatprep.subr.mxu0 0.0
    %1713 = vmatpush2.msra.mxu0 0.0
    %1714 = vmatprep.subr.mxu0 0.0
    %1715 = vmatpush2.msra.mxu0 0.0
    %1716 = vmatprep.subr.mxu0 0.0
    %1717 = vmatpush2.msra.mxu0 0.0
    %1718 = vmatprep.subr.mxu0 0.0
    %1719 = vmatpush2.msra.mxu0 0.0
    %1720 = vmatprep.subr.mxu0 0.0
    %1721 = vmatpush2.msra.mxu0 0.0
    %1722 = vmatprep.subr.mxu0 0.0
    %1723 = vmatpush2.msra.mxu0 0.0
    %1724 = vmatprep.subr.mxu0 0.0
    %1725 = vmatpush2.msra.mxu0 0.0
    %1726 = vmatprep.subr.mxu0 0.0
    %1727 = vmatpush2.msra.mxu0 0.0
    %1728 = vmatprep.subr.mxu0 0.0
    %1729 = vmatpush2.msra.mxu0 0.0
    %1730 = vmatprep.subr.mxu0 0.0
    %1731 = vmatpush2.msra.mxu0 0.0
    %1732 = vmatprep.subr.mxu0 0.0
    %1733 = vmatpush2.msra.mxu0 0.0
    %1734 = vmatprep.subr.mxu0 0.0
    %1735 = vmatpush2.msra.mxu0 0.0
    %1736 = vmatprep.subr.mxu0 0.0
    %1737 = vmatpush2.msra.mxu0 0.0
    %1738 = vmatprep.subr.mxu0 0.0
    %1739 = vmatpush2.msra.mxu0 0.0
    %1740 = vmatprep.mubr.f32.mxu0 0.0
    %v1741 = vand.u32 %v1504, 4294901760
    %1742 = vmatmul.mubr.f32.gmra.mxu0 %v1741
    %v1743 = vpop.f32.mrf.mxu0
    %v1744 = vadd.f32 %v1593, %v1743
    %v1745 = vpop.f32.mrf.mxu0
    %1746 = vdwg.mxu0
    %1747 = vmatprep.subr.mxu0 0.0
    %v1748 = vand.u32 %v860, 4294901760
    %v1749 = vsub.f32 %v860, %v1748
    %1750 = vmatpush1.msra.mxu0 %v1749
    %1751 = vmatprep.subr.mxu0 0.0
    %v1752 = vand.u32 %v859, 4294901760
    %v1753 = vsub.f32 %v859, %v1752
    %1754 = vmatpush1.msra.mxu0 %v1753
    %1755 = vmatprep.subr.mxu0 0.0
    %v1756 = vand.u32 %v858, 4294901760
    %v1757 = vsub.f32 %v858, %v1756
    %1758 = vmatpush1.msra.mxu0 %v1757
    %1759 = vmatprep.subr.mxu0 0.0
    %v1760 = vand.u32 %v857, 4294901760
    %v1761 = vsub.f32 %v857, %v1760
    %1762 = vmatpush1.msra.mxu0 %v1761
    %1763 = vmatprep.subr.mxu0 0.0
    %v1764 = vand.u32 %v856, 4294901760
    %v1765 = vsub.f32 %v856, %v1764
    %1766 = vmatpush1.msra.mxu0 %v1765
    %1767 = vmatprep.subr.mxu0 0.0
    %v1768 = vand.u32 %v855, 4294901760
    %v1769 = vsub.f32 %v855, %v1768
    %1770 = vmatpush1.msra.mxu0 %v1769
    %1771 = vmatprep.subr.mxu0 0.0
    %v1772 = vand.u32 %v854, 4294901760
    %v1773 = vsub.f32 %v854, %v1772
    %1774 = vmatpush1.msra.mxu0 %v1773
    %1775 = vmatprep.subr.mxu0 0.0
    %v1776 = vand.u32 %v853, 4294901760
    %v1777 = vsub.f32 %v853, %v1776
    %1778 = vmatpush1.msra.mxu0 %v1777
    %1779 = vmatprep.subr.mxu0 0.0
    %v1780 = vand.u32 %v852, 4294901760
    %v1781 = vsub.f32 %v852, %v1780
    %1782 = vmatpush1.msra.mxu0 %v1781
    %1783 = vmatprep.subr.mxu0 0.0
    %v1784 = vand.u32 %v851, 4294901760
    %v1785 = vsub.f32 %v851, %v1784
    %1786 = vmatpush1.msra.mxu0 %v1785
    %1787 = vmatprep.subr.mxu0 0.0
    %v1788 = vand.u32 %v850, 4294901760
    %v1789 = vsub.f32 %v850, %v1788
    %1790 = vmatpush1.msra.mxu0 %v1789
    %1791 = vmatprep.subr.mxu0 0.0
    %v1792 = vand.u32 %v849, 4294901760
    %v1793 = vsub.f32 %v849, %v1792
    %1794 = vmatpush1.msra.mxu0 %v1793
    %1795 = vmatprep.subr.mxu0 0.0
    %v1796 = vand.u32 %v848, 4294901760
    %v1797 = vsub.f32 %v848, %v1796
    %1798 = vmatpush1.msra.mxu0 %v1797
    %1799 = vmatprep.subr.mxu0 0.0
    %v1800 = vand.u32 %v847, 4294901760
    %v1801 = vsub.f32 %v847, %v1800
    %1802 = vmatpush1.msra.mxu0 %v1801
    %1803 = vmatprep.subr.mxu0 0.0
    %v1804 = vand.u32 %v846, 4294901760
    %v1805 = vsub.f32 %v846, %v1804
    %1806 = vmatpush1.msra.mxu0 %v1805
    %1807 = vmatprep.subr.mxu0 0.0
    %v1808 = vand.u32 %v845, 4294901760
    %v1809 = vsub.f32 %v845, %v1808
    %1810 = vmatpush1.msra.mxu0 %v1809
    %1811 = vmatprep.subr.mxu0 0.0
    %1812 = vmatpush2.msra.mxu0 0.0
    %1813 = vmatprep.subr.mxu0 0.0
    %1814 = vmatpush2.msra.mxu0 0.0
    %1815 = vmatprep.subr.mxu0 0.0
    %1816 = vmatpush2.msra.mxu0 0.0
    %1817 = vmatprep.subr.mxu0 0.0
    %1818 = vmatpush2.msra.mxu0 0.0
    %1819 = vmatprep.subr.mxu0 0.0
    %1820 = vmatpush2.msra.mxu0 0.0
    %1821 = vmatprep.subr.mxu0 0.0
    %1822 = vmatpush2.msra.mxu0 0.0
    %1823 = vmatprep.subr.mxu0 0.0
    %1824 = vmatpush2.msra.mxu0 0.0
    %1825 = vmatprep.subr.mxu0 0.0
    %1826 = vmatpush2.msra.mxu0 0.0
    %1827 = vmatprep.subr.mxu0 0.0
    %1828 = vmatpush2.msra.mxu0 0.0
    %1829 = vmatprep.subr.mxu0 0.0
    %1830 = vmatpush2.msra.mxu0 0.0
    %1831 = vmatprep.subr.mxu0 0.0
    %1832 = vmatpush2.msra.mxu0 0.0
    %1833 = vmatprep.subr.mxu0 0.0
    %1834 = vmatpush2.msra.mxu0 0.0
    %1835 = vmatprep.subr.mxu0 0.0
    %1836 = vmatpush2.msra.mxu0 0.0
    %1837 = vmatprep.subr.mxu0 0.0
    %1838 = vmatpush2.msra.mxu0 0.0
    %1839 = vmatprep.subr.mxu0 0.0
    %1840 = vmatpush2.msra.mxu0 0.0
    %1841 = vmatprep.subr.mxu0 0.0
    %1842 = vmatpush2.msra.mxu0 0.0
    %1843 = vmatprep.mubr.f32.mxu0 0.0
    %v1844 = vand.u32 %v1504, 4294901760
    %v1845 = vsub.f32 %v1504, %v1844
    %1846 = vmatmul.mubr.f32.gmra.mxu0 %v1845
    %v1847 = vpop.f32.mrf.mxu0
    %v1848 = vadd.f32 %v1744, %v1847
    %v1849 = vpop.f32.mrf.mxu0
    %1850 = vdwg.mxu0
    %1851 = vmatprep.subr.mxu0 0.0
    %v1852 = vand.u32 %v860, 4294901760
    %1853 = vmatpush1.msra.mxu0 %v1852
    %1854 = vmatprep.subr.mxu0 0.0
    %v1855 = vand.u32 %v859, 4294901760
    %1856 = vmatpush1.msra.mxu0 %v1855
    %1857 = vmatprep.subr.mxu0 0.0
    %v1858 = vand.u32 %v858, 4294901760
    %1859 = vmatpush1.msra.mxu0 %v1858
    %1860 = vmatprep.subr.mxu0 0.0
    %v1861 = vand.u32 %v857, 4294901760
    %1862 = vmatpush1.msra.mxu0 %v1861
    %1863 = vmatprep.subr.mxu0 0.0
    %v1864 = vand.u32 %v856, 4294901760
    %1865 = vmatpush1.msra.mxu0 %v1864
    %1866 = vmatprep.subr.mxu0 0.0
    %v1867 = vand.u32 %v855, 4294901760
    %1868 = vmatpush1.msra.mxu0 %v1867
    %1869 = vmatprep.subr.mxu0 0.0
    %v1870 = vand.u32 %v854, 4294901760
    %1871 = vmatpush1.msra.mxu0 %v1870
    %1872 = vmatprep.subr.mxu0 0.0
    %v1873 = vand.u32 %v853, 4294901760
    %1874 = vmatpush1.msra.mxu0 %v1873
    %1875 = vmatprep.subr.mxu0 0.0
    %v1876 = vand.u32 %v852, 4294901760
    %1877 = vmatpush1.msra.mxu0 %v1876
    %1878 = vmatprep.subr.mxu0 0.0
    %v1879 = vand.u32 %v851, 4294901760
    %1880 = vmatpush1.msra.mxu0 %v1879
    %1881 = vmatprep.subr.mxu0 0.0
    %v1882 = vand.u32 %v850, 4294901760
    %1883 = vmatpush1.msra.mxu0 %v1882
    %1884 = vmatprep.subr.mxu0 0.0
    %v1885 = vand.u32 %v849, 4294901760
    %1886 = vmatpush1.msra.mxu0 %v1885
    %1887 = vmatprep.subr.mxu0 0.0
    %v1888 = vand.u32 %v848, 4294901760
    %1889 = vmatpush1.msra.mxu0 %v1888
    %1890 = vmatprep.subr.mxu0 0.0
    %v1891 = vand.u32 %v847, 4294901760
    %1892 = vmatpush1.msra.mxu0 %v1891
    %1893 = vmatprep.subr.mxu0 0.0
    %v1894 = vand.u32 %v846, 4294901760
    %1895 = vmatpush1.msra.mxu0 %v1894
    %1896 = vmatprep.subr.mxu0 0.0
    %v1897 = vand.u32 %v845, 4294901760
    %1898 = vmatpush1.msra.mxu0 %v1897
    %1899 = vmatprep.subr.mxu0 0.0
    %1900 = vmatpush2.msra.mxu0 0.0
    %1901 = vmatprep.subr.mxu0 0.0
    %1902 = vmatpush2.msra.mxu0 0.0
    %1903 = vmatprep.subr.mxu0 0.0
    %1904 = vmatpush2.msra.mxu0 0.0
    %1905 = vmatprep.subr.mxu0 0.0
    %1906 = vmatpush2.msra.mxu0 0.0
    %1907 = vmatprep.subr.mxu0 0.0
    %1908 = vmatpush2.msra.mxu0 0.0
    %1909 = vmatprep.subr.mxu0 0.0
    %1910 = vmatpush2.msra.mxu0 0.0
    %1911 = vmatprep.subr.mxu0 0.0
    %1912 = vmatpush2.msra.mxu0 0.0
    %1913 = vmatprep.subr.mxu0 0.0
    %1914 = vmatpush2.msra.mxu0 0.0
    %1915 = vmatprep.subr.mxu0 0.0
    %1916 = vmatpush2.msra.mxu0 0.0
    %1917 = vmatprep.subr.mxu0 0.0
    %1918 = vmatpush2.msra.mxu0 0.0
    %1919 = vmatprep.subr.mxu0 0.0
    %1920 = vmatpush2.msra.mxu0 0.0
    %1921 = vmatprep.subr.mxu0 0.0
    %1922 = vmatpush2.msra.mxu0 0.0
    %1923 = vmatprep.subr.mxu0 0.0
    %1924 = vmatpush2.msra.mxu0 0.0
    %1925 = vmatprep.subr.mxu0 0.0
    %1926 = vmatpush2.msra.mxu0 0.0
    %1927 = vmatprep.subr.mxu0 0.0
    %1928 = vmatpush2.msra.mxu0 0.0
    %1929 = vmatprep.subr.mxu0 0.0
    %1930 = vmatpush2.msra.mxu0 0.0
    %1931 = vmatprep.mubr.f32.mxu0 0.0
    %v1932 = vand.u32 %v1504, 4294901760
    %v1933 = vsub.f32 %v1504, %v1932
    %v1934 = vand.u32 %v1933, 4294901760
    %1935 = vmatmul.mubr.f32.gmra.mxu0 %v1934
    %v1936 = vpop.f32.mrf.mxu0
    %v1937 = vadd.f32 %v1848, %v1936
    %v1938 = vpop.f32.mrf.mxu0
    %1939 = vdwg.mxu0
    %1940 = vmatprep.subr.mxu0 0.0
    %v1941 = vand.u32 %v860, 4294901760
    %v1942 = vsub.f32 %v860, %v1941
    %v1943 = vand.u32 %v1942, 4294901760
    %1944 = vmatpush1.msra.mxu0 %v1943
    %1945 = vmatprep.subr.mxu0 0.0
    %v1946 = vand.u32 %v859, 4294901760
    %v1947 = vsub.f32 %v859, %v1946
    %v1948 = vand.u32 %v1947, 4294901760
    %1949 = vmatpush1.msra.mxu0 %v1948
    %1950 = vmatprep.subr.mxu0 0.0
    %v1951 = vand.u32 %v858, 4294901760
    %v1952 = vsub.f32 %v858, %v1951
    %v1953 = vand.u32 %v1952, 4294901760
    %1954 = vmatpush1.msra.mxu0 %v1953
    %1955 = vmatprep.subr.mxu0 0.0
    %v1956 = vand.u32 %v857, 4294901760
    %v1957 = vsub.f32 %v857, %v1956
    %v1958 = vand.u32 %v1957, 4294901760
    %1959 = vmatpush1.msra.mxu0 %v1958
    %1960 = vmatprep.subr.mxu0 0.0
    %v1961 = vand.u32 %v856, 4294901760
    %v1962 = vsub.f32 %v856, %v1961
    %v1963 = vand.u32 %v1962, 4294901760
    %1964 = vmatpush1.msra.mxu0 %v1963
    %1965 = vmatprep.subr.mxu0 0.0
    %v1966 = vand.u32 %v855, 4294901760
    %v1967 = vsub.f32 %v855, %v1966
    %v1968 = vand.u32 %v1967, 4294901760
    %1969 = vmatpush1.msra.mxu0 %v1968
    %1970 = vmatprep.subr.mxu0 0.0
    %v1971 = vand.u32 %v854, 4294901760
    %v1972 = vsub.f32 %v854, %v1971
    %v1973 = vand.u32 %v1972, 4294901760
    %1974 = vmatpush1.msra.mxu0 %v1973
    %1975 = vmatprep.subr.mxu0 0.0
    %v1976 = vand.u32 %v853, 4294901760
    %v1977 = vsub.f32 %v853, %v1976
    %v1978 = vand.u32 %v1977, 4294901760
    %1979 = vmatpush1.msra.mxu0 %v1978
    %1980 = vmatprep.subr.mxu0 0.0
    %v1981 = vand.u32 %v852, 4294901760
    %v1982 = vsub.f32 %v852, %v1981
    %v1983 = vand.u32 %v1982, 4294901760
    %1984 = vmatpush1.msra.mxu0 %v1983
    %1985 = vmatprep.subr.mxu0 0.0
    %v1986 = vand.u32 %v851, 4294901760
    %v1987 = vsub.f32 %v851, %v1986
    %v1988 = vand.u32 %v1987, 4294901760
    %1989 = vmatpush1.msra.mxu0 %v1988
    %1990 = vmatprep.subr.mxu0 0.0
    %v1991 = vand.u32 %v850, 4294901760
    %v1992 = vsub.f32 %v850, %v1991
    %v1993 = vand.u32 %v1992, 4294901760
    %1994 = vmatpush1.msra.mxu0 %v1993
    %1995 = vmatprep.subr.mxu0 0.0
    %v1996 = vand.u32 %v849, 4294901760
    %v1997 = vsub.f32 %v849, %v1996
    %v1998 = vand.u32 %v1997, 4294901760
    %1999 = vmatpush1.msra.mxu0 %v1998
    %2000 = vmatprep.subr.mxu0 0.0
    %v2001 = vand.u32 %v848, 4294901760
    %v2002 = vsub.f32 %v848, %v2001
    %v2003 = vand.u32 %v2002, 4294901760
    %2004 = vmatpush1.msra.mxu0 %v2003
    %2005 = vmatprep.subr.mxu0 0.0
    %v2006 = vand.u32 %v847, 4294901760
    %v2007 = vsub.f32 %v847, %v2006
    %v2008 = vand.u32 %v2007, 4294901760
    %2009 = vmatpush1.msra.mxu0 %v2008
    %2010 = vmatprep.subr.mxu0 0.0
    %v2011 = vand.u32 %v846, 4294901760
    %v2012 = vsub.f32 %v846, %v2011
    %v2013 = vand.u32 %v2012, 4294901760
    %2014 = vmatpush1.msra.mxu0 %v2013
    %2015 = vmatprep.subr.mxu0 0.0
    %v2016 = vand.u32 %v845, 4294901760
    %v2017 = vsub.f32 %v845, %v2016
    %v2018 = vand.u32 %v2017, 4294901760
    %2019 = vmatpush1.msra.mxu0 %v2018
    %2020 = vmatprep.subr.mxu0 0.0
    %2021 = vmatpush2.msra.mxu0 0.0
    %2022 = vmatprep.subr.mxu0 0.0
    %2023 = vmatpush2.msra.mxu0 0.0
    %2024 = vmatprep.subr.mxu0 0.0
    %2025 = vmatpush2.msra.mxu0 0.0
    %2026 = vmatprep.subr.mxu0 0.0
    %2027 = vmatpush2.msra.mxu0 0.0
    %2028 = vmatprep.subr.mxu0 0.0
    %2029 = vmatpush2.msra.mxu0 0.0
    %2030 = vmatprep.subr.mxu0 0.0
    %2031 = vmatpush2.msra.mxu0 0.0
    %2032 = vmatprep.subr.mxu0 0.0
    %2033 = vmatpush2.msra.mxu0 0.0
    %2034 = vmatprep.subr.mxu0 0.0
    %2035 = vmatpush2.msra.mxu0 0.0
    %2036 = vmatprep.subr.mxu0 0.0
    %2037 = vmatpush2.msra.mxu0 0.0
    %2038 = vmatprep.subr.mxu0 0.0
    %2039 = vmatpush2.msra.mxu0 0.0
    %2040 = vmatprep.subr.mxu0 0.0
    %2041 = vmatpush2.msra.mxu0 0.0
    %2042 = vmatprep.subr.mxu0 0.0
    %2043 = vmatpush2.msra.mxu0 0.0
    %2044 = vmatprep.subr.mxu0 0.0
    %2045 = vmatpush2.msra.mxu0 0.0
    %2046 = vmatprep.subr.mxu0 0.0
    %2047 = vmatpush2.msra.mxu0 0.0
    %2048 = vmatprep.subr.mxu0 0.0
    %2049 = vmatpush2.msra.mxu0 0.0
    %2050 = vmatprep.subr.mxu0 0.0
    %2051 = vmatpush2.msra.mxu0 0.0
    %2052 = vmatprep.mubr.f32.mxu0 0.0
    %v2053 = vand.u32 %v1504, 4294901760
    %2054 = vmatmul.mubr.f32.gmra.mxu0 %v2053
    %v2055 = vpop.f32.mrf.mxu0
    %v2056 = vadd.f32 %v1937, %v2055
    %v2057 = vpop.f32.mrf.mxu0
    %2058 = vdwg.mxu0
    %2059 = vmatprep.subr.mxu0 0.0
    %v2060 = vand.u32 %v860, 4294901760
    %2061 = vmatpush1.msra.mxu0 %v2060
    %2062 = vmatprep.subr.mxu0 0.0
    %v2063 = vand.u32 %v859, 4294901760
    %2064 = vmatpush1.msra.mxu0 %v2063
    %2065 = vmatprep.subr.mxu0 0.0
    %v2066 = vand.u32 %v858, 4294901760
    %2067 = vmatpush1.msra.mxu0 %v2066
    %2068 = vmatprep.subr.mxu0 0.0
    %v2069 = vand.u32 %v857, 4294901760
    %2070 = vmatpush1.msra.mxu0 %v2069
    %2071 = vmatprep.subr.mxu0 0.0
    %v2072 = vand.u32 %v856, 4294901760
    %2073 = vmatpush1.msra.mxu0 %v2072
    %2074 = vmatprep.subr.mxu0 0.0
    %v2075 = vand.u32 %v855, 4294901760
    %2076 = vmatpush1.msra.mxu0 %v2075
    %2077 = vmatprep.subr.mxu0 0.0
    %v2078 = vand.u32 %v854, 4294901760
    %2079 = vmatpush1.msra.mxu0 %v2078
    %2080 = vmatprep.subr.mxu0 0.0
    %v2081 = vand.u32 %v853, 4294901760
    %2082 = vmatpush1.msra.mxu0 %v2081
    %2083 = vmatprep.subr.mxu0 0.0
    %v2084 = vand.u32 %v852, 4294901760
    %2085 = vmatpush1.msra.mxu0 %v2084
    %2086 = vmatprep.subr.mxu0 0.0
    %v2087 = vand.u32 %v851, 4294901760
    %2088 = vmatpush1.msra.mxu0 %v2087
    %2089 = vmatprep.subr.mxu0 0.0
    %v2090 = vand.u32 %v850, 4294901760
    %2091 = vmatpush1.msra.mxu0 %v2090
    %2092 = vmatprep.subr.mxu0 0.0
    %v2093 = vand.u32 %v849, 4294901760
    %2094 = vmatpush1.msra.mxu0 %v2093
    %2095 = vmatprep.subr.mxu0 0.0
    %v2096 = vand.u32 %v848, 4294901760
    %2097 = vmatpush1.msra.mxu0 %v2096
    %2098 = vmatprep.subr.mxu0 0.0
    %v2099 = vand.u32 %v847, 4294901760
    %2100 = vmatpush1.msra.mxu0 %v2099
    %2101 = vmatprep.subr.mxu0 0.0
    %v2102 = vand.u32 %v846, 4294901760
    %2103 = vmatpush1.msra.mxu0 %v2102
    %2104 = vmatprep.subr.mxu0 0.0
    %v2105 = vand.u32 %v845, 4294901760
    %2106 = vmatpush1.msra.mxu0 %v2105
    %2107 = vmatprep.subr.mxu0 0.0
    %2108 = vmatpush2.msra.mxu0 0.0
    %2109 = vmatprep.subr.mxu0 0.0
    %2110 = vmatpush2.msra.mxu0 0.0
    %2111 = vmatprep.subr.mxu0 0.0
    %2112 = vmatpush2.msra.mxu0 0.0
    %2113 = vmatprep.subr.mxu0 0.0
    %2114 = vmatpush2.msra.mxu0 0.0
    %2115 = vmatprep.subr.mxu0 0.0
    %2116 = vmatpush2.msra.mxu0 0.0
    %2117 = vmatprep.subr.mxu0 0.0
    %2118 = vmatpush2.msra.mxu0 0.0
    %2119 = vmatprep.subr.mxu0 0.0
    %2120 = vmatpush2.msra.mxu0 0.0
    %2121 = vmatprep.subr.mxu0 0.0
    %2122 = vmatpush2.msra.mxu0 0.0
    %2123 = vmatprep.subr.mxu0 0.0
    %2124 = vmatpush2.msra.mxu0 0.0
    %2125 = vmatprep.subr.mxu0 0.0
    %2126 = vmatpush2.msra.mxu0 0.0
    %2127 = vmatprep.subr.mxu0 0.0
    %2128 = vmatpush2.msra.mxu0 0.0
    %2129 = vmatprep.subr.mxu0 0.0
    %2130 = vmatpush2.msra.mxu0 0.0
    %2131 = vmatprep.subr.mxu0 0.0
    %2132 = vmatpush2.msra.mxu0 0.0
    %2133 = vmatprep.subr.mxu0 0.0
    %2134 = vmatpush2.msra.mxu0 0.0
    %2135 = vmatprep.subr.mxu0 0.0
    %2136 = vmatpush2.msra.mxu0 0.0
    %2137 = vmatprep.subr.mxu0 0.0
    %2138 = vmatpush2.msra.mxu0 0.0
    %2139 = vmatprep.mubr.f32.mxu0 0.0
    %v2140 = vand.u32 %v1504, 4294901760
    %2141 = vmatmul.mubr.f32.gmra.mxu0 %v2140
    %v2142 = vpop.f32.mrf.mxu0
    %v2143 = vadd.f32 %v2056, %v2142
    %v2144 = vpop.f32.mrf.mxu0
    %2145 = vdwg.mxu0
    %v2146 = vadd.f32 %v812, %v2143
    %v2147 = vtanh.pop %v2146
    %2148 = vmatprep.subr.mxu0 0.0
    %v2149 = vand.u32 %v860, 4294901760
    %2150 = vmatpush1.msra.mxu0 %v2149
    %2151 = vmatprep.subr.mxu0 0.0
    %v2152 = vand.u32 %v859, 4294901760
    %2153 = vmatpush1.msra.mxu0 %v2152
    %2154 = vmatprep.subr.mxu0 0.0
    %v2155 = vand.u32 %v858, 4294901760
    %2156 = vmatpush1.msra.mxu0 %v2155
    %2157 = vmatprep.subr.mxu0 0.0
    %v2158 = vand.u32 %v857, 4294901760
    %2159 = vmatpush1.msra.mxu0 %v2158
    %2160 = vmatprep.subr.mxu0 0.0
    %v2161 = vand.u32 %v856, 4294901760
    %2162 = vmatpush1.msra.mxu0 %v2161
    %2163 = vmatprep.subr.mxu0 0.0
    %v2164 = vand.u32 %v855, 4294901760
    %2165 = vmatpush1.msra.mxu0 %v2164
    %2166 = vmatprep.subr.mxu0 0.0
    %v2167 = vand.u32 %v854, 4294901760
    %2168 = vmatpush1.msra.mxu0 %v2167
    %2169 = vmatprep.subr.mxu0 0.0
    %v2170 = vand.u32 %v853, 4294901760
    %2171 = vmatpush1.msra.mxu0 %v2170
    %2172 = vmatprep.subr.mxu0 0.0
    %v2173 = vand.u32 %v852, 4294901760
    %2174 = vmatpush1.msra.mxu0 %v2173
    %2175 = vmatprep.subr.mxu0 0.0
    %v2176 = vand.u32 %v851, 4294901760
    %2177 = vmatpush1.msra.mxu0 %v2176
    %2178 = vmatprep.subr.mxu0 0.0
    %v2179 = vand.u32 %v850, 4294901760
    %2180 = vmatpush1.msra.mxu0 %v2179
    %2181 = vmatprep.subr.mxu0 0.0
    %v2182 = vand.u32 %v849, 4294901760
    %2183 = vmatpush1.msra.mxu0 %v2182
    %2184 = vmatprep.subr.mxu0 0.0
    %v2185 = vand.u32 %v848, 4294901760
    %2186 = vmatpush1.msra.mxu0 %v2185
    %2187 = vmatprep.subr.mxu0 0.0
    %v2188 = vand.u32 %v847, 4294901760
    %2189 = vmatpush1.msra.mxu0 %v2188
    %2190 = vmatprep.subr.mxu0 0.0
    %v2191 = vand.u32 %v846, 4294901760
    %2192 = vmatpush1.msra.mxu0 %v2191
    %2193 = vmatprep.subr.mxu0 0.0
    %v2194 = vand.u32 %v845, 4294901760
    %2195 = vmatpush1.msra.mxu0 %v2194
    %2196 = vmatprep.subr.mxu0 0.0
    %2197 = vmatpush2.msra.mxu0 0.0
    %2198 = vmatprep.subr.mxu0 0.0
    %2199 = vmatpush2.msra.mxu0 0.0
    %2200 = vmatprep.subr.mxu0 0.0
    %2201 = vmatpush2.msra.mxu0 0.0
    %2202 = vmatprep.subr.mxu0 0.0
    %2203 = vmatpush2.msra.mxu0 0.0
    %2204 = vmatprep.subr.mxu0 0.0
    %2205 = vmatpush2.msra.mxu0 0.0
    %2206 = vmatprep.subr.mxu0 0.0
    %2207 = vmatpush2.msra.mxu0 0.0
    %2208 = vmatprep.subr.mxu0 0.0
    %2209 = vmatpush2.msra.mxu0 0.0
    %2210 = vmatprep.subr.mxu0 0.0
    %2211 = vmatpush2.msra.mxu0 0.0
    %2212 = vmatprep.subr.mxu0 0.0
    %2213 = vmatpush2.msra.mxu0 0.0
    %2214 = vmatprep.subr.mxu0 0.0
    %2215 = vmatpush2.msra.mxu0 0.0
    %2216 = vmatprep.subr.mxu0 0.0
    %2217 = vmatpush2.msra.mxu0 0.0
    %2218 = vmatprep.subr.mxu0 0.0
    %2219 = vmatpush2.msra.mxu0 0.0
    %2220 = vmatprep.subr.mxu0 0.0
    %2221 = vmatpush2.msra.mxu0 0.0
    %2222 = vmatprep.subr.mxu0 0.0
    %2223 = vmatpush2.msra.mxu0 0.0
    %2224 = vmatprep.subr.mxu0 0.0
    %2225 = vmatpush2.msra.mxu0 0.0
    %2226 = vmatprep.subr.mxu0 0.0
    %2227 = vmatpush2.msra.mxu0 0.0
    %2228 = vmatprep.mubr.f32.mxu0 0.0
    %v2229 = vand.u32 %v2147, 4294901760
    %v2230 = vsub.f32 %v2147, %v2229
    %v2231 = vand.u32 %v2230, 4294901760
    %v2232 = vsub.f32 %v2230, %v2231
    %v2233 = vand.u32 %v2232, 4294901760
    %2234 = vmatmul.mubr.f32.gmra.mxu0 %v2233
    %v2235 = vpop.f32.mrf.mxu0
    %v2236 = vadd.f32 0.0, %v2235
    %v2237 = vpop.f32.mrf.mxu0
    %2238 = vdwg.mxu0
    %2239 = vmatprep.subr.mxu0 0.0
    %v2240 = vand.u32 %v860, 4294901760
    %v2241 = vsub.f32 %v860, %v2240
    %v2242 = vand.u32 %v2241, 4294901760
    %v2243 = vsub.f32 %v2241, %v2242
    %v2244 = vand.u32 %v2243, 4294901760
    %2245 = vmatpush1.msra.mxu0 %v2244
    %2246 = vmatprep.subr.mxu0 0.0
    %v2247 = vand.u32 %v859, 4294901760
    %v2248 = vsub.f32 %v859, %v2247
    %v2249 = vand.u32 %v2248, 4294901760
    %v2250 = vsub.f32 %v2248, %v2249
    %v2251 = vand.u32 %v2250, 4294901760
    %2252 = vmatpush1.msra.mxu0 %v2251
    %2253 = vmatprep.subr.mxu0 0.0
    %v2254 = vand.u32 %v858, 4294901760
    %v2255 = vsub.f32 %v858, %v2254
    %v2256 = vand.u32 %v2255, 4294901760
    %v2257 = vsub.f32 %v2255, %v2256
    %v2258 = vand.u32 %v2257, 4294901760
    %2259 = vmatpush1.msra.mxu0 %v2258
    %2260 = vmatprep.subr.mxu0 0.0
    %v2261 = vand.u32 %v857, 4294901760
    %v2262 = vsub.f32 %v857, %v2261
    %v2263 = vand.u32 %v2262, 4294901760
    %v2264 = vsub.f32 %v2262, %v2263
    %v2265 = vand.u32 %v2264, 4294901760
    %2266 = vmatpush1.msra.mxu0 %v2265
    %2267 = vmatprep.subr.mxu0 0.0
    %v2268 = vand.u32 %v856, 4294901760
    %v2269 = vsub.f32 %v856, %v2268
    %v2270 = vand.u32 %v2269, 4294901760
    %v2271 = vsub.f32 %v2269, %v2270
    %v2272 = vand.u32 %v2271, 4294901760
    %2273 = vmatpush1.msra.mxu0 %v2272
    %2274 = vmatprep.subr.mxu0 0.0
    %v2275 = vand.u32 %v855, 4294901760
    %v2276 = vsub.f32 %v855, %v2275
    %v2277 = vand.u32 %v2276, 4294901760
    %v2278 = vsub.f32 %v2276, %v2277
    %v2279 = vand.u32 %v2278, 4294901760
    %2280 = vmatpush1.msra.mxu0 %v2279
    %2281 = vmatprep.subr.mxu0 0.0
    %v2282 = vand.u32 %v854, 4294901760
    %v2283 = vsub.f32 %v854, %v2282
    %v2284 = vand.u32 %v2283, 4294901760
    %v2285 = vsub.f32 %v2283, %v2284
    %v2286 = vand.u32 %v2285, 4294901760
    %2287 = vmatpush1.msra.mxu0 %v2286
    %2288 = vmatprep.subr.mxu0 0.0
    %v2289 = vand.u32 %v853, 4294901760
    %v2290 = vsub.f32 %v853, %v2289
    %v2291 = vand.u32 %v2290, 4294901760
    %v2292 = vsub.f32 %v2290, %v2291
    %v2293 = vand.u32 %v2292, 4294901760
    %2294 = vmatpush1.msra.mxu0 %v2293
    %2295 = vmatprep.subr.mxu0 0.0
    %v2296 = vand.u32 %v852, 4294901760
    %v2297 = vsub.f32 %v852, %v2296
    %v2298 = vand.u32 %v2297, 4294901760
    %v2299 = vsub.f32 %v2297, %v2298
    %v2300 = vand.u32 %v2299, 4294901760
    %2301 = vmatpush1.msra.mxu0 %v2300
    %2302 = vmatprep.subr.mxu0 0.0
    %v2303 = vand.u32 %v851, 4294901760
    %v2304 = vsub.f32 %v851, %v2303
    %v2305 = vand.u32 %v2304, 4294901760
    %v2306 = vsub.f32 %v2304, %v2305
    %v2307 = vand.u32 %v2306, 4294901760
    %2308 = vmatpush1.msra.mxu0 %v2307
    %2309 = vmatprep.subr.mxu0 0.0
    %v2310 = vand.u32 %v850, 4294901760
    %v2311 = vsub.f32 %v850, %v2310
    %v2312 = vand.u32 %v2311, 4294901760
    %v2313 = vsub.f32 %v2311, %v2312
    %v2314 = vand.u32 %v2313, 4294901760
    %2315 = vmatpush1.msra.mxu0 %v2314
    %2316 = vmatprep.subr.mxu0 0.0
    %v2317 = vand.u32 %v849, 4294901760
    %v2318 = vsub.f32 %v849, %v2317
    %v2319 = vand.u32 %v2318, 4294901760
    %v2320 = vsub.f32 %v2318, %v2319
    %v2321 = vand.u32 %v2320, 4294901760
    %2322 = vmatpush1.msra.mxu0 %v2321
    %2323 = vmatprep.subr.mxu0 0.0
    %v2324 = vand.u32 %v848, 4294901760
    %v2325 = vsub.f32 %v848, %v2324
    %v2326 = vand.u32 %v2325, 4294901760
    %v2327 = vsub.f32 %v2325, %v2326
    %v2328 = vand.u32 %v2327, 4294901760
    %2329 = vmatpush1.msra.mxu0 %v2328
    %2330 = vmatprep.subr.mxu0 0.0
    %v2331 = vand.u32 %v847, 4294901760
    %v2332 = vsub.f32 %v847, %v2331
    %v2333 = vand.u32 %v2332, 4294901760
    %v2334 = vsub.f32 %v2332, %v2333
    %v2335 = vand.u32 %v2334, 4294901760
    %2336 = vmatpush1.msra.mxu0 %v2335
    %2337 = vmatprep.subr.mxu0 0.0
    %v2338 = vand.u32 %v846, 4294901760
    %v2339 = vsub.f32 %v846, %v2338
    %v2340 = vand.u32 %v2339, 4294901760
    %v2341 = vsub.f32 %v2339, %v2340
    %v2342 = vand.u32 %v2341, 4294901760
    %2343 = vmatpush1.msra.mxu0 %v2342
    %2344 = vmatprep.subr.mxu0 0.0
    %v2345 = vand.u32 %v845, 4294901760
    %v2346 = vsub.f32 %v845, %v2345
    %v2347 = vand.u32 %v2346, 4294901760
    %v2348 = vsub.f32 %v2346, %v2347
    %v2349 = vand.u32 %v2348, 4294901760
    %2350 = vmatpush1.msra.mxu0 %v2349
    %2351 = vmatprep.subr.mxu0 0.0
    %2352 = vmatpush2.msra.mxu0 0.0
    %2353 = vmatprep.subr.mxu0 0.0
    %2354 = vmatpush2.msra.mxu0 0.0
    %2355 = vmatprep.subr.mxu0 0.0
    %2356 = vmatpush2.msra.mxu0 0.0
    %2357 = vmatprep.subr.mxu0 0.0
    %2358 = vmatpush2.msra.mxu0 0.0
    %2359 = vmatprep.subr.mxu0 0.0
    %2360 = vmatpush2.msra.mxu0 0.0
    %2361 = vmatprep.subr.mxu0 0.0
    %2362 = vmatpush2.msra.mxu0 0.0
    %2363 = vmatprep.subr.mxu0 0.0
    %2364 = vmatpush2.msra.mxu0 0.0
    %2365 = vmatprep.subr.mxu0 0.0
    %2366 = vmatpush2.msra.mxu0 0.0
    %2367 = vmatprep.subr.mxu0 0.0
    %2368 = vmatpush2.msra.mxu0 0.0
    %2369 = vmatprep.subr.mxu0 0.0
    %2370 = vmatpush2.msra.mxu0 0.0
    %2371 = vmatprep.subr.mxu0 0.0
    %2372 = vmatpush2.msra.mxu0 0.0
    %2373 = vmatprep.subr.mxu0 0.0
    %2374 = vmatpush2.msra.mxu0 0.0
    %2375 = vmatprep.subr.mxu0 0.0
    %2376 = vmatpush2.msra.mxu0 0.0
    %2377 = vmatprep.subr.mxu0 0.0
    %2378 = vmatpush2.msra.mxu0 0.0
    %2379 = vmatprep.subr.mxu0 0.0
    %2380 = vmatpush2.msra.mxu0 0.0
    %2381 = vmatprep.subr.mxu0 0.0
    %2382 = vmatpush2.msra.mxu0 0.0
    %2383 = vmatprep.mubr.f32.mxu0 0.0
    %v2384 = vand.u32 %v2147, 4294901760
    %2385 = vmatmul.mubr.f32.gmra.mxu0 %v2384
    %v2386 = vpop.f32.mrf.mxu0
    %v2387 = vadd.f32 %v2236, %v2386
    %v2388 = vpop.f32.mrf.mxu0
    %2389 = vdwg.mxu0
    %2390 = vmatprep.subr.mxu0 0.0
    %v2391 = vand.u32 %v860, 4294901760
    %v2392 = vsub.f32 %v860, %v2391
    %2393 = vmatpush1.msra.mxu0 %v2392
    %2394 = vmatprep.subr.mxu0 0.0
    %v2395 = vand.u32 %v859, 4294901760
    %v2396 = vsub.f32 %v859, %v2395
    %2397 = vmatpush1.msra.mxu0 %v2396
    %2398 = vmatprep.subr.mxu0 0.0
    %v2399 = vand.u32 %v858, 4294901760
    %v2400 = vsub.f32 %v858, %v2399
    %2401 = vmatpush1.msra.mxu0 %v2400
    %2402 = vmatprep.subr.mxu0 0.0
    %v2403 = vand.u32 %v857, 4294901760
    %v2404 = vsub.f32 %v857, %v2403
    %2405 = vmatpush1.msra.mxu0 %v2404
    %2406 = vmatprep.subr.mxu0 0.0
    %v2407 = vand.u32 %v856, 4294901760
    %v2408 = vsub.f32 %v856, %v2407
    %2409 = vmatpush1.msra.mxu0 %v2408
    %2410 = vmatprep.subr.mxu0 0.0
    %v2411 = vand.u32 %v855, 4294901760
    %v2412 = vsub.f32 %v855, %v2411
    %2413 = vmatpush1.msra.mxu0 %v2412
    %2414 = vmatprep.subr.mxu0 0.0
    %v2415 = vand.u32 %v854, 4294901760
    %v2416 = vsub.f32 %v854, %v2415
    %2417 = vmatpush1.msra.mxu0 %v2416
    %2418 = vmatprep.subr.mxu0 0.0
    %v2419 = vand.u32 %v853, 4294901760
    %v2420 = vsub.f32 %v853, %v2419
    %2421 = vmatpush1.msra.mxu0 %v2420
    %2422 = vmatprep.subr.mxu0 0.0
    %v2423 = vand.u32 %v852, 4294901760
    %v2424 = vsub.f32 %v852, %v2423
    %2425 = vmatpush1.msra.mxu0 %v2424
    %2426 = vmatprep.subr.mxu0 0.0
    %v2427 = vand.u32 %v851, 4294901760
    %v2428 = vsub.f32 %v851, %v2427
    %2429 = vmatpush1.msra.mxu0 %v2428
    %2430 = vmatprep.subr.mxu0 0.0
    %v2431 = vand.u32 %v850, 4294901760
    %v2432 = vsub.f32 %v850, %v2431
    %2433 = vmatpush1.msra.mxu0 %v2432
    %2434 = vmatprep.subr.mxu0 0.0
    %v2435 = vand.u32 %v849, 4294901760
    %v2436 = vsub.f32 %v849, %v2435
    %2437 = vmatpush1.msra.mxu0 %v2436
    %2438 = vmatprep.subr.mxu0 0.0
    %v2439 = vand.u32 %v848, 4294901760
    %v2440 = vsub.f32 %v848, %v2439
    %2441 = vmatpush1.msra.mxu0 %v2440
    %2442 = vmatprep.subr.mxu0 0.0
    %v2443 = vand.u32 %v847, 4294901760
    %v2444 = vsub.f32 %v847, %v2443
    %2445 = vmatpush1.msra.mxu0 %v2444
    %2446 = vmatprep.subr.mxu0 0.0
    %v2447 = vand.u32 %v846, 4294901760
    %v2448 = vsub.f32 %v846, %v2447
    %2449 = vmatpush1.msra.mxu0 %v2448
    %2450 = vmatprep.subr.mxu0 0.0
    %v2451 = vand.u32 %v845, 4294901760
    %v2452 = vsub.f32 %v845, %v2451
    %2453 = vmatpush1.msra.mxu0 %v2452
    %2454 = vmatprep.subr.mxu0 0.0
    %2455 = vmatpush2.msra.mxu0 0.0
    %2456 = vmatprep.subr.mxu0 0.0
    %2457 = vmatpush2.msra.mxu0 0.0
    %2458 = vmatprep.subr.mxu0 0.0
    %2459 = vmatpush2.msra.mxu0 0.0
    %2460 = vmatprep.subr.mxu0 0.0
    %2461 = vmatpush2.msra.mxu0 0.0
    %2462 = vmatprep.subr.mxu0 0.0
    %2463 = vmatpush2.msra.mxu0 0.0
    %2464 = vmatprep.subr.mxu0 0.0
    %2465 = vmatpush2.msra.mxu0 0.0
    %2466 = vmatprep.subr.mxu0 0.0
    %2467 = vmatpush2.msra.mxu0 0.0
    %2468 = vmatprep.subr.mxu0 0.0
    %2469 = vmatpush2.msra.mxu0 0.0
    %2470 = vmatprep.subr.mxu0 0.0
    %2471 = vmatpush2.msra.mxu0 0.0
    %2472 = vmatprep.subr.mxu0 0.0
    %2473 = vmatpush2.msra.mxu0 0.0
    %2474 = vmatprep.subr.mxu0 0.0
    %2475 = vmatpush2.msra.mxu0 0.0
    %2476 = vmatprep.subr.mxu0 0.0
    %2477 = vmatpush2.msra.mxu0 0.0
    %2478 = vmatprep.subr.mxu0 0.0
    %2479 = vmatpush2.msra.mxu0 0.0
    %2480 = vmatprep.subr.mxu0 0.0
    %2481 = vmatpush2.msra.mxu0 0.0
    %2482 = vmatprep.subr.mxu0 0.0
    %2483 = vmatpush2.msra.mxu0 0.0
    %2484 = vmatprep.subr.mxu0 0.0
    %2485 = vmatpush2.msra.mxu0 0.0
    %2486 = vmatprep.mubr.f32.mxu0 0.0
    %v2487 = vand.u32 %v2147, 4294901760
    %v2488 = vsub.f32 %v2147, %v2487
    %2489 = vmatmul.mubr.f32.gmra.mxu0 %v2488
    %v2490 = vpop.f32.mrf.mxu0
    %v2491 = vadd.f32 %v2387, %v2490
    %v2492 = vpop.f32.mrf.mxu0
    %2493 = vdwg.mxu0
    %2494 = vmatprep.subr.mxu0 0.0
    %v2495 = vand.u32 %v860, 4294901760
    %2496 = vmatpush1.msra.mxu0 %v2495
    %2497 = vmatprep.subr.mxu0 0.0
    %v2498 = vand.u32 %v859, 4294901760
    %2499 = vmatpush1.msra.mxu0 %v2498
    %2500 = vmatprep.subr.mxu0 0.0
    %v2501 = vand.u32 %v858, 4294901760
    %2502 = vmatpush1.msra.mxu0 %v2501
    %2503 = vmatprep.subr.mxu0 0.0
    %v2504 = vand.u32 %v857, 4294901760
    %2505 = vmatpush1.msra.mxu0 %v2504
    %2506 = vmatprep.subr.mxu0 0.0
    %v2507 = vand.u32 %v856, 4294901760
    %2508 = vmatpush1.msra.mxu0 %v2507
    %2509 = vmatprep.subr.mxu0 0.0
    %v2510 = vand.u32 %v855, 4294901760
    %2511 = vmatpush1.msra.mxu0 %v2510
    %2512 = vmatprep.subr.mxu0 0.0
    %v2513 = vand.u32 %v854, 4294901760
    %2514 = vmatpush1.msra.mxu0 %v2513
    %2515 = vmatprep.subr.mxu0 0.0
    %v2516 = vand.u32 %v853, 4294901760
    %2517 = vmatpush1.msra.mxu0 %v2516
    %2518 = vmatprep.subr.mxu0 0.0
    %v2519 = vand.u32 %v852, 4294901760
    %2520 = vmatpush1.msra.mxu0 %v2519
    %2521 = vmatprep.subr.mxu0 0.0
    %v2522 = vand.u32 %v851, 4294901760
    %2523 = vmatpush1.msra.mxu0 %v2522
    %2524 = vmatprep.subr.mxu0 0.0
    %v2525 = vand.u32 %v850, 4294901760
    %2526 = vmatpush1.msra.mxu0 %v2525
    %2527 = vmatprep.subr.mxu0 0.0
    %v2528 = vand.u32 %v849, 4294901760
    %2529 = vmatpush1.msra.mxu0 %v2528
    %2530 = vmatprep.subr.mxu0 0.0
    %v2531 = vand.u32 %v848, 4294901760
    %2532 = vmatpush1.msra.mxu0 %v2531
    %2533 = vmatprep.subr.mxu0 0.0
    %v2534 = vand.u32 %v847, 4294901760
    %2535 = vmatpush1.msra.mxu0 %v2534
    %2536 = vmatprep.subr.mxu0 0.0
    %v2537 = vand.u32 %v846, 4294901760
    %2538 = vmatpush1.msra.mxu0 %v2537
    %2539 = vmatprep.subr.mxu0 0.0
    %v2540 = vand.u32 %v845, 4294901760
    %2541 = vmatpush1.msra.mxu0 %v2540
    %2542 = vmatprep.subr.mxu0 0.0
    %2543 = vmatpush2.msra.mxu0 0.0
    %2544 = vmatprep.subr.mxu0 0.0
    %2545 = vmatpush2.msra.mxu0 0.0
    %2546 = vmatprep.subr.mxu0 0.0
    %2547 = vmatpush2.msra.mxu0 0.0
    %2548 = vmatprep.subr.mxu0 0.0
    %2549 = vmatpush2.msra.mxu0 0.0
    %2550 = vmatprep.subr.mxu0 0.0
    %2551 = vmatpush2.msra.mxu0 0.0
    %2552 = vmatprep.subr.mxu0 0.0
    %2553 = vmatpush2.msra.mxu0 0.0
    %2554 = vmatprep.subr.mxu0 0.0
    %2555 = vmatpush2.msra.mxu0 0.0
    %2556 = vmatprep.subr.mxu0 0.0
    %2557 = vmatpush2.msra.mxu0 0.0
    %2558 = vmatprep.subr.mxu0 0.0
    %2559 = vmatpush2.msra.mxu0 0.0
    %2560 = vmatprep.subr.mxu0 0.0
    %2561 = vmatpush2.msra.mxu0 0.0
    %2562 = vmatprep.subr.mxu0 0.0
    %2563 = vmatpush2.msra.mxu0 0.0
    %2564 = vmatprep.subr.mxu0 0.0
    %2565 = vmatpush2.msra.mxu0 0.0
    %2566 = vmatprep.subr.mxu0 0.0
    %2567 = vmatpush2.msra.mxu0 0.0
    %2568 = vmatprep.subr.mxu0 0.0
    %2569 = vmatpush2.msra.mxu0 0.0
    %2570 = vmatprep.subr.mxu0 0.0
    %2571 = vmatpush2.msra.mxu0 0.0
    %2572 = vmatprep.subr.mxu0 0.0
    %2573 = vmatpush2.msra.mxu0 0.0
    %2574 = vmatprep.mubr.f32.mxu0 0.0
    %v2575 = vand.u32 %v2147, 4294901760
    %v2576 = vsub.f32 %v2147, %v2575
    %v2577 = vand.u32 %v2576, 4294901760
    %2578 = vmatmul.mubr.f32.gmra.mxu0 %v2577
    %v2579 = vpop.f32.mrf.mxu0
    %v2580 = vadd.f32 %v2491, %v2579
    %v2581 = vpop.f32.mrf.mxu0
    %2582 = vdwg.mxu0
    %2583 = vmatprep.subr.mxu0 0.0
    %v2584 = vand.u32 %v860, 4294901760
    %v2585 = vsub.f32 %v860, %v2584
    %v2586 = vand.u32 %v2585, 4294901760
    %2587 = vmatpush1.msra.mxu0 %v2586
    %2588 = vmatprep.subr.mxu0 0.0
    %v2589 = vand.u32 %v859, 4294901760
    %v2590 = vsub.f32 %v859, %v2589
    %v2591 = vand.u32 %v2590, 4294901760
    %2592 = vmatpush1.msra.mxu0 %v2591
    %2593 = vmatprep.subr.mxu0 0.0
    %v2594 = vand.u32 %v858, 4294901760
    %v2595 = vsub.f32 %v858, %v2594
    %v2596 = vand.u32 %v2595, 4294901760
    %2597 = vmatpush1.msra.mxu0 %v2596
    %2598 = vmatprep.subr.mxu0 0.0
    %v2599 = vand.u32 %v857, 4294901760
    %v2600 = vsub.f32 %v857, %v2599
    %v2601 = vand.u32 %v2600, 4294901760
    %2602 = vmatpush1.msra.mxu0 %v2601
    %2603 = vmatprep.subr.mxu0 0.0
    %v2604 = vand.u32 %v856, 4294901760
    %v2605 = vsub.f32 %v856, %v2604
    %v2606 = vand.u32 %v2605, 4294901760
    %2607 = vmatpush1.msra.mxu0 %v2606
    %2608 = vmatprep.subr.mxu0 0.0
    %v2609 = vand.u32 %v855, 4294901760
    %v2610 = vsub.f32 %v855, %v2609
    %v2611 = vand.u32 %v2610, 4294901760
    %2612 = vmatpush1.msra.mxu0 %v2611
    %2613 = vmatprep.subr.mxu0 0.0
    %v2614 = vand.u32 %v854, 4294901760
    %v2615 = vsub.f32 %v854, %v2614
    %v2616 = vand.u32 %v2615, 4294901760
    %2617 = vmatpush1.msra.mxu0 %v2616
    %2618 = vmatprep.subr.mxu0 0.0
    %v2619 = vand.u32 %v853, 4294901760
    %v2620 = vsub.f32 %v853, %v2619
    %v2621 = vand.u32 %v2620, 4294901760
    %2622 = vmatpush1.msra.mxu0 %v2621
    %2623 = vmatprep.subr.mxu0 0.0
    %v2624 = vand.u32 %v852, 4294901760
    %v2625 = vsub.f32 %v852, %v2624
    %v2626 = vand.u32 %v2625, 4294901760
    %2627 = vmatpush1.msra.mxu0 %v2626
    %2628 = vmatprep.subr.mxu0 0.0
    %v2629 = vand.u32 %v851, 4294901760
    %v2630 = vsub.f32 %v851, %v2629
    %v2631 = vand.u32 %v2630, 4294901760
    %2632 = vmatpush1.msra.mxu0 %v2631
    %2633 = vmatprep.subr.mxu0 0.0
    %v2634 = vand.u32 %v850, 4294901760
    %v2635 = vsub.f32 %v850, %v2634
    %v2636 = vand.u32 %v2635, 4294901760
    %2637 = vmatpush1.msra.mxu0 %v2636
    %2638 = vmatprep.subr.mxu0 0.0
    %v2639 = vand.u32 %v849, 4294901760
    %v2640 = vsub.f32 %v849, %v2639
    %v2641 = vand.u32 %v2640, 4294901760
    %2642 = vmatpush1.msra.mxu0 %v2641
    %2643 = vmatprep.subr.mxu0 0.0
    %v2644 = vand.u32 %v848, 4294901760
    %v2645 = vsub.f32 %v848, %v2644
    %v2646 = vand.u32 %v2645, 4294901760
    %2647 = vmatpush1.msra.mxu0 %v2646
    %2648 = vmatprep.subr.mxu0 0.0
    %v2649 = vand.u32 %v847, 4294901760
    %v2650 = vsub.f32 %v847, %v2649
    %v2651 = vand.u32 %v2650, 4294901760
    %2652 = vmatpush1.msra.mxu0 %v2651
    %2653 = vmatprep.subr.mxu0 0.0
    %v2654 = vand.u32 %v846, 4294901760
    %v2655 = vsub.f32 %v846, %v2654
    %v2656 = vand.u32 %v2655, 4294901760
    %2657 = vmatpush1.msra.mxu0 %v2656
    %2658 = vmatprep.subr.mxu0 0.0
    %v2659 = vand.u32 %v845, 4294901760
    %v2660 = vsub.f32 %v845, %v2659
    %v2661 = vand.u32 %v2660, 4294901760
    %2662 = vmatpush1.msra.mxu0 %v2661
    %2663 = vmatprep.subr.mxu0 0.0
    %2664 = vmatpush2.msra.mxu0 0.0
    %2665 = vmatprep.subr.mxu0 0.0
    %2666 = vmatpush2.msra.mxu0 0.0
    %2667 = vmatprep.subr.mxu0 0.0
    %2668 = vmatpush2.msra.mxu0 0.0
    %2669 = vmatprep.subr.mxu0 0.0
    %2670 = vmatpush2.msra.mxu0 0.0
    %2671 = vmatprep.subr.mxu0 0.0
    %2672 = vmatpush2.msra.mxu0 0.0
    %2673 = vmatprep.subr.mxu0 0.0
    %2674 = vmatpush2.msra.mxu0 0.0
    %2675 = vmatprep.subr.mxu0 0.0
    %2676 = vmatpush2.msra.mxu0 0.0
    %2677 = vmatprep.subr.mxu0 0.0
    %2678 = vmatpush2.msra.mxu0 0.0
    %2679 = vmatprep.subr.mxu0 0.0
    %2680 = vmatpush2.msra.mxu0 0.0
    %2681 = vmatprep.subr.mxu0 0.0
    %2682 = vmatpush2.msra.mxu0 0.0
    %2683 = vmatprep.subr.mxu0 0.0
    %2684 = vmatpush2.msra.mxu0 0.0
    %2685 = vmatprep.subr.mxu0 0.0
    %2686 = vmatpush2.msra.mxu0 0.0
    %2687 = vmatprep.subr.mxu0 0.0
    %2688 = vmatpush2.msra.mxu0 0.0
    %2689 = vmatprep.subr.mxu0 0.0
    %2690 = vmatpush2.msra.mxu0 0.0
    %2691 = vmatprep.subr.mxu0 0.0
    %2692 = vmatpush2.msra.mxu0 0.0
    %2693 = vmatprep.subr.mxu0 0.0
    %2694 = vmatpush2.msra.mxu0 0.0
    %2695 = vmatprep.mubr.f32.mxu0 0.0
    %v2696 = vand.u32 %v2147, 4294901760
    %2697 = vmatmul.mubr.f32.gmra.mxu0 %v2696
    %v2698 = vpop.f32.mrf.mxu0
    %v2699 = vadd.f32 %v2580, %v2698
    %v2700 = vpop.f32.mrf.mxu0
    %2701 = vdwg.mxu0
    %2702 = vmatprep.subr.mxu0 0.0
    %v2703 = vand.u32 %v860, 4294901760
    %2704 = vmatpush1.msra.mxu0 %v2703
    %2705 = vmatprep.subr.mxu0 0.0
    %v2706 = vand.u32 %v859, 4294901760
    %2707 = vmatpush1.msra.mxu0 %v2706
    %2708 = vmatprep.subr.mxu0 0.0
    %v2709 = vand.u32 %v858, 4294901760
    %2710 = vmatpush1.msra.mxu0 %v2709
    %2711 = vmatprep.subr.mxu0 0.0
    %v2712 = vand.u32 %v857, 4294901760
    %2713 = vmatpush1.msra.mxu0 %v2712
    %2714 = vmatprep.subr.mxu0 0.0
    %v2715 = vand.u32 %v856, 4294901760
    %2716 = vmatpush1.msra.mxu0 %v2715
    %2717 = vmatprep.subr.mxu0 0.0
    %v2718 = vand.u32 %v855, 4294901760
    %2719 = vmatpush1.msra.mxu0 %v2718
    %2720 = vmatprep.subr.mxu0 0.0
    %v2721 = vand.u32 %v854, 4294901760
    %2722 = vmatpush1.msra.mxu0 %v2721
    %2723 = vmatprep.subr.mxu0 0.0
    %v2724 = vand.u32 %v853, 4294901760
    %2725 = vmatpush1.msra.mxu0 %v2724
    %2726 = vmatprep.subr.mxu0 0.0
    %v2727 = vand.u32 %v852, 4294901760
    %2728 = vmatpush1.msra.mxu0 %v2727
    %2729 = vmatprep.subr.mxu0 0.0
    %v2730 = vand.u32 %v851, 4294901760
    %2731 = vmatpush1.msra.mxu0 %v2730
    %2732 = vmatprep.subr.mxu0 0.0
    %v2733 = vand.u32 %v850, 4294901760
    %2734 = vmatpush1.msra.mxu0 %v2733
    %2735 = vmatprep.subr.mxu0 0.0
    %v2736 = vand.u32 %v849, 4294901760
    %2737 = vmatpush1.msra.mxu0 %v2736
    %2738 = vmatprep.subr.mxu0 0.0
    %v2739 = vand.u32 %v848, 4294901760
    %2740 = vmatpush1.msra.mxu0 %v2739
    %2741 = vmatprep.subr.mxu0 0.0
    %v2742 = vand.u32 %v847, 4294901760
    %2743 = vmatpush1.msra.mxu0 %v2742
    %2744 = vmatprep.subr.mxu0 0.0
    %v2745 = vand.u32 %v846, 4294901760
    %2746 = vmatpush1.msra.mxu0 %v2745
    %2747 = vmatprep.subr.mxu0 0.0
    %v2748 = vand.u32 %v845, 4294901760
    %2749 = vmatpush1.msra.mxu0 %v2748
    %2750 = vmatprep.subr.mxu0 0.0
    %2751 = vmatpush2.msra.mxu0 0.0
    %2752 = vmatprep.subr.mxu0 0.0
    %2753 = vmatpush2.msra.mxu0 0.0
    %2754 = vmatprep.subr.mxu0 0.0
    %2755 = vmatpush2.msra.mxu0 0.0
    %2756 = vmatprep.subr.mxu0 0.0
    %2757 = vmatpush2.msra.mxu0 0.0
    %2758 = vmatprep.subr.mxu0 0.0
    %2759 = vmatpush2.msra.mxu0 0.0
    %2760 = vmatprep.subr.mxu0 0.0
    %2761 = vmatpush2.msra.mxu0 0.0
    %2762 = vmatprep.subr.mxu0 0.0
    %2763 = vmatpush2.msra.mxu0 0.0
    %2764 = vmatprep.subr.mxu0 0.0
    %2765 = vmatpush2.msra.mxu0 0.0
    %2766 = vmatprep.subr.mxu0 0.0
    %2767 = vmatpush2.msra.mxu0 0.0
    %2768 = vmatprep.subr.mxu0 0.0
    %2769 = vmatpush2.msra.mxu0 0.0
    %2770 = vmatprep.subr.mxu0 0.0
    %2771 = vmatpush2.msra.mxu0 0.0
    %2772 = vmatprep.subr.mxu0 0.0
    %2773 = vmatpush2.msra.mxu0 0.0
    %2774 = vmatprep.subr.mxu0 0.0
    %2775 = vmatpush2.msra.mxu0 0.0
    %2776 = vmatprep.subr.mxu0 0.0
    %2777 = vmatpush2.msra.mxu0 0.0
    %2778 = vmatprep.subr.mxu0 0.0
    %2779 = vmatpush2.msra.mxu0 0.0
    %2780 = vmatprep.subr.mxu0 0.0
    %2781 = vmatpush2.msra.mxu0 0.0
    %2782 = vmatprep.mubr.f32.mxu0 0.0
    %v2783 = vand.u32 %v2147, 4294901760
    %2784 = vmatmul.mubr.f32.gmra.mxu0 %v2783
    %v2785 = vpop.f32.mrf.mxu0
    %v2786 = vadd.f32 %v2699, %v2785
    %v2787 = vpop.f32.mrf.mxu0
    %2788 = vdwg.mxu0
    %v2789 = vadd.f32 %v818, %v2786
    %v2790 = vtanh.pop %v2789
    %2791 = vmatprep.subr.mxu0 0.0
    %v2792 = vand.u32 %v860, 4294901760
    %2793 = vmatpush1.msra.mxu0 %v2792
    %2794 = vmatprep.subr.mxu0 0.0
    %v2795 = vand.u32 %v859, 4294901760
    %2796 = vmatpush1.msra.mxu0 %v2795
    %2797 = vmatprep.subr.mxu0 0.0
    %v2798 = vand.u32 %v858, 4294901760
    %2799 = vmatpush1.msra.mxu0 %v2798
    %2800 = vmatprep.subr.mxu0 0.0
    %v2801 = vand.u32 %v857, 4294901760
    %2802 = vmatpush1.msra.mxu0 %v2801
    %2803 = vmatprep.subr.mxu0 0.0
    %v2804 = vand.u32 %v856, 4294901760
    %2805 = vmatpush1.msra.mxu0 %v2804
    %2806 = vmatprep.subr.mxu0 0.0
    %v2807 = vand.u32 %v855, 4294901760
    %2808 = vmatpush1.msra.mxu0 %v2807
    %2809 = vmatprep.subr.mxu0 0.0
    %v2810 = vand.u32 %v854, 4294901760
    %2811 = vmatpush1.msra.mxu0 %v2810
    %2812 = vmatprep.subr.mxu0 0.0
    %v2813 = vand.u32 %v853, 4294901760
    %2814 = vmatpush1.msra.mxu0 %v2813
    %2815 = vmatprep.subr.mxu0 0.0
    %v2816 = vand.u32 %v852, 4294901760
    %2817 = vmatpush1.msra.mxu0 %v2816
    %2818 = vmatprep.subr.mxu0 0.0
    %v2819 = vand.u32 %v851, 4294901760
    %2820 = vmatpush1.msra.mxu0 %v2819
    %2821 = vmatprep.subr.mxu0 0.0
    %v2822 = vand.u32 %v850, 4294901760
    %2823 = vmatpush1.msra.mxu0 %v2822
    %2824 = vmatprep.subr.mxu0 0.0
    %v2825 = vand.u32 %v849, 4294901760
    %2826 = vmatpush1.msra.mxu0 %v2825
    %2827 = vmatprep.subr.mxu0 0.0
    %v2828 = vand.u32 %v848, 4294901760
    %2829 = vmatpush1.msra.mxu0 %v2828
    %2830 = vmatprep.subr.mxu0 0.0
    %v2831 = vand.u32 %v847, 4294901760
    %2832 = vmatpush1.msra.mxu0 %v2831
    %2833 = vmatprep.subr.mxu0 0.0
    %v2834 = vand.u32 %v846, 4294901760
    %2835 = vmatpush1.msra.mxu0 %v2834
    %2836 = vmatprep.subr.mxu0 0.0
    %v2837 = vand.u32 %v845, 4294901760
    %2838 = vmatpush1.msra.mxu0 %v2837
    %2839 = vmatprep.subr.mxu0 0.0
    %2840 = vmatpush2.msra.mxu0 0.0
    %2841 = vmatprep.subr.mxu0 0.0
    %2842 = vmatpush2.msra.mxu0 0.0
    %2843 = vmatprep.subr.mxu0 0.0
    %2844 = vmatpush2.msra.mxu0 0.0
    %2845 = vmatprep.subr.mxu0 0.0
    %2846 = vmatpush2.msra.mxu0 0.0
    %2847 = vmatprep.subr.mxu0 0.0
    %2848 = vmatpush2.msra.mxu0 0.0
    %2849 = vmatprep.subr.mxu0 0.0
    %2850 = vmatpush2.msra.mxu0 0.0
    %2851 = vmatprep.subr.mxu0 0.0
    %2852 = vmatpush2.msra.mxu0 0.0
    %2853 = vmatprep.subr.mxu0 0.0
    %2854 = vmatpush2.msra.mxu0 0.0
    %2855 = vmatprep.subr.mxu0 0.0
    %2856 = vmatpush2.msra.mxu0 0.0
    %2857 = vmatprep.subr.mxu0 0.0
    %2858 = vmatpush2.msra.mxu0 0.0
    %2859 = vmatprep.subr.mxu0 0.0
    %2860 = vmatpush2.msra.mxu0 0.0
    %2861 = vmatprep.subr.mxu0 0.0
    %2862 = vmatpush2.msra.mxu0 0.0
    %2863 = vmatprep.subr.mxu0 0.0
    %2864 = vmatpush2.msra.mxu0 0.0
    %2865 = vmatprep.subr.mxu0 0.0
    %2866 = vmatpush2.msra.mxu0 0.0
    %2867 = vmatprep.subr.mxu0 0.0
    %2868 = vmatpush2.msra.mxu0 0.0
    %2869 = vmatprep.subr.mxu0 0.0
    %2870 = vmatpush2.msra.mxu0 0.0
    %2871 = vmatprep.mubr.f32.mxu0 0.0
    %v2872 = vand.u32 %v2790, 4294901760
    %v2873 = vsub.f32 %v2790, %v2872
    %v2874 = vand.u32 %v2873, 4294901760
    %v2875 = vsub.f32 %v2873, %v2874
    %v2876 = vand.u32 %v2875, 4294901760
    %2877 = vmatmul.mubr.f32.gmra.mxu0 %v2876
    %v2878 = vpop.f32.mrf.mxu0
    %v2879 = vadd.f32 0.0, %v2878
    %v2880 = vpop.f32.mrf.mxu0
    %2881 = vdwg.mxu0
    %2882 = vmatprep.subr.mxu0 0.0
    %v2883 = vand.u32 %v860, 4294901760
    %v2884 = vsub.f32 %v860, %v2883
    %v2885 = vand.u32 %v2884, 4294901760
    %v2886 = vsub.f32 %v2884, %v2885
    %v2887 = vand.u32 %v2886, 4294901760
    %2888 = vmatpush1.msra.mxu0 %v2887
    %2889 = vmatprep.subr.mxu0 0.0
    %v2890 = vand.u32 %v859, 4294901760
    %v2891 = vsub.f32 %v859, %v2890
    %v2892 = vand.u32 %v2891, 4294901760
    %v2893 = vsub.f32 %v2891, %v2892
    %v2894 = vand.u32 %v2893, 4294901760
    %2895 = vmatpush1.msra.mxu0 %v2894
    %2896 = vmatprep.subr.mxu0 0.0
    %v2897 = vand.u32 %v858, 4294901760
    %v2898 = vsub.f32 %v858, %v2897
    %v2899 = vand.u32 %v2898, 4294901760
    %v2900 = vsub.f32 %v2898, %v2899
    %v2901 = vand.u32 %v2900, 4294901760
    %2902 = vmatpush1.msra.mxu0 %v2901
    %2903 = vmatprep.subr.mxu0 0.0
    %v2904 = vand.u32 %v857, 4294901760
    %v2905 = vsub.f32 %v857, %v2904
    %v2906 = vand.u32 %v2905, 4294901760
    %v2907 = vsub.f32 %v2905, %v2906
    %v2908 = vand.u32 %v2907, 4294901760
    %2909 = vmatpush1.msra.mxu0 %v2908
    %2910 = vmatprep.subr.mxu0 0.0
    %v2911 = vand.u32 %v856, 4294901760
    %v2912 = vsub.f32 %v856, %v2911
    %v2913 = vand.u32 %v2912, 4294901760
    %v2914 = vsub.f32 %v2912, %v2913
    %v2915 = vand.u32 %v2914, 4294901760
    %2916 = vmatpush1.msra.mxu0 %v2915
    %2917 = vmatprep.subr.mxu0 0.0
    %v2918 = vand.u32 %v855, 4294901760
    %v2919 = vsub.f32 %v855, %v2918
    %v2920 = vand.u32 %v2919, 4294901760
    %v2921 = vsub.f32 %v2919, %v2920
    %v2922 = vand.u32 %v2921, 4294901760
    %2923 = vmatpush1.msra.mxu0 %v2922
    %2924 = vmatprep.subr.mxu0 0.0
    %v2925 = vand.u32 %v854, 4294901760
    %v2926 = vsub.f32 %v854, %v2925
    %v2927 = vand.u32 %v2926, 4294901760
    %v2928 = vsub.f32 %v2926, %v2927
    %v2929 = vand.u32 %v2928, 4294901760
    %2930 = vmatpush1.msra.mxu0 %v2929
    %2931 = vmatprep.subr.mxu0 0.0
    %v2932 = vand.u32 %v853, 4294901760
    %v2933 = vsub.f32 %v853, %v2932
    %v2934 = vand.u32 %v2933, 4294901760
    %v2935 = vsub.f32 %v2933, %v2934
    %v2936 = vand.u32 %v2935, 4294901760
    %2937 = vmatpush1.msra.mxu0 %v2936
    %2938 = vmatprep.subr.mxu0 0.0
    %v2939 = vand.u32 %v852, 4294901760
    %v2940 = vsub.f32 %v852, %v2939
    %v2941 = vand.u32 %v2940, 4294901760
    %v2942 = vsub.f32 %v2940, %v2941
    %v2943 = vand.u32 %v2942, 4294901760
    %2944 = vmatpush1.msra.mxu0 %v2943
    %2945 = vmatprep.subr.mxu0 0.0
    %v2946 = vand.u32 %v851, 4294901760
    %v2947 = vsub.f32 %v851, %v2946
    %v2948 = vand.u32 %v2947, 4294901760
    %v2949 = vsub.f32 %v2947, %v2948
    %v2950 = vand.u32 %v2949, 4294901760
    %2951 = vmatpush1.msra.mxu0 %v2950
    %2952 = vmatprep.subr.mxu0 0.0
    %v2953 = vand.u32 %v850, 4294901760
    %v2954 = vsub.f32 %v850, %v2953
    %v2955 = vand.u32 %v2954, 4294901760
    %v2956 = vsub.f32 %v2954, %v2955
    %v2957 = vand.u32 %v2956, 4294901760
    %2958 = vmatpush1.msra.mxu0 %v2957
    %2959 = vmatprep.subr.mxu0 0.0
    %v2960 = vand.u32 %v849, 4294901760
    %v2961 = vsub.f32 %v849, %v2960
    %v2962 = vand.u32 %v2961, 4294901760
    %v2963 = vsub.f32 %v2961, %v2962
    %v2964 = vand.u32 %v2963, 4294901760
    %2965 = vmatpush1.msra.mxu0 %v2964
    %2966 = vmatprep.subr.mxu0 0.0
    %v2967 = vand.u32 %v848, 4294901760
    %v2968 = vsub.f32 %v848, %v2967
    %v2969 = vand.u32 %v2968, 4294901760
    %v2970 = vsub.f32 %v2968, %v2969
    %v2971 = vand.u32 %v2970, 4294901760
    %2972 = vmatpush1.msra.mxu0 %v2971
    %2973 = vmatprep.subr.mxu0 0.0
    %v2974 = vand.u32 %v847, 4294901760
    %v2975 = vsub.f32 %v847, %v2974
    %v2976 = vand.u32 %v2975, 4294901760
    %v2977 = vsub.f32 %v2975, %v2976
    %v2978 = vand.u32 %v2977, 4294901760
    %2979 = vmatpush1.msra.mxu0 %v2978
    %2980 = vmatprep.subr.mxu0 0.0
    %v2981 = vand.u32 %v846, 4294901760
    %v2982 = vsub.f32 %v846, %v2981
    %v2983 = vand.u32 %v2982, 4294901760
    %v2984 = vsub.f32 %v2982, %v2983
    %v2985 = vand.u32 %v2984, 4294901760
    %2986 = vmatpush1.msra.mxu0 %v2985
    %2987 = vmatprep.subr.mxu0 0.0
    %v2988 = vand.u32 %v845, 4294901760
    %v2989 = vsub.f32 %v845, %v2988
    %v2990 = vand.u32 %v2989, 4294901760
    %v2991 = vsub.f32 %v2989, %v2990
    %v2992 = vand.u32 %v2991, 4294901760
    %2993 = vmatpush1.msra.mxu0 %v2992
    %2994 = vmatprep.subr.mxu0 0.0
    %2995 = vmatpush2.msra.mxu0 0.0
    %2996 = vmatprep.subr.mxu0 0.0
    %2997 = vmatpush2.msra.mxu0 0.0
    %2998 = vmatprep.subr.mxu0 0.0
    %2999 = vmatpush2.msra.mxu0 0.0
    %3000 = vmatprep.subr.mxu0 0.0
    %3001 = vmatpush2.msra.mxu0 0.0
    %3002 = vmatprep.subr.mxu0 0.0
    %3003 = vmatpush2.msra.mxu0 0.0
    %3004 = vmatprep.subr.mxu0 0.0
    %3005 = vmatpush2.msra.mxu0 0.0
    %3006 = vmatprep.subr.mxu0 0.0
    %3007 = vmatpush2.msra.mxu0 0.0
    %3008 = vmatprep.subr.mxu0 0.0
    %3009 = vmatpush2.msra.mxu0 0.0
    %3010 = vmatprep.subr.mxu0 0.0
    %3011 = vmatpush2.msra.mxu0 0.0
    %3012 = vmatprep.subr.mxu0 0.0
    %3013 = vmatpush2.msra.mxu0 0.0
    %3014 = vmatprep.subr.mxu0 0.0
    %3015 = vmatpush2.msra.mxu0 0.0
    %3016 = vmatprep.subr.mxu0 0.0
    %3017 = vmatpush2.msra.mxu0 0.0
    %3018 = vmatprep.subr.mxu0 0.0
    %3019 = vmatpush2.msra.mxu0 0.0
    %3020 = vmatprep.subr.mxu0 0.0
    %3021 = vmatpush2.msra.mxu0 0.0
    %3022 = vmatprep.subr.mxu0 0.0
    %3023 = vmatpush2.msra.mxu0 0.0
    %3024 = vmatprep.subr.mxu0 0.0
    %3025 = vmatpush2.msra.mxu0 0.0
    %3026 = vmatprep.mubr.f32.mxu0 0.0
    %v3027 = vand.u32 %v2790, 4294901760
    %3028 = vmatmul.mubr.f32.gmra.mxu0 %v3027
    %v3029 = vpop.f32.mrf.mxu0
    %v3030 = vadd.f32 %v2879, %v3029
    %v3031 = vpop.f32.mrf.mxu0
    %3032 = vdwg.mxu0
    %3033 = vmatprep.subr.mxu0 0.0
    %v3034 = vand.u32 %v860, 4294901760
    %v3035 = vsub.f32 %v860, %v3034
    %3036 = vmatpush1.msra.mxu0 %v3035
    %3037 = vmatprep.subr.mxu0 0.0
    %v3038 = vand.u32 %v859, 4294901760
    %v3039 = vsub.f32 %v859, %v3038
    %3040 = vmatpush1.msra.mxu0 %v3039
    %3041 = vmatprep.subr.mxu0 0.0
    %v3042 = vand.u32 %v858, 4294901760
    %v3043 = vsub.f32 %v858, %v3042
    %3044 = vmatpush1.msra.mxu0 %v3043
    %3045 = vmatprep.subr.mxu0 0.0
    %v3046 = vand.u32 %v857, 4294901760
    %v3047 = vsub.f32 %v857, %v3046
    %3048 = vmatpush1.msra.mxu0 %v3047
    %3049 = vmatprep.subr.mxu0 0.0
    %v3050 = vand.u32 %v856, 4294901760
    %v3051 = vsub.f32 %v856, %v3050
    %3052 = vmatpush1.msra.mxu0 %v3051
    %3053 = vmatprep.subr.mxu0 0.0
    %v3054 = vand.u32 %v855, 4294901760
    %v3055 = vsub.f32 %v855, %v3054
    %3056 = vmatpush1.msra.mxu0 %v3055
    %3057 = vmatprep.subr.mxu0 0.0
    %v3058 = vand.u32 %v854, 4294901760
    %v3059 = vsub.f32 %v854, %v3058
    %3060 = vmatpush1.msra.mxu0 %v3059
    %3061 = vmatprep.subr.mxu0 0.0
    %v3062 = vand.u32 %v853, 4294901760
    %v3063 = vsub.f32 %v853, %v3062
    %3064 = vmatpush1.msra.mxu0 %v3063
    %3065 = vmatprep.subr.mxu0 0.0
    %v3066 = vand.u32 %v852, 4294901760
    %v3067 = vsub.f32 %v852, %v3066
    %3068 = vmatpush1.msra.mxu0 %v3067
    %3069 = vmatprep.subr.mxu0 0.0
    %v3070 = vand.u32 %v851, 4294901760
    %v3071 = vsub.f32 %v851, %v3070
    %3072 = vmatpush1.msra.mxu0 %v3071
    %3073 = vmatprep.subr.mxu0 0.0
    %v3074 = vand.u32 %v850, 4294901760
    %v3075 = vsub.f32 %v850, %v3074
    %3076 = vmatpush1.msra.mxu0 %v3075
    %3077 = vmatprep.subr.mxu0 0.0
    %v3078 = vand.u32 %v849, 4294901760
    %v3079 = vsub.f32 %v849, %v3078
    %3080 = vmatpush1.msra.mxu0 %v3079
    %3081 = vmatprep.subr.mxu0 0.0
    %v3082 = vand.u32 %v848, 4294901760
    %v3083 = vsub.f32 %v848, %v3082
    %3084 = vmatpush1.msra.mxu0 %v3083
    %3085 = vmatprep.subr.mxu0 0.0
    %v3086 = vand.u32 %v847, 4294901760
    %v3087 = vsub.f32 %v847, %v3086
    %3088 = vmatpush1.msra.mxu0 %v3087
    %3089 = vmatprep.subr.mxu0 0.0
    %v3090 = vand.u32 %v846, 4294901760
    %v3091 = vsub.f32 %v846, %v3090
    %3092 = vmatpush1.msra.mxu0 %v3091
    %3093 = vmatprep.subr.mxu0 0.0
    %v3094 = vand.u32 %v845, 4294901760
    %v3095 = vsub.f32 %v845, %v3094
    %3096 = vmatpush1.msra.mxu0 %v3095
    %3097 = vmatprep.subr.mxu0 0.0
    %3098 = vmatpush2.msra.mxu0 0.0
    %3099 = vmatprep.subr.mxu0 0.0
    %3100 = vmatpush2.msra.mxu0 0.0
    %3101 = vmatprep.subr.mxu0 0.0
    %3102 = vmatpush2.msra.mxu0 0.0
    %3103 = vmatprep.subr.mxu0 0.0
    %3104 = vmatpush2.msra.mxu0 0.0
    %3105 = vmatprep.subr.mxu0 0.0
    %3106 = vmatpush2.msra.mxu0 0.0
    %3107 = vmatprep.subr.mxu0 0.0
    %3108 = vmatpush2.msra.mxu0 0.0
    %3109 = vmatprep.subr.mxu0 0.0
    %3110 = vmatpush2.msra.mxu0 0.0
    %3111 = vmatprep.subr.mxu0 0.0
    %3112 = vmatpush2.msra.mxu0 0.0
    %3113 = vmatprep.subr.mxu0 0.0
    %3114 = vmatpush2.msra.mxu0 0.0
    %3115 = vmatprep.subr.mxu0 0.0
    %3116 = vmatpush2.msra.mxu0 0.0
    %3117 = vmatprep.subr.mxu0 0.0
    %3118 = vmatpush2.msra.mxu0 0.0
    %3119 = vmatprep.subr.mxu0 0.0
    %3120 = vmatpush2.msra.mxu0 0.0
    %3121 = vmatprep.subr.mxu0 0.0
    %3122 = vmatpush2.msra.mxu0 0.0
    %3123 = vmatprep.subr.mxu0 0.0
    %3124 = vmatpush2.msra.mxu0 0.0
    %3125 = vmatprep.subr.mxu0 0.0
    %3126 = vmatpush2.msra.mxu0 0.0
    %3127 = vmatprep.subr.mxu0 0.0
    %3128 = vmatpush2.msra.mxu0 0.0
    %3129 = vmatprep.mubr.f32.mxu0 0.0
    %v3130 = vand.u32 %v2790, 4294901760
    %v3131 = vsub.f32 %v2790, %v3130
    %3132 = vmatmul.mubr.f32.gmra.mxu0 %v3131
    %v3133 = vpop.f32.mrf.mxu0
    %v3134 = vadd.f32 %v3030, %v3133
    %v3135 = vpop.f32.mrf.mxu0
    %3136 = vdwg.mxu0
    %3137 = vmatprep.subr.mxu0 0.0
    %v3138 = vand.u32 %v860, 4294901760
    %3139 = vmatpush1.msra.mxu0 %v3138
    %3140 = vmatprep.subr.mxu0 0.0
    %v3141 = vand.u32 %v859, 4294901760
    %3142 = vmatpush1.msra.mxu0 %v3141
    %3143 = vmatprep.subr.mxu0 0.0
    %v3144 = vand.u32 %v858, 4294901760
    %3145 = vmatpush1.msra.mxu0 %v3144
    %3146 = vmatprep.subr.mxu0 0.0
    %v3147 = vand.u32 %v857, 4294901760
    %3148 = vmatpush1.msra.mxu0 %v3147
    %3149 = vmatprep.subr.mxu0 0.0
    %v3150 = vand.u32 %v856, 4294901760
    %3151 = vmatpush1.msra.mxu0 %v3150
    %3152 = vmatprep.subr.mxu0 0.0
    %v3153 = vand.u32 %v855, 4294901760
    %3154 = vmatpush1.msra.mxu0 %v3153
    %3155 = vmatprep.subr.mxu0 0.0
    %v3156 = vand.u32 %v854, 4294901760
    %3157 = vmatpush1.msra.mxu0 %v3156
    %3158 = vmatprep.subr.mxu0 0.0
    %v3159 = vand.u32 %v853, 4294901760
    %3160 = vmatpush1.msra.mxu0 %v3159
    %3161 = vmatprep.subr.mxu0 0.0
    %v3162 = vand.u32 %v852, 4294901760
    %3163 = vmatpush1.msra.mxu0 %v3162
    %3164 = vmatprep.subr.mxu0 0.0
    %v3165 = vand.u32 %v851, 4294901760
    %3166 = vmatpush1.msra.mxu0 %v3165
    %3167 = vmatprep.subr.mxu0 0.0
    %v3168 = vand.u32 %v850, 4294901760
    %3169 = vmatpush1.msra.mxu0 %v3168
    %3170 = vmatprep.subr.mxu0 0.0
    %v3171 = vand.u32 %v849, 4294901760
    %3172 = vmatpush1.msra.mxu0 %v3171
    %3173 = vmatprep.subr.mxu0 0.0
    %v3174 = vand.u32 %v848, 4294901760
    %3175 = vmatpush1.msra.mxu0 %v3174
    %3176 = vmatprep.subr.mxu0 0.0
    %v3177 = vand.u32 %v847, 4294901760
    %3178 = vmatpush1.msra.mxu0 %v3177
    %3179 = vmatprep.subr.mxu0 0.0
    %v3180 = vand.u32 %v846, 4294901760
    %3181 = vmatpush1.msra.mxu0 %v3180
    %3182 = vmatprep.subr.mxu0 0.0
    %v3183 = vand.u32 %v845, 4294901760
    %3184 = vmatpush1.msra.mxu0 %v3183
    %3185 = vmatprep.subr.mxu0 0.0
    %3186 = vmatpush2.msra.mxu0 0.0
    %3187 = vmatprep.subr.mxu0 0.0
    %3188 = vmatpush2.msra.mxu0 0.0
    %3189 = vmatprep.subr.mxu0 0.0
    %3190 = vmatpush2.msra.mxu0 0.0
    %3191 = vmatprep.subr.mxu0 0.0
    %3192 = vmatpush2.msra.mxu0 0.0
    %3193 = vmatprep.subr.mxu0 0.0
    %3194 = vmatpush2.msra.mxu0 0.0
    %3195 = vmatprep.subr.mxu0 0.0
    %3196 = vmatpush2.msra.mxu0 0.0
    %3197 = vmatprep.subr.mxu0 0.0
    %3198 = vmatpush2.msra.mxu0 0.0
    %3199 = vmatprep.subr.mxu0 0.0
    %3200 = vmatpush2.msra.mxu0 0.0
    %3201 = vmatprep.subr.mxu0 0.0
    %3202 = vmatpush2.msra.mxu0 0.0
    %3203 = vmatprep.subr.mxu0 0.0
    %3204 = vmatpush2.msra.mxu0 0.0
    %3205 = vmatprep.subr.mxu0 0.0
    %3206 = vmatpush2.msra.mxu0 0.0
    %3207 = vmatprep.subr.mxu0 0.0
    %3208 = vmatpush2.msra.mxu0 0.0
    %3209 = vmatprep.subr.mxu0 0.0
    %3210 = vmatpush2.msra.mxu0 0.0
    %3211 = vmatprep.subr.mxu0 0.0
    %3212 = vmatpush2.msra.mxu0 0.0
    %3213 = vmatprep.subr.mxu0 0.0
    %3214 = vmatpush2.msra.mxu0 0.0
    %3215 = vmatprep.subr.mxu0 0.0
    %3216 = vmatpush2.msra.mxu0 0.0
    %3217 = vmatprep.mubr.f32.mxu0 0.0
    %v3218 = vand.u32 %v2790, 4294901760
    %v3219 = vsub.f32 %v2790, %v3218
    %v3220 = vand.u32 %v3219, 4294901760
    %3221 = vmatmul.mubr.f32.gmra.mxu0 %v3220
    %v3222 = vpop.f32.mrf.mxu0
    %v3223 = vadd.f32 %v3134, %v3222
    %v3224 = vpop.f32.mrf.mxu0
    %3225 = vdwg.mxu0
    %3226 = vmatprep.subr.mxu0 0.0
    %v3227 = vand.u32 %v860, 4294901760
    %v3228 = vsub.f32 %v860, %v3227
    %v3229 = vand.u32 %v3228, 4294901760
    %3230 = vmatpush1.msra.mxu0 %v3229
    %3231 = vmatprep.subr.mxu0 0.0
    %v3232 = vand.u32 %v859, 4294901760
    %v3233 = vsub.f32 %v859, %v3232
    %v3234 = vand.u32 %v3233, 4294901760
    %3235 = vmatpush1.msra.mxu0 %v3234
    %3236 = vmatprep.subr.mxu0 0.0
    %v3237 = vand.u32 %v858, 4294901760
    %v3238 = vsub.f32 %v858, %v3237
    %v3239 = vand.u32 %v3238, 4294901760
    %3240 = vmatpush1.msra.mxu0 %v3239
    %3241 = vmatprep.subr.mxu0 0.0
    %v3242 = vand.u32 %v857, 4294901760
    %v3243 = vsub.f32 %v857, %v3242
    %v3244 = vand.u32 %v3243, 4294901760
    %3245 = vmatpush1.msra.mxu0 %v3244
    %3246 = vmatprep.subr.mxu0 0.0
    %v3247 = vand.u32 %v856, 4294901760
    %v3248 = vsub.f32 %v856, %v3247
    %v3249 = vand.u32 %v3248, 4294901760
    %3250 = vmatpush1.msra.mxu0 %v3249
    %3251 = vmatprep.subr.mxu0 0.0
    %v3252 = vand.u32 %v855, 4294901760
    %v3253 = vsub.f32 %v855, %v3252
    %v3254 = vand.u32 %v3253, 4294901760
    %3255 = vmatpush1.msra.mxu0 %v3254
    %3256 = vmatprep.subr.mxu0 0.0
    %v3257 = vand.u32 %v854, 4294901760
    %v3258 = vsub.f32 %v854, %v3257
    %v3259 = vand.u32 %v3258, 4294901760
    %3260 = vmatpush1.msra.mxu0 %v3259
    %3261 = vmatprep.subr.mxu0 0.0
    %v3262 = vand.u32 %v853, 4294901760
    %v3263 = vsub.f32 %v853, %v3262
    %v3264 = vand.u32 %v3263, 4294901760
    %3265 = vmatpush1.msra.mxu0 %v3264
    %3266 = vmatprep.subr.mxu0 0.0
    %v3267 = vand.u32 %v852, 4294901760
    %v3268 = vsub.f32 %v852, %v3267
    %v3269 = vand.u32 %v3268, 4294901760
    %3270 = vmatpush1.msra.mxu0 %v3269
    %3271 = vmatprep.subr.mxu0 0.0
    %v3272 = vand.u32 %v851, 4294901760
    %v3273 = vsub.f32 %v851, %v3272
    %v3274 = vand.u32 %v3273, 4294901760
    %3275 = vmatpush1.msra.mxu0 %v3274
    %3276 = vmatprep.subr.mxu0 0.0
    %v3277 = vand.u32 %v850, 4294901760
    %v3278 = vsub.f32 %v850, %v3277
    %v3279 = vand.u32 %v3278, 4294901760
    %3280 = vmatpush1.msra.mxu0 %v3279
    %3281 = vmatprep.subr.mxu0 0.0
    %v3282 = vand.u32 %v849, 4294901760
    %v3283 = vsub.f32 %v849, %v3282
    %v3284 = vand.u32 %v3283, 4294901760
    %3285 = vmatpush1.msra.mxu0 %v3284
    %3286 = vmatprep.subr.mxu0 0.0
    %v3287 = vand.u32 %v848, 4294901760
    %v3288 = vsub.f32 %v848, %v3287
    %v3289 = vand.u32 %v3288, 4294901760
    %3290 = vmatpush1.msra.mxu0 %v3289
    %3291 = vmatprep.subr.mxu0 0.0
    %v3292 = vand.u32 %v847, 4294901760
    %v3293 = vsub.f32 %v847, %v3292
    %v3294 = vand.u32 %v3293, 4294901760
    %3295 = vmatpush1.msra.mxu0 %v3294
    %3296 = vmatprep.subr.mxu0 0.0
    %v3297 = vand.u32 %v846, 4294901760
    %v3298 = vsub.f32 %v846, %v3297
    %v3299 = vand.u32 %v3298, 4294901760
    %3300 = vmatpush1.msra.mxu0 %v3299
    %3301 = vmatprep.subr.mxu0 0.0
    %v3302 = vand.u32 %v845, 4294901760
    %v3303 = vsub.f32 %v845, %v3302
    %v3304 = vand.u32 %v3303, 4294901760
    %3305 = vmatpush1.msra.mxu0 %v3304
    %3306 = vmatprep.subr.mxu0 0.0
    %3307 = vmatpush2.msra.mxu0 0.0
    %3308 = vmatprep.subr.mxu0 0.0
    %3309 = vmatpush2.msra.mxu0 0.0
    %3310 = vmatprep.subr.mxu0 0.0
    %3311 = vmatpush2.msra.mxu0 0.0
    %3312 = vmatprep.subr.mxu0 0.0
    %3313 = vmatpush2.msra.mxu0 0.0
    %3314 = vmatprep.subr.mxu0 0.0
    %3315 = vmatpush2.msra.mxu0 0.0
    %3316 = vmatprep.subr.mxu0 0.0
    %3317 = vmatpush2.msra.mxu0 0.0
    %3318 = vmatprep.subr.mxu0 0.0
    %3319 = vmatpush2.msra.mxu0 0.0
    %3320 = vmatprep.subr.mxu0 0.0
    %3321 = vmatpush2.msra.mxu0 0.0
    %3322 = vmatprep.subr.mxu0 0.0
    %3323 = vmatpush2.msra.mxu0 0.0
    %3324 = vmatprep.subr.mxu0 0.0
    %3325 = vmatpush2.msra.mxu0 0.0
    %3326 = vmatprep.subr.mxu0 0.0
    %3327 = vmatpush2.msra.mxu0 0.0
    %3328 = vmatprep.subr.mxu0 0.0
    %3329 = vmatpush2.msra.mxu0 0.0
    %3330 = vmatprep.subr.mxu0 0.0
    %3331 = vmatpush2.msra.mxu0 0.0
    %3332 = vmatprep.subr.mxu0 0.0
    %3333 = vmatpush2.msra.mxu0 0.0
    %3334 = vmatprep.subr.mxu0 0.0
    %3335 = vmatpush2.msra.mxu0 0.0
    %3336 = vmatprep.subr.mxu0 0.0
    %3337 = vmatpush2.msra.mxu0 0.0
    %3338 = vmatprep.mubr.f32.mxu0 0.0
    %v3339 = vand.u32 %v2790, 4294901760
    %3340 = vmatmul.mubr.f32.gmra.mxu0 %v3339
    %v3341 = vpop.f32.mrf.mxu0
    %v3342 = vadd.f32 %v3223, %v3341
    %v3343 = vpop.f32.mrf.mxu0
    %3344 = vdwg.mxu0
    %3345 = vmatprep.subr.mxu0 0.0
    %v3346 = vand.u32 %v860, 4294901760
    %3347 = vmatpush1.msra.mxu0 %v3346
    %3348 = vmatprep.subr.mxu0 0.0
    %v3349 = vand.u32 %v859, 4294901760
    %3350 = vmatpush1.msra.mxu0 %v3349
    %3351 = vmatprep.subr.mxu0 0.0
    %v3352 = vand.u32 %v858, 4294901760
    %3353 = vmatpush1.msra.mxu0 %v3352
    %3354 = vmatprep.subr.mxu0 0.0
    %v3355 = vand.u32 %v857, 4294901760
    %3356 = vmatpush1.msra.mxu0 %v3355
    %3357 = vmatprep.subr.mxu0 0.0
    %v3358 = vand.u32 %v856, 4294901760
    %3359 = vmatpush1.msra.mxu0 %v3358
    %3360 = vmatprep.subr.mxu0 0.0
    %v3361 = vand.u32 %v855, 4294901760
    %3362 = vmatpush1.msra.mxu0 %v3361
    %3363 = vmatprep.subr.mxu0 0.0
    %v3364 = vand.u32 %v854, 4294901760
    %3365 = vmatpush1.msra.mxu0 %v3364
    %3366 = vmatprep.subr.mxu0 0.0
    %v3367 = vand.u32 %v853, 4294901760
    %3368 = vmatpush1.msra.mxu0 %v3367
    %3369 = vmatprep.subr.mxu0 0.0
    %v3370 = vand.u32 %v852, 4294901760
    %3371 = vmatpush1.msra.mxu0 %v3370
    %3372 = vmatprep.subr.mxu0 0.0
    %v3373 = vand.u32 %v851, 4294901760
    %3374 = vmatpush1.msra.mxu0 %v3373
    %3375 = vmatprep.subr.mxu0 0.0
    %v3376 = vand.u32 %v850, 4294901760
    %3377 = vmatpush1.msra.mxu0 %v3376
    %3378 = vmatprep.subr.mxu0 0.0
    %v3379 = vand.u32 %v849, 4294901760
    %3380 = vmatpush1.msra.mxu0 %v3379
    %3381 = vmatprep.subr.mxu0 0.0
    %v3382 = vand.u32 %v848, 4294901760
    %3383 = vmatpush1.msra.mxu0 %v3382
    %3384 = vmatprep.subr.mxu0 0.0
    %v3385 = vand.u32 %v847, 4294901760
    %3386 = vmatpush1.msra.mxu0 %v3385
    %3387 = vmatprep.subr.mxu0 0.0
    %v3388 = vand.u32 %v846, 4294901760
    %3389 = vmatpush1.msra.mxu0 %v3388
    %3390 = vmatprep.subr.mxu0 0.0
    %v3391 = vand.u32 %v845, 4294901760
    %3392 = vmatpush1.msra.mxu0 %v3391
    %3393 = vmatprep.subr.mxu0 0.0
    %3394 = vmatpush2.msra.mxu0 0.0
    %3395 = vmatprep.subr.mxu0 0.0
    %3396 = vmatpush2.msra.mxu0 0.0
    %3397 = vmatprep.subr.mxu0 0.0
    %3398 = vmatpush2.msra.mxu0 0.0
    %3399 = vmatprep.subr.mxu0 0.0
    %3400 = vmatpush2.msra.mxu0 0.0
    %3401 = vmatprep.subr.mxu0 0.0
    %3402 = vmatpush2.msra.mxu0 0.0
    %3403 = vmatprep.subr.mxu0 0.0
    %3404 = vmatpush2.msra.mxu0 0.0
    %3405 = vmatprep.subr.mxu0 0.0
    %3406 = vmatpush2.msra.mxu0 0.0
    %3407 = vmatprep.subr.mxu0 0.0
    %3408 = vmatpush2.msra.mxu0 0.0
    %3409 = vmatprep.subr.mxu0 0.0
    %3410 = vmatpush2.msra.mxu0 0.0
    %3411 = vmatprep.subr.mxu0 0.0
    %3412 = vmatpush2.msra.mxu0 0.0
    %3413 = vmatprep.subr.mxu0 0.0
    %3414 = vmatpush2.msra.mxu0 0.0
    %3415 = vmatprep.subr.mxu0 0.0
    %3416 = vmatpush2.msra.mxu0 0.0
    %3417 = vmatprep.subr.mxu0 0.0
    %3418 = vmatpush2.msra.mxu0 0.0
    %3419 = vmatprep.subr.mxu0 0.0
    %3420 = vmatpush2.msra.mxu0 0.0
    %3421 = vmatprep.subr.mxu0 0.0
    %3422 = vmatpush2.msra.mxu0 0.0
    %3423 = vmatprep.subr.mxu0 0.0
    %3424 = vmatpush2.msra.mxu0 0.0
    %3425 = vmatprep.mubr.f32.mxu0 0.0
    %v3426 = vand.u32 %v2790, 4294901760
    %3427 = vmatmul.mubr.f32.gmra.mxu0 %v3426
    %v3428 = vpop.f32.mrf.mxu0
    %v3429 = vadd.f32 %v3342, %v3428
    %v3430 = vpop.f32.mrf.mxu0
    %3431 = vdwg.mxu0
    %v3432 = vadd.f32 %v824, %v3429
    %v3433 = vtanh.pop %v3432
    %3434 = vmatprep.subr.mxu0 0.0
    %v3435 = vand.u32 %v860, 4294901760
    %3436 = vmatpush1.msra.mxu0 %v3435
    %3437 = vmatprep.subr.mxu0 0.0
    %v3438 = vand.u32 %v859, 4294901760
    %3439 = vmatpush1.msra.mxu0 %v3438
    %3440 = vmatprep.subr.mxu0 0.0
    %v3441 = vand.u32 %v858, 4294901760
    %3442 = vmatpush1.msra.mxu0 %v3441
    %3443 = vmatprep.subr.mxu0 0.0
    %v3444 = vand.u32 %v857, 4294901760
    %3445 = vmatpush1.msra.mxu0 %v3444
    %3446 = vmatprep.subr.mxu0 0.0
    %v3447 = vand.u32 %v856, 4294901760
    %3448 = vmatpush1.msra.mxu0 %v3447
    %3449 = vmatprep.subr.mxu0 0.0
    %v3450 = vand.u32 %v855, 4294901760
    %3451 = vmatpush1.msra.mxu0 %v3450
    %3452 = vmatprep.subr.mxu0 0.0
    %v3453 = vand.u32 %v854, 4294901760
    %3454 = vmatpush1.msra.mxu0 %v3453
    %3455 = vmatprep.subr.mxu0 0.0
    %v3456 = vand.u32 %v853, 4294901760
    %3457 = vmatpush1.msra.mxu0 %v3456
    %3458 = vmatprep.subr.mxu0 0.0
    %v3459 = vand.u32 %v852, 4294901760
    %3460 = vmatpush1.msra.mxu0 %v3459
    %3461 = vmatprep.subr.mxu0 0.0
    %v3462 = vand.u32 %v851, 4294901760
    %3463 = vmatpush1.msra.mxu0 %v3462
    %3464 = vmatprep.subr.mxu0 0.0
    %v3465 = vand.u32 %v850, 4294901760
    %3466 = vmatpush1.msra.mxu0 %v3465
    %3467 = vmatprep.subr.mxu0 0.0
    %v3468 = vand.u32 %v849, 4294901760
    %3469 = vmatpush1.msra.mxu0 %v3468
    %3470 = vmatprep.subr.mxu0 0.0
    %v3471 = vand.u32 %v848, 4294901760
    %3472 = vmatpush1.msra.mxu0 %v3471
    %3473 = vmatprep.subr.mxu0 0.0
    %v3474 = vand.u32 %v847, 4294901760
    %3475 = vmatpush1.msra.mxu0 %v3474
    %3476 = vmatprep.subr.mxu0 0.0
    %v3477 = vand.u32 %v846, 4294901760
    %3478 = vmatpush1.msra.mxu0 %v3477
    %3479 = vmatprep.subr.mxu0 0.0
    %v3480 = vand.u32 %v845, 4294901760
    %3481 = vmatpush1.msra.mxu0 %v3480
    %3482 = vmatprep.subr.mxu0 0.0
    %3483 = vmatpush2.msra.mxu0 0.0
    %3484 = vmatprep.subr.mxu0 0.0
    %3485 = vmatpush2.msra.mxu0 0.0
    %3486 = vmatprep.subr.mxu0 0.0
    %3487 = vmatpush2.msra.mxu0 0.0
    %3488 = vmatprep.subr.mxu0 0.0
    %3489 = vmatpush2.msra.mxu0 0.0
    %3490 = vmatprep.subr.mxu0 0.0
    %3491 = vmatpush2.msra.mxu0 0.0
    %3492 = vmatprep.subr.mxu0 0.0
    %3493 = vmatpush2.msra.mxu0 0.0
    %3494 = vmatprep.subr.mxu0 0.0
    %3495 = vmatpush2.msra.mxu0 0.0
    %3496 = vmatprep.subr.mxu0 0.0
    %3497 = vmatpush2.msra.mxu0 0.0
    %3498 = vmatprep.subr.mxu0 0.0
    %3499 = vmatpush2.msra.mxu0 0.0
    %3500 = vmatprep.subr.mxu0 0.0
    %3501 = vmatpush2.msra.mxu0 0.0
    %3502 = vmatprep.subr.mxu0 0.0
    %3503 = vmatpush2.msra.mxu0 0.0
    %3504 = vmatprep.subr.mxu0 0.0
    %3505 = vmatpush2.msra.mxu0 0.0
    %3506 = vmatprep.subr.mxu0 0.0
    %3507 = vmatpush2.msra.mxu0 0.0
    %3508 = vmatprep.subr.mxu0 0.0
    %3509 = vmatpush2.msra.mxu0 0.0
    %3510 = vmatprep.subr.mxu0 0.0
    %3511 = vmatpush2.msra.mxu0 0.0
    %3512 = vmatprep.subr.mxu0 0.0
    %3513 = vmatpush2.msra.mxu0 0.0
    %3514 = vmatprep.mubr.f32.mxu0 0.0
    %v3515 = vand.u32 %v3433, 4294901760
    %v3516 = vsub.f32 %v3433, %v3515
    %v3517 = vand.u32 %v3516, 4294901760
    %v3518 = vsub.f32 %v3516, %v3517
    %v3519 = vand.u32 %v3518, 4294901760
    %3520 = vmatmul.mubr.f32.gmra.mxu0 %v3519
    %v3521 = vpop.f32.mrf.mxu0
    %v3522 = vadd.f32 0.0, %v3521
    %v3523 = vpop.f32.mrf.mxu0
    %3524 = vdwg.mxu0
    %3525 = vmatprep.subr.mxu0 0.0
    %v3526 = vand.u32 %v860, 4294901760
    %v3527 = vsub.f32 %v860, %v3526
    %v3528 = vand.u32 %v3527, 4294901760
    %v3529 = vsub.f32 %v3527, %v3528
    %v3530 = vand.u32 %v3529, 4294901760
    %3531 = vmatpush1.msra.mxu0 %v3530
    %3532 = vmatprep.subr.mxu0 0.0
    %v3533 = vand.u32 %v859, 4294901760
    %v3534 = vsub.f32 %v859, %v3533
    %v3535 = vand.u32 %v3534, 4294901760
    %v3536 = vsub.f32 %v3534, %v3535
    %v3537 = vand.u32 %v3536, 4294901760
    %3538 = vmatpush1.msra.mxu0 %v3537
    %3539 = vmatprep.subr.mxu0 0.0
    %v3540 = vand.u32 %v858, 4294901760
    %v3541 = vsub.f32 %v858, %v3540
    %v3542 = vand.u32 %v3541, 4294901760
    %v3543 = vsub.f32 %v3541, %v3542
    %v3544 = vand.u32 %v3543, 4294901760
    %3545 = vmatpush1.msra.mxu0 %v3544
    %3546 = vmatprep.subr.mxu0 0.0
    %v3547 = vand.u32 %v857, 4294901760
    %v3548 = vsub.f32 %v857, %v3547
    %v3549 = vand.u32 %v3548, 4294901760
    %v3550 = vsub.f32 %v3548, %v3549
    %v3551 = vand.u32 %v3550, 4294901760
    %3552 = vmatpush1.msra.mxu0 %v3551
    %3553 = vmatprep.subr.mxu0 0.0
    %v3554 = vand.u32 %v856, 4294901760
    %v3555 = vsub.f32 %v856, %v3554
    %v3556 = vand.u32 %v3555, 4294901760
    %v3557 = vsub.f32 %v3555, %v3556
    %v3558 = vand.u32 %v3557, 4294901760
    %3559 = vmatpush1.msra.mxu0 %v3558
    %3560 = vmatprep.subr.mxu0 0.0
    %v3561 = vand.u32 %v855, 4294901760
    %v3562 = vsub.f32 %v855, %v3561
    %v3563 = vand.u32 %v3562, 4294901760
    %v3564 = vsub.f32 %v3562, %v3563
    %v3565 = vand.u32 %v3564, 4294901760
    %3566 = vmatpush1.msra.mxu0 %v3565
    %3567 = vmatprep.subr.mxu0 0.0
    %v3568 = vand.u32 %v854, 4294901760
    %v3569 = vsub.f32 %v854, %v3568
    %v3570 = vand.u32 %v3569, 4294901760
    %v3571 = vsub.f32 %v3569, %v3570
    %v3572 = vand.u32 %v3571, 4294901760
    %3573 = vmatpush1.msra.mxu0 %v3572
    %3574 = vmatprep.subr.mxu0 0.0
    %v3575 = vand.u32 %v853, 4294901760
    %v3576 = vsub.f32 %v853, %v3575
    %v3577 = vand.u32 %v3576, 4294901760
    %v3578 = vsub.f32 %v3576, %v3577
    %v3579 = vand.u32 %v3578, 4294901760
    %3580 = vmatpush1.msra.mxu0 %v3579
    %3581 = vmatprep.subr.mxu0 0.0
    %v3582 = vand.u32 %v852, 4294901760
    %v3583 = vsub.f32 %v852, %v3582
    %v3584 = vand.u32 %v3583, 4294901760
    %v3585 = vsub.f32 %v3583, %v3584
    %v3586 = vand.u32 %v3585, 4294901760
    %3587 = vmatpush1.msra.mxu0 %v3586
    %3588 = vmatprep.subr.mxu0 0.0
    %v3589 = vand.u32 %v851, 4294901760
    %v3590 = vsub.f32 %v851, %v3589
    %v3591 = vand.u32 %v3590, 4294901760
    %v3592 = vsub.f32 %v3590, %v3591
    %v3593 = vand.u32 %v3592, 4294901760
    %3594 = vmatpush1.msra.mxu0 %v3593
    %3595 = vmatprep.subr.mxu0 0.0
    %v3596 = vand.u32 %v850, 4294901760
    %v3597 = vsub.f32 %v850, %v3596
    %v3598 = vand.u32 %v3597, 4294901760
    %v3599 = vsub.f32 %v3597, %v3598
    %v3600 = vand.u32 %v3599, 4294901760
    %3601 = vmatpush1.msra.mxu0 %v3600
    %3602 = vmatprep.subr.mxu0 0.0
    %v3603 = vand.u32 %v849, 4294901760
    %v3604 = vsub.f32 %v849, %v3603
    %v3605 = vand.u32 %v3604, 4294901760
    %v3606 = vsub.f32 %v3604, %v3605
    %v3607 = vand.u32 %v3606, 4294901760
    %3608 = vmatpush1.msra.mxu0 %v3607
    %3609 = vmatprep.subr.mxu0 0.0
    %v3610 = vand.u32 %v848, 4294901760
    %v3611 = vsub.f32 %v848, %v3610
    %v3612 = vand.u32 %v3611, 4294901760
    %v3613 = vsub.f32 %v3611, %v3612
    %v3614 = vand.u32 %v3613, 4294901760
    %3615 = vmatpush1.msra.mxu0 %v3614
    %3616 = vmatprep.subr.mxu0 0.0
    %v3617 = vand.u32 %v847, 4294901760
    %v3618 = vsub.f32 %v847, %v3617
    %v3619 = vand.u32 %v3618, 4294901760
    %v3620 = vsub.f32 %v3618, %v3619
    %v3621 = vand.u32 %v3620, 4294901760
    %3622 = vmatpush1.msra.mxu0 %v3621
    %3623 = vmatprep.subr.mxu0 0.0
    %v3624 = vand.u32 %v846, 4294901760
    %v3625 = vsub.f32 %v846, %v3624
    %v3626 = vand.u32 %v3625, 4294901760
    %v3627 = vsub.f32 %v3625, %v3626
    %v3628 = vand.u32 %v3627, 4294901760
    %3629 = vmatpush1.msra.mxu0 %v3628
    %3630 = vmatprep.subr.mxu0 0.0
    %v3631 = vand.u32 %v845, 4294901760
    %v3632 = vsub.f32 %v845, %v3631
    %v3633 = vand.u32 %v3632, 4294901760
    %v3634 = vsub.f32 %v3632, %v3633
    %v3635 = vand.u32 %v3634, 4294901760
    %3636 = vmatpush1.msra.mxu0 %v3635
    %3637 = vmatprep.subr.mxu0 0.0
    %3638 = vmatpush2.msra.mxu0 0.0
    %3639 = vmatprep.subr.mxu0 0.0
    %3640 = vmatpush2.msra.mxu0 0.0
    %3641 = vmatprep.subr.mxu0 0.0
    %3642 = vmatpush2.msra.mxu0 0.0
    %3643 = vmatprep.subr.mxu0 0.0
    %3644 = vmatpush2.msra.mxu0 0.0
    %3645 = vmatprep.subr.mxu0 0.0
    %3646 = vmatpush2.msra.mxu0 0.0
    %3647 = vmatprep.subr.mxu0 0.0
    %3648 = vmatpush2.msra.mxu0 0.0
    %3649 = vmatprep.subr.mxu0 0.0
    %3650 = vmatpush2.msra.mxu0 0.0
    %3651 = vmatprep.subr.mxu0 0.0
    %3652 = vmatpush2.msra.mxu0 0.0
    %3653 = vmatprep.subr.mxu0 0.0
    %3654 = vmatpush2.msra.mxu0 0.0
    %3655 = vmatprep.subr.mxu0 0.0
    %3656 = vmatpush2.msra.mxu0 0.0
    %3657 = vmatprep.subr.mxu0 0.0
    %3658 = vmatpush2.msra.mxu0 0.0
    %3659 = vmatprep.subr.mxu0 0.0
    %3660 = vmatpush2.msra.mxu0 0.0
    %3661 = vmatprep.subr.mxu0 0.0
    %3662 = vmatpush2.msra.mxu0 0.0
    %3663 = vmatprep.subr.mxu0 0.0
    %3664 = vmatpush2.msra.mxu0 0.0
    %3665 = vmatprep.subr.mxu0 0.0
    %3666 = vmatpush2.msra.mxu0 0.0
    %3667 = vmatprep.subr.mxu0 0.0
    %3668 = vmatpush2.msra.mxu0 0.0
    %3669 = vmatprep.mubr.f32.mxu0 0.0
    %v3670 = vand.u32 %v3433, 4294901760
    %3671 = vmatmul.mubr.f32.gmra.mxu0 %v3670
    %v3672 = vpop.f32.mrf.mxu0
    %v3673 = vadd.f32 %v3522, %v3672
    %v3674 = vpop.f32.mrf.mxu0
    %3675 = vdwg.mxu0
    %3676 = vmatprep.subr.mxu0 0.0
    %v3677 = vand.u32 %v860, 4294901760
    %v3678 = vsub.f32 %v860, %v3677
    %3679 = vmatpush1.msra.mxu0 %v3678
    %3680 = vmatprep.subr.mxu0 0.0
    %v3681 = vand.u32 %v859, 4294901760
    %v3682 = vsub.f32 %v859, %v3681
    %3683 = vmatpush1.msra.mxu0 %v3682
    %3684 = vmatprep.subr.mxu0 0.0
    %v3685 = vand.u32 %v858, 4294901760
    %v3686 = vsub.f32 %v858, %v3685
    %3687 = vmatpush1.msra.mxu0 %v3686
    %3688 = vmatprep.subr.mxu0 0.0
    %v3689 = vand.u32 %v857, 4294901760
    %v3690 = vsub.f32 %v857, %v3689
    %3691 = vmatpush1.msra.mxu0 %v3690
    %3692 = vmatprep.subr.mxu0 0.0
    %v3693 = vand.u32 %v856, 4294901760
    %v3694 = vsub.f32 %v856, %v3693
    %3695 = vmatpush1.msra.mxu0 %v3694
    %3696 = vmatprep.subr.mxu0 0.0
    %v3697 = vand.u32 %v855, 4294901760
    %v3698 = vsub.f32 %v855, %v3697
    %3699 = vmatpush1.msra.mxu0 %v3698
    %3700 = vmatprep.subr.mxu0 0.0
    %v3701 = vand.u32 %v854, 4294901760
    %v3702 = vsub.f32 %v854, %v3701
    %3703 = vmatpush1.msra.mxu0 %v3702
    %3704 = vmatprep.subr.mxu0 0.0
    %v3705 = vand.u32 %v853, 4294901760
    %v3706 = vsub.f32 %v853, %v3705
    %3707 = vmatpush1.msra.mxu0 %v3706
    %3708 = vmatprep.subr.mxu0 0.0
    %v3709 = vand.u32 %v852, 4294901760
    %v3710 = vsub.f32 %v852, %v3709
    %3711 = vmatpush1.msra.mxu0 %v3710
    %3712 = vmatprep.subr.mxu0 0.0
    %v3713 = vand.u32 %v851, 4294901760
    %v3714 = vsub.f32 %v851, %v3713
    %3715 = vmatpush1.msra.mxu0 %v3714
    %3716 = vmatprep.subr.mxu0 0.0
    %v3717 = vand.u32 %v850, 4294901760
    %v3718 = vsub.f32 %v850, %v3717
    %3719 = vmatpush1.msra.mxu0 %v3718
    %3720 = vmatprep.subr.mxu0 0.0
    %v3721 = vand.u32 %v849, 4294901760
    %v3722 = vsub.f32 %v849, %v3721
    %3723 = vmatpush1.msra.mxu0 %v3722
    %3724 = vmatprep.subr.mxu0 0.0
    %v3725 = vand.u32 %v848, 4294901760
    %v3726 = vsub.f32 %v848, %v3725
    %3727 = vmatpush1.msra.mxu0 %v3726
    %3728 = vmatprep.subr.mxu0 0.0
    %v3729 = vand.u32 %v847, 4294901760
    %v3730 = vsub.f32 %v847, %v3729
    %3731 = vmatpush1.msra.mxu0 %v3730
    %3732 = vmatprep.subr.mxu0 0.0
    %v3733 = vand.u32 %v846, 4294901760
    %v3734 = vsub.f32 %v846, %v3733
    %3735 = vmatpush1.msra.mxu0 %v3734
    %3736 = vmatprep.subr.mxu0 0.0
    %v3737 = vand.u32 %v845, 4294901760
    %v3738 = vsub.f32 %v845, %v3737
    %3739 = vmatpush1.msra.mxu0 %v3738
    %3740 = vmatprep.subr.mxu0 0.0
    %3741 = vmatpush2.msra.mxu0 0.0
    %3742 = vmatprep.subr.mxu0 0.0
    %3743 = vmatpush2.msra.mxu0 0.0
    %3744 = vmatprep.subr.mxu0 0.0
    %3745 = vmatpush2.msra.mxu0 0.0
    %3746 = vmatprep.subr.mxu0 0.0
    %3747 = vmatpush2.msra.mxu0 0.0
    %3748 = vmatprep.subr.mxu0 0.0
    %3749 = vmatpush2.msra.mxu0 0.0
    %3750 = vmatprep.subr.mxu0 0.0
    %3751 = vmatpush2.msra.mxu0 0.0
    %3752 = vmatprep.subr.mxu0 0.0
    %3753 = vmatpush2.msra.mxu0 0.0
    %3754 = vmatprep.subr.mxu0 0.0
    %3755 = vmatpush2.msra.mxu0 0.0
    %3756 = vmatprep.subr.mxu0 0.0
    %3757 = vmatpush2.msra.mxu0 0.0
    %3758 = vmatprep.subr.mxu0 0.0
    %3759 = vmatpush2.msra.mxu0 0.0
    %3760 = vmatprep.subr.mxu0 0.0
    %3761 = vmatpush2.msra.mxu0 0.0
    %3762 = vmatprep.subr.mxu0 0.0
    %3763 = vmatpush2.msra.mxu0 0.0
    %3764 = vmatprep.subr.mxu0 0.0
    %3765 = vmatpush2.msra.mxu0 0.0
    %3766 = vmatprep.subr.mxu0 0.0
    %3767 = vmatpush2.msra.mxu0 0.0
    %3768 = vmatprep.subr.mxu0 0.0
    %3769 = vmatpush2.msra.mxu0 0.0
    %3770 = vmatprep.subr.mxu0 0.0
    %3771 = vmatpush2.msra.mxu0 0.0
    %3772 = vmatprep.mubr.f32.mxu0 0.0
    %v3773 = vand.u32 %v3433, 4294901760
    %v3774 = vsub.f32 %v3433, %v3773
    %3775 = vmatmul.mubr.f32.gmra.mxu0 %v3774
    %v3776 = vpop.f32.mrf.mxu0
    %v3777 = vadd.f32 %v3673, %v3776
    %v3778 = vpop.f32.mrf.mxu0
    %3779 = vdwg.mxu0
    %3780 = vmatprep.subr.mxu0 0.0
    %v3781 = vand.u32 %v860, 4294901760
    %3782 = vmatpush1.msra.mxu0 %v3781
    %3783 = vmatprep.subr.mxu0 0.0
    %v3784 = vand.u32 %v859, 4294901760
    %3785 = vmatpush1.msra.mxu0 %v3784
    %3786 = vmatprep.subr.mxu0 0.0
    %v3787 = vand.u32 %v858, 4294901760
    %3788 = vmatpush1.msra.mxu0 %v3787
    %3789 = vmatprep.subr.mxu0 0.0
    %v3790 = vand.u32 %v857, 4294901760
    %3791 = vmatpush1.msra.mxu0 %v3790
    %3792 = vmatprep.subr.mxu0 0.0
    %v3793 = vand.u32 %v856, 4294901760
    %3794 = vmatpush1.msra.mxu0 %v3793
    %3795 = vmatprep.subr.mxu0 0.0
    %v3796 = vand.u32 %v855, 4294901760
    %3797 = vmatpush1.msra.mxu0 %v3796
    %3798 = vmatprep.subr.mxu0 0.0
    %v3799 = vand.u32 %v854, 4294901760
    %3800 = vmatpush1.msra.mxu0 %v3799
    %3801 = vmatprep.subr.mxu0 0.0
    %v3802 = vand.u32 %v853, 4294901760
    %3803 = vmatpush1.msra.mxu0 %v3802
    %3804 = vmatprep.subr.mxu0 0.0
    %v3805 = vand.u32 %v852, 4294901760
    %3806 = vmatpush1.msra.mxu0 %v3805
    %3807 = vmatprep.subr.mxu0 0.0
    %v3808 = vand.u32 %v851, 4294901760
    %3809 = vmatpush1.msra.mxu0 %v3808
    %3810 = vmatprep.subr.mxu0 0.0
    %v3811 = vand.u32 %v850, 4294901760
    %3812 = vmatpush1.msra.mxu0 %v3811
    %3813 = vmatprep.subr.mxu0 0.0
    %v3814 = vand.u32 %v849, 4294901760
    %3815 = vmatpush1.msra.mxu0 %v3814
    %3816 = vmatprep.subr.mxu0 0.0
    %v3817 = vand.u32 %v848, 4294901760
    %3818 = vmatpush1.msra.mxu0 %v3817
    %3819 = vmatprep.subr.mxu0 0.0
    %v3820 = vand.u32 %v847, 4294901760
    %3821 = vmatpush1.msra.mxu0 %v3820
    %3822 = vmatprep.subr.mxu0 0.0
    %v3823 = vand.u32 %v846, 4294901760
    %3824 = vmatpush1.msra.mxu0 %v3823
    %3825 = vmatprep.subr.mxu0 0.0
    %v3826 = vand.u32 %v845, 4294901760
    %3827 = vmatpush1.msra.mxu0 %v3826
    %3828 = vmatprep.subr.mxu0 0.0
    %3829 = vmatpush2.msra.mxu0 0.0
    %3830 = vmatprep.subr.mxu0 0.0
    %3831 = vmatpush2.msra.mxu0 0.0
    %3832 = vmatprep.subr.mxu0 0.0
    %3833 = vmatpush2.msra.mxu0 0.0
    %3834 = vmatprep.subr.mxu0 0.0
    %3835 = vmatpush2.msra.mxu0 0.0
    %3836 = vmatprep.subr.mxu0 0.0
    %3837 = vmatpush2.msra.mxu0 0.0
    %3838 = vmatprep.subr.mxu0 0.0
    %3839 = vmatpush2.msra.mxu0 0.0
    %3840 = vmatprep.subr.mxu0 0.0
    %3841 = vmatpush2.msra.mxu0 0.0
    %3842 = vmatprep.subr.mxu0 0.0
    %3843 = vmatpush2.msra.mxu0 0.0
    %3844 = vmatprep.subr.mxu0 0.0
    %3845 = vmatpush2.msra.mxu0 0.0
    %3846 = vmatprep.subr.mxu0 0.0
    %3847 = vmatpush2.msra.mxu0 0.0
    %3848 = vmatprep.subr.mxu0 0.0
    %3849 = vmatpush2.msra.mxu0 0.0
    %3850 = vmatprep.subr.mxu0 0.0
    %3851 = vmatpush2.msra.mxu0 0.0
    %3852 = vmatprep.subr.mxu0 0.0
    %3853 = vmatpush2.msra.mxu0 0.0
    %3854 = vmatprep.subr.mxu0 0.0
    %3855 = vmatpush2.msra.mxu0 0.0
    %3856 = vmatprep.subr.mxu0 0.0
    %3857 = vmatpush2.msra.mxu0 0.0
    %3858 = vmatprep.subr.mxu0 0.0
    %3859 = vmatpush2.msra.mxu0 0.0
    %3860 = vmatprep.mubr.f32.mxu0 0.0
    %v3861 = vand.u32 %v3433, 4294901760
    %v3862 = vsub.f32 %v3433, %v3861
    %v3863 = vand.u32 %v3862, 4294901760
    %3864 = vmatmul.mubr.f32.gmra.mxu0 %v3863
    %v3865 = vpop.f32.mrf.mxu0
    %v3866 = vadd.f32 %v3777, %v3865
    %v3867 = vpop.f32.mrf.mxu0
    %3868 = vdwg.mxu0
    %3869 = vmatprep.subr.mxu0 0.0
    %v3870 = vand.u32 %v860, 4294901760
    %v3871 = vsub.f32 %v860, %v3870
    %v3872 = vand.u32 %v3871, 4294901760
    %3873 = vmatpush1.msra.mxu0 %v3872
    %3874 = vmatprep.subr.mxu0 0.0
    %v3875 = vand.u32 %v859, 4294901760
    %v3876 = vsub.f32 %v859, %v3875
    %v3877 = vand.u32 %v3876, 4294901760
    %3878 = vmatpush1.msra.mxu0 %v3877
    %3879 = vmatprep.subr.mxu0 0.0
    %v3880 = vand.u32 %v858, 4294901760
    %v3881 = vsub.f32 %v858, %v3880
    %v3882 = vand.u32 %v3881, 4294901760
    %3883 = vmatpush1.msra.mxu0 %v3882
    %3884 = vmatprep.subr.mxu0 0.0
    %v3885 = vand.u32 %v857, 4294901760
    %v3886 = vsub.f32 %v857, %v3885
    %v3887 = vand.u32 %v3886, 4294901760
    %3888 = vmatpush1.msra.mxu0 %v3887
    %3889 = vmatprep.subr.mxu0 0.0
    %v3890 = vand.u32 %v856, 4294901760
    %v3891 = vsub.f32 %v856, %v3890
    %v3892 = vand.u32 %v3891, 4294901760
    %3893 = vmatpush1.msra.mxu0 %v3892
    %3894 = vmatprep.subr.mxu0 0.0
    %v3895 = vand.u32 %v855, 4294901760
    %v3896 = vsub.f32 %v855, %v3895
    %v3897 = vand.u32 %v3896, 4294901760
    %3898 = vmatpush1.msra.mxu0 %v3897
    %3899 = vmatprep.subr.mxu0 0.0
    %v3900 = vand.u32 %v854, 4294901760
    %v3901 = vsub.f32 %v854, %v3900
    %v3902 = vand.u32 %v3901, 4294901760
    %3903 = vmatpush1.msra.mxu0 %v3902
    %3904 = vmatprep.subr.mxu0 0.0
    %v3905 = vand.u32 %v853, 4294901760
    %v3906 = vsub.f32 %v853, %v3905
    %v3907 = vand.u32 %v3906, 4294901760
    %3908 = vmatpush1.msra.mxu0 %v3907
    %3909 = vmatprep.subr.mxu0 0.0
    %v3910 = vand.u32 %v852, 4294901760
    %v3911 = vsub.f32 %v852, %v3910
    %v3912 = vand.u32 %v3911, 4294901760
    %3913 = vmatpush1.msra.mxu0 %v3912
    %3914 = vmatprep.subr.mxu0 0.0
    %v3915 = vand.u32 %v851, 4294901760
    %v3916 = vsub.f32 %v851, %v3915
    %v3917 = vand.u32 %v3916, 4294901760
    %3918 = vmatpush1.msra.mxu0 %v3917
    %3919 = vmatprep.subr.mxu0 0.0
    %v3920 = vand.u32 %v850, 4294901760
    %v3921 = vsub.f32 %v850, %v3920
    %v3922 = vand.u32 %v3921, 4294901760
    %3923 = vmatpush1.msra.mxu0 %v3922
    %3924 = vmatprep.subr.mxu0 0.0
    %v3925 = vand.u32 %v849, 4294901760
    %v3926 = vsub.f32 %v849, %v3925
    %v3927 = vand.u32 %v3926, 4294901760
    %3928 = vmatpush1.msra.mxu0 %v3927
    %3929 = vmatprep.subr.mxu0 0.0
    %v3930 = vand.u32 %v848, 4294901760
    %v3931 = vsub.f32 %v848, %v3930
    %v3932 = vand.u32 %v3931, 4294901760
    %3933 = vmatpush1.msra.mxu0 %v3932
    %3934 = vmatprep.subr.mxu0 0.0
    %v3935 = vand.u32 %v847, 4294901760
    %v3936 = vsub.f32 %v847, %v3935
    %v3937 = vand.u32 %v3936, 4294901760
    %3938 = vmatpush1.msra.mxu0 %v3937
    %3939 = vmatprep.subr.mxu0 0.0
    %v3940 = vand.u32 %v846, 4294901760
    %v3941 = vsub.f32 %v846, %v3940
    %v3942 = vand.u32 %v3941, 4294901760
    %3943 = vmatpush1.msra.mxu0 %v3942
    %3944 = vmatprep.subr.mxu0 0.0
    %v3945 = vand.u32 %v845, 4294901760
    %v3946 = vsub.f32 %v845, %v3945
    %v3947 = vand.u32 %v3946, 4294901760
    %3948 = vmatpush1.msra.mxu0 %v3947
    %3949 = vmatprep.subr.mxu0 0.0
    %3950 = vmatpush2.msra.mxu0 0.0
    %3951 = vmatprep.subr.mxu0 0.0
    %3952 = vmatpush2.msra.mxu0 0.0
    %3953 = vmatprep.subr.mxu0 0.0
    %3954 = vmatpush2.msra.mxu0 0.0
    %3955 = vmatprep.subr.mxu0 0.0
    %3956 = vmatpush2.msra.mxu0 0.0
    %3957 = vmatprep.subr.mxu0 0.0
    %3958 = vmatpush2.msra.mxu0 0.0
    %3959 = vmatprep.subr.mxu0 0.0
    %3960 = vmatpush2.msra.mxu0 0.0
    %3961 = vmatprep.subr.mxu0 0.0
    %3962 = vmatpush2.msra.mxu0 0.0
    %3963 = vmatprep.subr.mxu0 0.0
    %3964 = vmatpush2.msra.mxu0 0.0
    %3965 = vmatprep.subr.mxu0 0.0
    %3966 = vmatpush2.msra.mxu0 0.0
    %3967 = vmatprep.subr.mxu0 0.0
    %3968 = vmatpush2.msra.mxu0 0.0
    %3969 = vmatprep.subr.mxu0 0.0
    %3970 = vmatpush2.msra.mxu0 0.0
    %3971 = vmatprep.subr.mxu0 0.0
    %3972 = vmatpush2.msra.mxu0 0.0
    %3973 = vmatprep.subr.mxu0 0.0
    %3974 = vmatpush2.msra.mxu0 0.0
    %3975 = vmatprep.subr.mxu0 0.0
    %3976 = vmatpush2.msra.mxu0 0.0
    %3977 = vmatprep.subr.mxu0 0.0
    %3978 = vmatpush2.msra.mxu0 0.0
    %3979 = vmatprep.subr.mxu0 0.0
    %3980 = vmatpush2.msra.mxu0 0.0
    %3981 = vmatprep.mubr.f32.mxu0 0.0
    %v3982 = vand.u32 %v3433, 4294901760
    %3983 = vmatmul.mubr.f32.gmra.mxu0 %v3982
    %v3984 = vpop.f32.mrf.mxu0
    %v3985 = vadd.f32 %v3866, %v3984
    %v3986 = vpop.f32.mrf.mxu0
    %3987 = vdwg.mxu0
    %3988 = vmatprep.subr.mxu0 0.0
    %v3989 = vand.u32 %v860, 4294901760
    %3990 = vmatpush1.msra.mxu0 %v3989
    %3991 = vmatprep.subr.mxu0 0.0
    %v3992 = vand.u32 %v859, 4294901760
    %3993 = vmatpush1.msra.mxu0 %v3992
    %3994 = vmatprep.subr.mxu0 0.0
    %v3995 = vand.u32 %v858, 4294901760
    %3996 = vmatpush1.msra.mxu0 %v3995
    %3997 = vmatprep.subr.mxu0 0.0
    %v3998 = vand.u32 %v857, 4294901760
    %3999 = vmatpush1.msra.mxu0 %v3998
    %4000 = vmatprep.subr.mxu0 0.0
    %v4001 = vand.u32 %v856, 4294901760
    %4002 = vmatpush1.msra.mxu0 %v4001
    %4003 = vmatprep.subr.mxu0 0.0
    %v4004 = vand.u32 %v855, 4294901760
    %4005 = vmatpush1.msra.mxu0 %v4004
    %4006 = vmatprep.subr.mxu0 0.0
    %v4007 = vand.u32 %v854, 4294901760
    %4008 = vmatpush1.msra.mxu0 %v4007
    %4009 = vmatprep.subr.mxu0 0.0
    %v4010 = vand.u32 %v853, 4294901760
    %4011 = vmatpush1.msra.mxu0 %v4010
    %4012 = vmatprep.subr.mxu0 0.0
    %v4013 = vand.u32 %v852, 4294901760
    %4014 = vmatpush1.msra.mxu0 %v4013
    %4015 = vmatprep.subr.mxu0 0.0
    %v4016 = vand.u32 %v851, 4294901760
    %4017 = vmatpush1.msra.mxu0 %v4016
    %4018 = vmatprep.subr.mxu0 0.0
    %v4019 = vand.u32 %v850, 4294901760
    %4020 = vmatpush1.msra.mxu0 %v4019
    %4021 = vmatprep.subr.mxu0 0.0
    %v4022 = vand.u32 %v849, 4294901760
    %4023 = vmatpush1.msra.mxu0 %v4022
    %4024 = vmatprep.subr.mxu0 0.0
    %v4025 = vand.u32 %v848, 4294901760
    %4026 = vmatpush1.msra.mxu0 %v4025
    %4027 = vmatprep.subr.mxu0 0.0
    %v4028 = vand.u32 %v847, 4294901760
    %4029 = vmatpush1.msra.mxu0 %v4028
    %4030 = vmatprep.subr.mxu0 0.0
    %v4031 = vand.u32 %v846, 4294901760
    %4032 = vmatpush1.msra.mxu0 %v4031
    %4033 = vmatprep.subr.mxu0 0.0
    %v4034 = vand.u32 %v845, 4294901760
    %4035 = vmatpush1.msra.mxu0 %v4034
    %4036 = vmatprep.subr.mxu0 0.0
    %4037 = vmatpush2.msra.mxu0 0.0
    %4038 = vmatprep.subr.mxu0 0.0
    %4039 = vmatpush2.msra.mxu0 0.0
    %4040 = vmatprep.subr.mxu0 0.0
    %4041 = vmatpush2.msra.mxu0 0.0
    %4042 = vmatprep.subr.mxu0 0.0
    %4043 = vmatpush2.msra.mxu0 0.0
    %4044 = vmatprep.subr.mxu0 0.0
    %4045 = vmatpush2.msra.mxu0 0.0
    %4046 = vmatprep.subr.mxu0 0.0
    %4047 = vmatpush2.msra.mxu0 0.0
    %4048 = vmatprep.subr.mxu0 0.0
    %4049 = vmatpush2.msra.mxu0 0.0
    %4050 = vmatprep.subr.mxu0 0.0
    %4051 = vmatpush2.msra.mxu0 0.0
    %4052 = vmatprep.subr.mxu0 0.0
    %4053 = vmatpush2.msra.mxu0 0.0
    %4054 = vmatprep.subr.mxu0 0.0
    %4055 = vmatpush2.msra.mxu0 0.0
    %4056 = vmatprep.subr.mxu0 0.0
    %4057 = vmatpush2.msra.mxu0 0.0
    %4058 = vmatprep.subr.mxu0 0.0
    %4059 = vmatpush2.msra.mxu0 0.0
    %4060 = vmatprep.subr.mxu0 0.0
    %4061 = vmatpush2.msra.mxu0 0.0
    %4062 = vmatprep.subr.mxu0 0.0
    %4063 = vmatpush2.msra.mxu0 0.0
    %4064 = vmatprep.subr.mxu0 0.0
    %4065 = vmatpush2.msra.mxu0 0.0
    %4066 = vmatprep.subr.mxu0 0.0
    %4067 = vmatpush2.msra.mxu0 0.0
    %4068 = vmatprep.mubr.f32.mxu0 0.0
    %v4069 = vand.u32 %v3433, 4294901760
    %4070 = vmatmul.mubr.f32.gmra.mxu0 %v4069
    %v4071 = vpop.f32.mrf.mxu0
    %v4072 = vadd.f32 %v3985, %v4071
    %v4073 = vpop.f32.mrf.mxu0
    %4074 = vdwg.mxu0
    %v4075 = vadd.f32 %v830, %v4072
    %v4076 = vtanh.pop %v4075
    %4077 = vmatprep.subr.mxu0 0.0
    %v4078 = vand.u32 %v860, 4294901760
    %4079 = vmatpush1.msra.mxu0 %v4078
    %4080 = vmatprep.subr.mxu0 0.0
    %v4081 = vand.u32 %v859, 4294901760
    %4082 = vmatpush1.msra.mxu0 %v4081
    %4083 = vmatprep.subr.mxu0 0.0
    %v4084 = vand.u32 %v858, 4294901760
    %4085 = vmatpush1.msra.mxu0 %v4084
    %4086 = vmatprep.subr.mxu0 0.0
    %v4087 = vand.u32 %v857, 4294901760
    %4088 = vmatpush1.msra.mxu0 %v4087
    %4089 = vmatprep.subr.mxu0 0.0
    %v4090 = vand.u32 %v856, 4294901760
    %4091 = vmatpush1.msra.mxu0 %v4090
    %4092 = vmatprep.subr.mxu0 0.0
    %v4093 = vand.u32 %v855, 4294901760
    %4094 = vmatpush1.msra.mxu0 %v4093
    %4095 = vmatprep.subr.mxu0 0.0
    %v4096 = vand.u32 %v854, 4294901760
    %4097 = vmatpush1.msra.mxu0 %v4096
    %4098 = vmatprep.subr.mxu0 0.0
    %v4099 = vand.u32 %v853, 4294901760
    %4100 = vmatpush1.msra.mxu0 %v4099
    %4101 = vmatprep.subr.mxu0 0.0
    %v4102 = vand.u32 %v852, 4294901760
    %4103 = vmatpush1.msra.mxu0 %v4102
    %4104 = vmatprep.subr.mxu0 0.0
    %v4105 = vand.u32 %v851, 4294901760
    %4106 = vmatpush1.msra.mxu0 %v4105
    %4107 = vmatprep.subr.mxu0 0.0
    %v4108 = vand.u32 %v850, 4294901760
    %4109 = vmatpush1.msra.mxu0 %v4108
    %4110 = vmatprep.subr.mxu0 0.0
    %v4111 = vand.u32 %v849, 4294901760
    %4112 = vmatpush1.msra.mxu0 %v4111
    %4113 = vmatprep.subr.mxu0 0.0
    %v4114 = vand.u32 %v848, 4294901760
    %4115 = vmatpush1.msra.mxu0 %v4114
    %4116 = vmatprep.subr.mxu0 0.0
    %v4117 = vand.u32 %v847, 4294901760
    %4118 = vmatpush1.msra.mxu0 %v4117
    %4119 = vmatprep.subr.mxu0 0.0
    %v4120 = vand.u32 %v846, 4294901760
    %4121 = vmatpush1.msra.mxu0 %v4120
    %4122 = vmatprep.subr.mxu0 0.0
    %v4123 = vand.u32 %v845, 4294901760
    %4124 = vmatpush1.msra.mxu0 %v4123
    %4125 = vmatprep.subr.mxu0 0.0
    %4126 = vmatpush2.msra.mxu0 0.0
    %4127 = vmatprep.subr.mxu0 0.0
    %4128 = vmatpush2.msra.mxu0 0.0
    %4129 = vmatprep.subr.mxu0 0.0
    %4130 = vmatpush2.msra.mxu0 0.0
    %4131 = vmatprep.subr.mxu0 0.0
    %4132 = vmatpush2.msra.mxu0 0.0
    %4133 = vmatprep.subr.mxu0 0.0
    %4134 = vmatpush2.msra.mxu0 0.0
    %4135 = vmatprep.subr.mxu0 0.0
    %4136 = vmatpush2.msra.mxu0 0.0
    %4137 = vmatprep.subr.mxu0 0.0
    %4138 = vmatpush2.msra.mxu0 0.0
    %4139 = vmatprep.subr.mxu0 0.0
    %4140 = vmatpush2.msra.mxu0 0.0
    %4141 = vmatprep.subr.mxu0 0.0
    %4142 = vmatpush2.msra.mxu0 0.0
    %4143 = vmatprep.subr.mxu0 0.0
    %4144 = vmatpush2.msra.mxu0 0.0
    %4145 = vmatprep.subr.mxu0 0.0
    %4146 = vmatpush2.msra.mxu0 0.0
    %4147 = vmatprep.subr.mxu0 0.0
    %4148 = vmatpush2.msra.mxu0 0.0
    %4149 = vmatprep.subr.mxu0 0.0
    %4150 = vmatpush2.msra.mxu0 0.0
    %4151 = vmatprep.subr.mxu0 0.0
    %4152 = vmatpush2.msra.mxu0 0.0
    %4153 = vmatprep.subr.mxu0 0.0
    %4154 = vmatpush2.msra.mxu0 0.0
    %4155 = vmatprep.subr.mxu0 0.0
    %4156 = vmatpush2.msra.mxu0 0.0
    %4157 = vmatprep.mubr.f32.mxu0 0.0
    %v4158 = vand.u32 %v4076, 4294901760
    %v4159 = vsub.f32 %v4076, %v4158
    %v4160 = vand.u32 %v4159, 4294901760
    %v4161 = vsub.f32 %v4159, %v4160
    %v4162 = vand.u32 %v4161, 4294901760
    %4163 = vmatmul.mubr.f32.gmra.mxu0 %v4162
    %v4164 = vpop.f32.mrf.mxu0
    %v4165 = vadd.f32 0.0, %v4164
    %v4166 = vpop.f32.mrf.mxu0
    %4167 = vdwg.mxu0
    %4168 = vmatprep.subr.mxu0 0.0
    %v4169 = vand.u32 %v860, 4294901760
    %v4170 = vsub.f32 %v860, %v4169
    %v4171 = vand.u32 %v4170, 4294901760
    %v4172 = vsub.f32 %v4170, %v4171
    %v4173 = vand.u32 %v4172, 4294901760
    %4174 = vmatpush1.msra.mxu0 %v4173
    %4175 = vmatprep.subr.mxu0 0.0
    %v4176 = vand.u32 %v859, 4294901760
    %v4177 = vsub.f32 %v859, %v4176
    %v4178 = vand.u32 %v4177, 4294901760
    %v4179 = vsub.f32 %v4177, %v4178
    %v4180 = vand.u32 %v4179, 4294901760
    %4181 = vmatpush1.msra.mxu0 %v4180
    %4182 = vmatprep.subr.mxu0 0.0
    %v4183 = vand.u32 %v858, 4294901760
    %v4184 = vsub.f32 %v858, %v4183
    %v4185 = vand.u32 %v4184, 4294901760
    %v4186 = vsub.f32 %v4184, %v4185
    %v4187 = vand.u32 %v4186, 4294901760
    %4188 = vmatpush1.msra.mxu0 %v4187
    %4189 = vmatprep.subr.mxu0 0.0
    %v4190 = vand.u32 %v857, 4294901760
    %v4191 = vsub.f32 %v857, %v4190
    %v4192 = vand.u32 %v4191, 4294901760
    %v4193 = vsub.f32 %v4191, %v4192
    %v4194 = vand.u32 %v4193, 4294901760
    %4195 = vmatpush1.msra.mxu0 %v4194
    %4196 = vmatprep.subr.mxu0 0.0
    %v4197 = vand.u32 %v856, 4294901760
    %v4198 = vsub.f32 %v856, %v4197
    %v4199 = vand.u32 %v4198, 4294901760
    %v4200 = vsub.f32 %v4198, %v4199
    %v4201 = vand.u32 %v4200, 4294901760
    %4202 = vmatpush1.msra.mxu0 %v4201
    %4203 = vmatprep.subr.mxu0 0.0
    %v4204 = vand.u32 %v855, 4294901760
    %v4205 = vsub.f32 %v855, %v4204
    %v4206 = vand.u32 %v4205, 4294901760
    %v4207 = vsub.f32 %v4205, %v4206
    %v4208 = vand.u32 %v4207, 4294901760
    %4209 = vmatpush1.msra.mxu0 %v4208
    %4210 = vmatprep.subr.mxu0 0.0
    %v4211 = vand.u32 %v854, 4294901760
    %v4212 = vsub.f32 %v854, %v4211
    %v4213 = vand.u32 %v4212, 4294901760
    %v4214 = vsub.f32 %v4212, %v4213
    %v4215 = vand.u32 %v4214, 4294901760
    %4216 = vmatpush1.msra.mxu0 %v4215
    %4217 = vmatprep.subr.mxu0 0.0
    %v4218 = vand.u32 %v853, 4294901760
    %v4219 = vsub.f32 %v853, %v4218
    %v4220 = vand.u32 %v4219, 4294901760
    %v4221 = vsub.f32 %v4219, %v4220
    %v4222 = vand.u32 %v4221, 4294901760
    %4223 = vmatpush1.msra.mxu0 %v4222
    %4224 = vmatprep.subr.mxu0 0.0
    %v4225 = vand.u32 %v852, 4294901760
    %v4226 = vsub.f32 %v852, %v4225
    %v4227 = vand.u32 %v4226, 4294901760
    %v4228 = vsub.f32 %v4226, %v4227
    %v4229 = vand.u32 %v4228, 4294901760
    %4230 = vmatpush1.msra.mxu0 %v4229
    %4231 = vmatprep.subr.mxu0 0.0
    %v4232 = vand.u32 %v851, 4294901760
    %v4233 = vsub.f32 %v851, %v4232
    %v4234 = vand.u32 %v4233, 4294901760
    %v4235 = vsub.f32 %v4233, %v4234
    %v4236 = vand.u32 %v4235, 4294901760
    %4237 = vmatpush1.msra.mxu0 %v4236
    %4238 = vmatprep.subr.mxu0 0.0
    %v4239 = vand.u32 %v850, 4294901760
    %v4240 = vsub.f32 %v850, %v4239
    %v4241 = vand.u32 %v4240, 4294901760
    %v4242 = vsub.f32 %v4240, %v4241
    %v4243 = vand.u32 %v4242, 4294901760
    %4244 = vmatpush1.msra.mxu0 %v4243
    %4245 = vmatprep.subr.mxu0 0.0
    %v4246 = vand.u32 %v849, 4294901760
    %v4247 = vsub.f32 %v849, %v4246
    %v4248 = vand.u32 %v4247, 4294901760
    %v4249 = vsub.f32 %v4247, %v4248
    %v4250 = vand.u32 %v4249, 4294901760
    %4251 = vmatpush1.msra.mxu0 %v4250
    %4252 = vmatprep.subr.mxu0 0.0
    %v4253 = vand.u32 %v848, 4294901760
    %v4254 = vsub.f32 %v848, %v4253
    %v4255 = vand.u32 %v4254, 4294901760
    %v4256 = vsub.f32 %v4254, %v4255
    %v4257 = vand.u32 %v4256, 4294901760
    %4258 = vmatpush1.msra.mxu0 %v4257
    %4259 = vmatprep.subr.mxu0 0.0
    %v4260 = vand.u32 %v847, 4294901760
    %v4261 = vsub.f32 %v847, %v4260
    %v4262 = vand.u32 %v4261, 4294901760
    %v4263 = vsub.f32 %v4261, %v4262
    %v4264 = vand.u32 %v4263, 4294901760
    %4265 = vmatpush1.msra.mxu0 %v4264
    %4266 = vmatprep.subr.mxu0 0.0
    %v4267 = vand.u32 %v846, 4294901760
    %v4268 = vsub.f32 %v846, %v4267
    %v4269 = vand.u32 %v4268, 4294901760
    %v4270 = vsub.f32 %v4268, %v4269
    %v4271 = vand.u32 %v4270, 4294901760
    %4272 = vmatpush1.msra.mxu0 %v4271
    %4273 = vmatprep.subr.mxu0 0.0
    %v4274 = vand.u32 %v845, 4294901760
    %v4275 = vsub.f32 %v845, %v4274
    %v4276 = vand.u32 %v4275, 4294901760
    %v4277 = vsub.f32 %v4275, %v4276
    %v4278 = vand.u32 %v4277, 4294901760
    %4279 = vmatpush1.msra.mxu0 %v4278
    %4280 = vmatprep.subr.mxu0 0.0
    %4281 = vmatpush2.msra.mxu0 0.0
    %4282 = vmatprep.subr.mxu0 0.0
    %4283 = vmatpush2.msra.mxu0 0.0
    %4284 = vmatprep.subr.mxu0 0.0
    %4285 = vmatpush2.msra.mxu0 0.0
    %4286 = vmatprep.subr.mxu0 0.0
    %4287 = vmatpush2.msra.mxu0 0.0
    %4288 = vmatprep.subr.mxu0 0.0
    %4289 = vmatpush2.msra.mxu0 0.0
    %4290 = vmatprep.subr.mxu0 0.0
    %4291 = vmatpush2.msra.mxu0 0.0
    %4292 = vmatprep.subr.mxu0 0.0
    %4293 = vmatpush2.msra.mxu0 0.0
    %4294 = vmatprep.subr.mxu0 0.0
    %4295 = vmatpush2.msra.mxu0 0.0
    %4296 = vmatprep.subr.mxu0 0.0
    %4297 = vmatpush2.msra.mxu0 0.0
    %4298 = vmatprep.subr.mxu0 0.0
    %4299 = vmatpush2.msra.mxu0 0.0
    %4300 = vmatprep.subr.mxu0 0.0
    %4301 = vmatpush2.msra.mxu0 0.0
    %4302 = vmatprep.subr.mxu0 0.0
    %4303 = vmatpush2.msra.mxu0 0.0
    %4304 = vmatprep.subr.mxu0 0.0
    %4305 = vmatpush2.msra.mxu0 0.0
    %4306 = vmatprep.subr.mxu0 0.0
    %4307 = vmatpush2.msra.mxu0 0.0
    %4308 = vmatprep.subr.mxu0 0.0
    %4309 = vmatpush2.msra.mxu0 0.0
    %4310 = vmatprep.subr.mxu0 0.0
    %4311 = vmatpush2.msra.mxu0 0.0
    %4312 = vmatprep.mubr.f32.mxu0 0.0
    %v4313 = vand.u32 %v4076, 4294901760
    %4314 = vmatmul.mubr.f32.gmra.mxu0 %v4313
    %v4315 = vpop.f32.mrf.mxu0
    %v4316 = vadd.f32 %v4165, %v4315
    %v4317 = vpop.f32.mrf.mxu0
    %4318 = vdwg.mxu0
    %4319 = vmatprep.subr.mxu0 0.0
    %v4320 = vand.u32 %v860, 4294901760
    %v4321 = vsub.f32 %v860, %v4320
    %4322 = vmatpush1.msra.mxu0 %v4321
    %4323 = vmatprep.subr.mxu0 0.0
    %v4324 = vand.u32 %v859, 4294901760
    %v4325 = vsub.f32 %v859, %v4324
    %4326 = vmatpush1.msra.mxu0 %v4325
    %4327 = vmatprep.subr.mxu0 0.0
    %v4328 = vand.u32 %v858, 4294901760
    %v4329 = vsub.f32 %v858, %v4328
    %4330 = vmatpush1.msra.mxu0 %v4329
    %4331 = vmatprep.subr.mxu0 0.0
    %v4332 = vand.u32 %v857, 4294901760
    %v4333 = vsub.f32 %v857, %v4332
    %4334 = vmatpush1.msra.mxu0 %v4333
    %4335 = vmatprep.subr.mxu0 0.0
    %v4336 = vand.u32 %v856, 4294901760
    %v4337 = vsub.f32 %v856, %v4336
    %4338 = vmatpush1.msra.mxu0 %v4337
    %4339 = vmatprep.subr.mxu0 0.0
    %v4340 = vand.u32 %v855, 4294901760
    %v4341 = vsub.f32 %v855, %v4340
    %4342 = vmatpush1.msra.mxu0 %v4341
    %4343 = vmatprep.subr.mxu0 0.0
    %v4344 = vand.u32 %v854, 4294901760
    %v4345 = vsub.f32 %v854, %v4344
    %4346 = vmatpush1.msra.mxu0 %v4345
    %4347 = vmatprep.subr.mxu0 0.0
    %v4348 = vand.u32 %v853, 4294901760
    %v4349 = vsub.f32 %v853, %v4348
    %4350 = vmatpush1.msra.mxu0 %v4349
    %4351 = vmatprep.subr.mxu0 0.0
    %v4352 = vand.u32 %v852, 4294901760
    %v4353 = vsub.f32 %v852, %v4352
    %4354 = vmatpush1.msra.mxu0 %v4353
    %4355 = vmatprep.subr.mxu0 0.0
    %v4356 = vand.u32 %v851, 4294901760
    %v4357 = vsub.f32 %v851, %v4356
    %4358 = vmatpush1.msra.mxu0 %v4357
    %4359 = vmatprep.subr.mxu0 0.0
    %v4360 = vand.u32 %v850, 4294901760
    %v4361 = vsub.f32 %v850, %v4360
    %4362 = vmatpush1.msra.mxu0 %v4361
    %4363 = vmatprep.subr.mxu0 0.0
    %v4364 = vand.u32 %v849, 4294901760
    %v4365 = vsub.f32 %v849, %v4364
    %4366 = vmatpush1.msra.mxu0 %v4365
    %4367 = vmatprep.subr.mxu0 0.0
    %v4368 = vand.u32 %v848, 4294901760
    %v4369 = vsub.f32 %v848, %v4368
    %4370 = vmatpush1.msra.mxu0 %v4369
    %4371 = vmatprep.subr.mxu0 0.0
    %v4372 = vand.u32 %v847, 4294901760
    %v4373 = vsub.f32 %v847, %v4372
    %4374 = vmatpush1.msra.mxu0 %v4373
    %4375 = vmatprep.subr.mxu0 0.0
    %v4376 = vand.u32 %v846, 4294901760
    %v4377 = vsub.f32 %v846, %v4376
    %4378 = vmatpush1.msra.mxu0 %v4377
    %4379 = vmatprep.subr.mxu0 0.0
    %v4380 = vand.u32 %v845, 4294901760
    %v4381 = vsub.f32 %v845, %v4380
    %4382 = vmatpush1.msra.mxu0 %v4381
    %4383 = vmatprep.subr.mxu0 0.0
    %4384 = vmatpush2.msra.mxu0 0.0
    %4385 = vmatprep.subr.mxu0 0.0
    %4386 = vmatpush2.msra.mxu0 0.0
    %4387 = vmatprep.subr.mxu0 0.0
    %4388 = vmatpush2.msra.mxu0 0.0
    %4389 = vmatprep.subr.mxu0 0.0
    %4390 = vmatpush2.msra.mxu0 0.0
    %4391 = vmatprep.subr.mxu0 0.0
    %4392 = vmatpush2.msra.mxu0 0.0
    %4393 = vmatprep.subr.mxu0 0.0
    %4394 = vmatpush2.msra.mxu0 0.0
    %4395 = vmatprep.subr.mxu0 0.0
    %4396 = vmatpush2.msra.mxu0 0.0
    %4397 = vmatprep.subr.mxu0 0.0
    %4398 = vmatpush2.msra.mxu0 0.0
    %4399 = vmatprep.subr.mxu0 0.0
    %4400 = vmatpush2.msra.mxu0 0.0
    %4401 = vmatprep.subr.mxu0 0.0
    %4402 = vmatpush2.msra.mxu0 0.0
    %4403 = vmatprep.subr.mxu0 0.0
    %4404 = vmatpush2.msra.mxu0 0.0
    %4405 = vmatprep.subr.mxu0 0.0
    %4406 = vmatpush2.msra.mxu0 0.0
    %4407 = vmatprep.subr.mxu0 0.0
    %4408 = vmatpush2.msra.mxu0 0.0
    %4409 = vmatprep.subr.mxu0 0.0
    %4410 = vmatpush2.msra.mxu0 0.0
    %4411 = vmatprep.subr.mxu0 0.0
    %4412 = vmatpush2.msra.mxu0 0.0
    %4413 = vmatprep.subr.mxu0 0.0
    %4414 = vmatpush2.msra.mxu0 0.0
    %4415 = vmatprep.mubr.f32.mxu0 0.0
    %v4416 = vand.u32 %v4076, 4294901760
    %v4417 = vsub.f32 %v4076, %v4416
    %4418 = vmatmul.mubr.f32.gmra.mxu0 %v4417
    %v4419 = vpop.f32.mrf.mxu0
    %v4420 = vadd.f32 %v4316, %v4419
    %v4421 = vpop.f32.mrf.mxu0
    %4422 = vdwg.mxu0
    %4423 = vmatprep.subr.mxu0 0.0
    %v4424 = vand.u32 %v860, 4294901760
    %4425 = vmatpush1.msra.mxu0 %v4424
    %4426 = vmatprep.subr.mxu0 0.0
    %v4427 = vand.u32 %v859, 4294901760
    %4428 = vmatpush1.msra.mxu0 %v4427
    %4429 = vmatprep.subr.mxu0 0.0
    %v4430 = vand.u32 %v858, 4294901760
    %4431 = vmatpush1.msra.mxu0 %v4430
    %4432 = vmatprep.subr.mxu0 0.0
    %v4433 = vand.u32 %v857, 4294901760
    %4434 = vmatpush1.msra.mxu0 %v4433
    %4435 = vmatprep.subr.mxu0 0.0
    %v4436 = vand.u32 %v856, 4294901760
    %4437 = vmatpush1.msra.mxu0 %v4436
    %4438 = vmatprep.subr.mxu0 0.0
    %v4439 = vand.u32 %v855, 4294901760
    %4440 = vmatpush1.msra.mxu0 %v4439
    %4441 = vmatprep.subr.mxu0 0.0
    %v4442 = vand.u32 %v854, 4294901760
    %4443 = vmatpush1.msra.mxu0 %v4442
    %4444 = vmatprep.subr.mxu0 0.0
    %v4445 = vand.u32 %v853, 4294901760
    %4446 = vmatpush1.msra.mxu0 %v4445
    %4447 = vmatprep.subr.mxu0 0.0
    %v4448 = vand.u32 %v852, 4294901760
    %4449 = vmatpush1.msra.mxu0 %v4448
    %4450 = vmatprep.subr.mxu0 0.0
    %v4451 = vand.u32 %v851, 4294901760
    %4452 = vmatpush1.msra.mxu0 %v4451
    %4453 = vmatprep.subr.mxu0 0.0
    %v4454 = vand.u32 %v850, 4294901760
    %4455 = vmatpush1.msra.mxu0 %v4454
    %4456 = vmatprep.subr.mxu0 0.0
    %v4457 = vand.u32 %v849, 4294901760
    %4458 = vmatpush1.msra.mxu0 %v4457
    %4459 = vmatprep.subr.mxu0 0.0
    %v4460 = vand.u32 %v848, 4294901760
    %4461 = vmatpush1.msra.mxu0 %v4460
    %4462 = vmatprep.subr.mxu0 0.0
    %v4463 = vand.u32 %v847, 4294901760
    %4464 = vmatpush1.msra.mxu0 %v4463
    %4465 = vmatprep.subr.mxu0 0.0
    %v4466 = vand.u32 %v846, 4294901760
    %4467 = vmatpush1.msra.mxu0 %v4466
    %4468 = vmatprep.subr.mxu0 0.0
    %v4469 = vand.u32 %v845, 4294901760
    %4470 = vmatpush1.msra.mxu0 %v4469
    %4471 = vmatprep.subr.mxu0 0.0
    %4472 = vmatpush2.msra.mxu0 0.0
    %4473 = vmatprep.subr.mxu0 0.0
    %4474 = vmatpush2.msra.mxu0 0.0
    %4475 = vmatprep.subr.mxu0 0.0
    %4476 = vmatpush2.msra.mxu0 0.0
    %4477 = vmatprep.subr.mxu0 0.0
    %4478 = vmatpush2.msra.mxu0 0.0
    %4479 = vmatprep.subr.mxu0 0.0
    %4480 = vmatpush2.msra.mxu0 0.0
    %4481 = vmatprep.subr.mxu0 0.0
    %4482 = vmatpush2.msra.mxu0 0.0
    %4483 = vmatprep.subr.mxu0 0.0
    %4484 = vmatpush2.msra.mxu0 0.0
    %4485 = vmatprep.subr.mxu0 0.0
    %4486 = vmatpush2.msra.mxu0 0.0
    %4487 = vmatprep.subr.mxu0 0.0
    %4488 = vmatpush2.msra.mxu0 0.0
    %4489 = vmatprep.subr.mxu0 0.0
    %4490 = vmatpush2.msra.mxu0 0.0
    %4491 = vmatprep.subr.mxu0 0.0
    %4492 = vmatpush2.msra.mxu0 0.0
    %4493 = vmatprep.subr.mxu0 0.0
    %4494 = vmatpush2.msra.mxu0 0.0
    %4495 = vmatprep.subr.mxu0 0.0
    %4496 = vmatpush2.msra.mxu0 0.0
    %4497 = vmatprep.subr.mxu0 0.0
    %4498 = vmatpush2.msra.mxu0 0.0
    %4499 = vmatprep.subr.mxu0 0.0
    %4500 = vmatpush2.msra.mxu0 0.0
    %4501 = vmatprep.subr.mxu0 0.0
    %4502 = vmatpush2.msra.mxu0 0.0
    %4503 = vmatprep.mubr.f32.mxu0 0.0
    %v4504 = vand.u32 %v4076, 4294901760
    %v4505 = vsub.f32 %v4076, %v4504
    %v4506 = vand.u32 %v4505, 4294901760
    %4507 = vmatmul.mubr.f32.gmra.mxu0 %v4506
    %v4508 = vpop.f32.mrf.mxu0
    %v4509 = vadd.f32 %v4420, %v4508
    %v4510 = vpop.f32.mrf.mxu0
    %4511 = vdwg.mxu0
    %4512 = vmatprep.subr.mxu0 0.0
    %v4513 = vand.u32 %v860, 4294901760
    %v4514 = vsub.f32 %v860, %v4513
    %v4515 = vand.u32 %v4514, 4294901760
    %4516 = vmatpush1.msra.mxu0 %v4515
    %4517 = vmatprep.subr.mxu0 0.0
    %v4518 = vand.u32 %v859, 4294901760
    %v4519 = vsub.f32 %v859, %v4518
    %v4520 = vand.u32 %v4519, 4294901760
    %4521 = vmatpush1.msra.mxu0 %v4520
    %4522 = vmatprep.subr.mxu0 0.0
    %v4523 = vand.u32 %v858, 4294901760
    %v4524 = vsub.f32 %v858, %v4523
    %v4525 = vand.u32 %v4524, 4294901760
    %4526 = vmatpush1.msra.mxu0 %v4525
    %4527 = vmatprep.subr.mxu0 0.0
    %v4528 = vand.u32 %v857, 4294901760
    %v4529 = vsub.f32 %v857, %v4528
    %v4530 = vand.u32 %v4529, 4294901760
    %4531 = vmatpush1.msra.mxu0 %v4530
    %4532 = vmatprep.subr.mxu0 0.0
    %v4533 = vand.u32 %v856, 4294901760
    %v4534 = vsub.f32 %v856, %v4533
    %v4535 = vand.u32 %v4534, 4294901760
    %4536 = vmatpush1.msra.mxu0 %v4535
    %4537 = vmatprep.subr.mxu0 0.0
    %v4538 = vand.u32 %v855, 4294901760
    %v4539 = vsub.f32 %v855, %v4538
    %v4540 = vand.u32 %v4539, 4294901760
    %4541 = vmatpush1.msra.mxu0 %v4540
    %4542 = vmatprep.subr.mxu0 0.0
    %v4543 = vand.u32 %v854, 4294901760
    %v4544 = vsub.f32 %v854, %v4543
    %v4545 = vand.u32 %v4544, 4294901760
    %4546 = vmatpush1.msra.mxu0 %v4545
    %4547 = vmatprep.subr.mxu0 0.0
    %v4548 = vand.u32 %v853, 4294901760
    %v4549 = vsub.f32 %v853, %v4548
    %v4550 = vand.u32 %v4549, 4294901760
    %4551 = vmatpush1.msra.mxu0 %v4550
    %4552 = vmatprep.subr.mxu0 0.0
    %v4553 = vand.u32 %v852, 4294901760
    %v4554 = vsub.f32 %v852, %v4553
    %v4555 = vand.u32 %v4554, 4294901760
    %4556 = vmatpush1.msra.mxu0 %v4555
    %4557 = vmatprep.subr.mxu0 0.0
    %v4558 = vand.u32 %v851, 4294901760
    %v4559 = vsub.f32 %v851, %v4558
    %v4560 = vand.u32 %v4559, 4294901760
    %4561 = vmatpush1.msra.mxu0 %v4560
    %4562 = vmatprep.subr.mxu0 0.0
    %v4563 = vand.u32 %v850, 4294901760
    %v4564 = vsub.f32 %v850, %v4563
    %v4565 = vand.u32 %v4564, 4294901760
    %4566 = vmatpush1.msra.mxu0 %v4565
    %4567 = vmatprep.subr.mxu0 0.0
    %v4568 = vand.u32 %v849, 4294901760
    %v4569 = vsub.f32 %v849, %v4568
    %v4570 = vand.u32 %v4569, 4294901760
    %4571 = vmatpush1.msra.mxu0 %v4570
    %4572 = vmatprep.subr.mxu0 0.0
    %v4573 = vand.u32 %v848, 4294901760
    %v4574 = vsub.f32 %v848, %v4573
    %v4575 = vand.u32 %v4574, 4294901760
    %4576 = vmatpush1.msra.mxu0 %v4575
    %4577 = vmatprep.subr.mxu0 0.0
    %v4578 = vand.u32 %v847, 4294901760
    %v4579 = vsub.f32 %v847, %v4578
    %v4580 = vand.u32 %v4579, 4294901760
    %4581 = vmatpush1.msra.mxu0 %v4580
    %4582 = vmatprep.subr.mxu0 0.0
    %v4583 = vand.u32 %v846, 4294901760
    %v4584 = vsub.f32 %v846, %v4583
    %v4585 = vand.u32 %v4584, 4294901760
    %4586 = vmatpush1.msra.mxu0 %v4585
    %4587 = vmatprep.subr.mxu0 0.0
    %v4588 = vand.u32 %v845, 4294901760
    %v4589 = vsub.f32 %v845, %v4588
    %v4590 = vand.u32 %v4589, 4294901760
    %4591 = vmatpush1.msra.mxu0 %v4590
    %4592 = vmatprep.subr.mxu0 0.0
    %4593 = vmatpush2.msra.mxu0 0.0
    %4594 = vmatprep.subr.mxu0 0.0
    %4595 = vmatpush2.msra.mxu0 0.0
    %4596 = vmatprep.subr.mxu0 0.0
    %4597 = vmatpush2.msra.mxu0 0.0
    %4598 = vmatprep.subr.mxu0 0.0
    %4599 = vmatpush2.msra.mxu0 0.0
    %4600 = vmatprep.subr.mxu0 0.0
    %4601 = vmatpush2.msra.mxu0 0.0
    %4602 = vmatprep.subr.mxu0 0.0
    %4603 = vmatpush2.msra.mxu0 0.0
    %4604 = vmatprep.subr.mxu0 0.0
    %4605 = vmatpush2.msra.mxu0 0.0
    %4606 = vmatprep.subr.mxu0 0.0
    %4607 = vmatpush2.msra.mxu0 0.0
    %4608 = vmatprep.subr.mxu0 0.0
    %4609 = vmatpush2.msra.mxu0 0.0
    %4610 = vmatprep.subr.mxu0 0.0
    %4611 = vmatpush2.msra.mxu0 0.0
    %4612 = vmatprep.subr.mxu0 0.0
    %4613 = vmatpush2.msra.mxu0 0.0
    %4614 = vmatprep.subr.mxu0 0.0
    %4615 = vmatpush2.msra.mxu0 0.0
    %4616 = vmatprep.subr.mxu0 0.0
    %4617 = vmatpush2.msra.mxu0 0.0
    %4618 = vmatprep.subr.mxu0 0.0
    %4619 = vmatpush2.msra.mxu0 0.0
    %4620 = vmatprep.subr.mxu0 0.0
    %4621 = vmatpush2.msra.mxu0 0.0
    %4622 = vmatprep.subr.mxu0 0.0
    %4623 = vmatpush2.msra.mxu0 0.0
    %4624 = vmatprep.mubr.f32.mxu0 0.0
    %v4625 = vand.u32 %v4076, 4294901760
    %4626 = vmatmul.mubr.f32.gmra.mxu0 %v4625
    %v4627 = vpop.f32.mrf.mxu0
    %v4628 = vadd.f32 %v4509, %v4627
    %v4629 = vpop.f32.mrf.mxu0
    %4630 = vdwg.mxu0
    %4631 = vmatprep.subr.mxu0 0.0
    %v4632 = vand.u32 %v860, 4294901760
    %4633 = vmatpush1.msra.mxu0 %v4632
    %4634 = vmatprep.subr.mxu0 0.0
    %v4635 = vand.u32 %v859, 4294901760
    %4636 = vmatpush1.msra.mxu0 %v4635
    %4637 = vmatprep.subr.mxu0 0.0
    %v4638 = vand.u32 %v858, 4294901760
    %4639 = vmatpush1.msra.mxu0 %v4638
    %4640 = vmatprep.subr.mxu0 0.0
    %v4641 = vand.u32 %v857, 4294901760
    %4642 = vmatpush1.msra.mxu0 %v4641
    %4643 = vmatprep.subr.mxu0 0.0
    %v4644 = vand.u32 %v856, 4294901760
    %4645 = vmatpush1.msra.mxu0 %v4644
    %4646 = vmatprep.subr.mxu0 0.0
    %v4647 = vand.u32 %v855, 4294901760
    %4648 = vmatpush1.msra.mxu0 %v4647
    %4649 = vmatprep.subr.mxu0 0.0
    %v4650 = vand.u32 %v854, 4294901760
    %4651 = vmatpush1.msra.mxu0 %v4650
    %4652 = vmatprep.subr.mxu0 0.0
    %v4653 = vand.u32 %v853, 4294901760
    %4654 = vmatpush1.msra.mxu0 %v4653
    %4655 = vmatprep.subr.mxu0 0.0
    %v4656 = vand.u32 %v852, 4294901760
    %4657 = vmatpush1.msra.mxu0 %v4656
    %4658 = vmatprep.subr.mxu0 0.0
    %v4659 = vand.u32 %v851, 4294901760
    %4660 = vmatpush1.msra.mxu0 %v4659
    %4661 = vmatprep.subr.mxu0 0.0
    %v4662 = vand.u32 %v850, 4294901760
    %4663 = vmatpush1.msra.mxu0 %v4662
    %4664 = vmatprep.subr.mxu0 0.0
    %v4665 = vand.u32 %v849, 4294901760
    %4666 = vmatpush1.msra.mxu0 %v4665
    %4667 = vmatprep.subr.mxu0 0.0
    %v4668 = vand.u32 %v848, 4294901760
    %4669 = vmatpush1.msra.mxu0 %v4668
    %4670 = vmatprep.subr.mxu0 0.0
    %v4671 = vand.u32 %v847, 4294901760
    %4672 = vmatpush1.msra.mxu0 %v4671
    %4673 = vmatprep.subr.mxu0 0.0
    %v4674 = vand.u32 %v846, 4294901760
    %4675 = vmatpush1.msra.mxu0 %v4674
    %4676 = vmatprep.subr.mxu0 0.0
    %v4677 = vand.u32 %v845, 4294901760
    %4678 = vmatpush1.msra.mxu0 %v4677
    %4679 = vmatprep.subr.mxu0 0.0
    %4680 = vmatpush2.msra.mxu0 0.0
    %4681 = vmatprep.subr.mxu0 0.0
    %4682 = vmatpush2.msra.mxu0 0.0
    %4683 = vmatprep.subr.mxu0 0.0
    %4684 = vmatpush2.msra.mxu0 0.0
    %4685 = vmatprep.subr.mxu0 0.0
    %4686 = vmatpush2.msra.mxu0 0.0
    %4687 = vmatprep.subr.mxu0 0.0
    %4688 = vmatpush2.msra.mxu0 0.0
    %4689 = vmatprep.subr.mxu0 0.0
    %4690 = vmatpush2.msra.mxu0 0.0
    %4691 = vmatprep.subr.mxu0 0.0
    %4692 = vmatpush2.msra.mxu0 0.0
    %4693 = vmatprep.subr.mxu0 0.0
    %4694 = vmatpush2.msra.mxu0 0.0
    %4695 = vmatprep.subr.mxu0 0.0
    %4696 = vmatpush2.msra.mxu0 0.0
    %4697 = vmatprep.subr.mxu0 0.0
    %4698 = vmatpush2.msra.mxu0 0.0
    %4699 = vmatprep.subr.mxu0 0.0
    %4700 = vmatpush2.msra.mxu0 0.0
    %4701 = vmatprep.subr.mxu0 0.0
    %4702 = vmatpush2.msra.mxu0 0.0
    %4703 = vmatprep.subr.mxu0 0.0
    %4704 = vmatpush2.msra.mxu0 0.0
    %4705 = vmatprep.subr.mxu0 0.0
    %4706 = vmatpush2.msra.mxu0 0.0
    %4707 = vmatprep.subr.mxu0 0.0
    %4708 = vmatpush2.msra.mxu0 0.0
    %4709 = vmatprep.subr.mxu0 0.0
    %4710 = vmatpush2.msra.mxu0 0.0
    %4711 = vmatprep.mubr.f32.mxu0 0.0
    %v4712 = vand.u32 %v4076, 4294901760
    %4713 = vmatmul.mubr.f32.gmra.mxu0 %v4712
    %v4714 = vpop.f32.mrf.mxu0
    %v4715 = vadd.f32 %v4628, %v4714
    %v4716 = vpop.f32.mrf.mxu0
    %4717 = vdwg.mxu0
    %v4718 = vadd.f32 %v836, %v4715
    %v4719 = vtanh.pop %v4718
    %4720 = vmatprep.subr.mxu0 0.0
    %v4721 = vand.u32 %v860, 4294901760
    %4722 = vmatpush1.msra.mxu0 %v4721
    %4723 = vmatprep.subr.mxu0 0.0
    %v4724 = vand.u32 %v859, 4294901760
    %4725 = vmatpush1.msra.mxu0 %v4724
    %4726 = vmatprep.subr.mxu0 0.0
    %v4727 = vand.u32 %v858, 4294901760
    %4728 = vmatpush1.msra.mxu0 %v4727
    %4729 = vmatprep.subr.mxu0 0.0
    %v4730 = vand.u32 %v857, 4294901760
    %4731 = vmatpush1.msra.mxu0 %v4730
    %4732 = vmatprep.subr.mxu0 0.0
    %v4733 = vand.u32 %v856, 4294901760
    %4734 = vmatpush1.msra.mxu0 %v4733
    %4735 = vmatprep.subr.mxu0 0.0
    %v4736 = vand.u32 %v855, 4294901760
    %4737 = vmatpush1.msra.mxu0 %v4736
    %4738 = vmatprep.subr.mxu0 0.0
    %v4739 = vand.u32 %v854, 4294901760
    %4740 = vmatpush1.msra.mxu0 %v4739
    %4741 = vmatprep.subr.mxu0 0.0
    %v4742 = vand.u32 %v853, 4294901760
    %4743 = vmatpush1.msra.mxu0 %v4742
    %4744 = vmatprep.subr.mxu0 0.0
    %v4745 = vand.u32 %v852, 4294901760
    %4746 = vmatpush1.msra.mxu0 %v4745
    %4747 = vmatprep.subr.mxu0 0.0
    %v4748 = vand.u32 %v851, 4294901760
    %4749 = vmatpush1.msra.mxu0 %v4748
    %4750 = vmatprep.subr.mxu0 0.0
    %v4751 = vand.u32 %v850, 4294901760
    %4752 = vmatpush1.msra.mxu0 %v4751
    %4753 = vmatprep.subr.mxu0 0.0
    %v4754 = vand.u32 %v849, 4294901760
    %4755 = vmatpush1.msra.mxu0 %v4754
    %4756 = vmatprep.subr.mxu0 0.0
    %v4757 = vand.u32 %v848, 4294901760
    %4758 = vmatpush1.msra.mxu0 %v4757
    %4759 = vmatprep.subr.mxu0 0.0
    %v4760 = vand.u32 %v847, 4294901760
    %4761 = vmatpush1.msra.mxu0 %v4760
    %4762 = vmatprep.subr.mxu0 0.0
    %v4763 = vand.u32 %v846, 4294901760
    %4764 = vmatpush1.msra.mxu0 %v4763
    %4765 = vmatprep.subr.mxu0 0.0
    %v4766 = vand.u32 %v845, 4294901760
    %4767 = vmatpush1.msra.mxu0 %v4766
    %4768 = vmatprep.subr.mxu0 0.0
    %4769 = vmatpush2.msra.mxu0 0.0
    %4770 = vmatprep.subr.mxu0 0.0
    %4771 = vmatpush2.msra.mxu0 0.0
    %4772 = vmatprep.subr.mxu0 0.0
    %4773 = vmatpush2.msra.mxu0 0.0
    %4774 = vmatprep.subr.mxu0 0.0
    %4775 = vmatpush2.msra.mxu0 0.0
    %4776 = vmatprep.subr.mxu0 0.0
    %4777 = vmatpush2.msra.mxu0 0.0
    %4778 = vmatprep.subr.mxu0 0.0
    %4779 = vmatpush2.msra.mxu0 0.0
    %4780 = vmatprep.subr.mxu0 0.0
    %4781 = vmatpush2.msra.mxu0 0.0
    %4782 = vmatprep.subr.mxu0 0.0
    %4783 = vmatpush2.msra.mxu0 0.0
    %4784 = vmatprep.subr.mxu0 0.0
    %4785 = vmatpush2.msra.mxu0 0.0
    %4786 = vmatprep.subr.mxu0 0.0
    %4787 = vmatpush2.msra.mxu0 0.0
    %4788 = vmatprep.subr.mxu0 0.0
    %4789 = vmatpush2.msra.mxu0 0.0
    %4790 = vmatprep.subr.mxu0 0.0
    %4791 = vmatpush2.msra.mxu0 0.0
    %4792 = vmatprep.subr.mxu0 0.0
    %4793 = vmatpush2.msra.mxu0 0.0
    %4794 = vmatprep.subr.mxu0 0.0
    %4795 = vmatpush2.msra.mxu0 0.0
    %4796 = vmatprep.subr.mxu0 0.0
    %4797 = vmatpush2.msra.mxu0 0.0
    %4798 = vmatprep.subr.mxu0 0.0
    %4799 = vmatpush2.msra.mxu0 0.0
    %4800 = vmatprep.mubr.f32.mxu0 0.0
    %v4801 = vand.u32 %v4719, 4294901760
    %v4802 = vsub.f32 %v4719, %v4801
    %v4803 = vand.u32 %v4802, 4294901760
    %v4804 = vsub.f32 %v4802, %v4803
    %v4805 = vand.u32 %v4804, 4294901760
    %4806 = vmatmul.mubr.f32.gmra.mxu0 %v4805
    %v4807 = vpop.f32.mrf.mxu0
    %v4808 = vadd.f32 0.0, %v4807
    %v4809 = vpop.f32.mrf.mxu0
    %4810 = vdwg.mxu0
    %4811 = vmatprep.subr.mxu0 0.0
    %v4812 = vand.u32 %v860, 4294901760
    %v4813 = vsub.f32 %v860, %v4812
    %v4814 = vand.u32 %v4813, 4294901760
    %v4815 = vsub.f32 %v4813, %v4814
    %v4816 = vand.u32 %v4815, 4294901760
    %4817 = vmatpush1.msra.mxu0 %v4816
    %4818 = vmatprep.subr.mxu0 0.0
    %v4819 = vand.u32 %v859, 4294901760
    %v4820 = vsub.f32 %v859, %v4819
    %v4821 = vand.u32 %v4820, 4294901760
    %v4822 = vsub.f32 %v4820, %v4821
    %v4823 = vand.u32 %v4822, 4294901760
    %4824 = vmatpush1.msra.mxu0 %v4823
    %4825 = vmatprep.subr.mxu0 0.0
    %v4826 = vand.u32 %v858, 4294901760
    %v4827 = vsub.f32 %v858, %v4826
    %v4828 = vand.u32 %v4827, 4294901760
    %v4829 = vsub.f32 %v4827, %v4828
    %v4830 = vand.u32 %v4829, 4294901760
    %4831 = vmatpush1.msra.mxu0 %v4830
    %4832 = vmatprep.subr.mxu0 0.0
    %v4833 = vand.u32 %v857, 4294901760
    %v4834 = vsub.f32 %v857, %v4833
    %v4835 = vand.u32 %v4834, 4294901760
    %v4836 = vsub.f32 %v4834, %v4835
    %v4837 = vand.u32 %v4836, 4294901760
    %4838 = vmatpush1.msra.mxu0 %v4837
    %4839 = vmatprep.subr.mxu0 0.0
    %v4840 = vand.u32 %v856, 4294901760
    %v4841 = vsub.f32 %v856, %v4840
    %v4842 = vand.u32 %v4841, 4294901760
    %v4843 = vsub.f32 %v4841, %v4842
    %v4844 = vand.u32 %v4843, 4294901760
    %4845 = vmatpush1.msra.mxu0 %v4844
    %4846 = vmatprep.subr.mxu0 0.0
    %v4847 = vand.u32 %v855, 4294901760
    %v4848 = vsub.f32 %v855, %v4847
    %v4849 = vand.u32 %v4848, 4294901760
    %v4850 = vsub.f32 %v4848, %v4849
    %v4851 = vand.u32 %v4850, 4294901760
    %4852 = vmatpush1.msra.mxu0 %v4851
    %4853 = vmatprep.subr.mxu0 0.0
    %v4854 = vand.u32 %v854, 4294901760
    %v4855 = vsub.f32 %v854, %v4854
    %v4856 = vand.u32 %v4855, 4294901760
    %v4857 = vsub.f32 %v4855, %v4856
    %v4858 = vand.u32 %v4857, 4294901760
    %4859 = vmatpush1.msra.mxu0 %v4858
    %4860 = vmatprep.subr.mxu0 0.0
    %v4861 = vand.u32 %v853, 4294901760
    %v4862 = vsub.f32 %v853, %v4861
    %v4863 = vand.u32 %v4862, 4294901760
    %v4864 = vsub.f32 %v4862, %v4863
    %v4865 = vand.u32 %v4864, 4294901760
    %4866 = vmatpush1.msra.mxu0 %v4865
    %4867 = vmatprep.subr.mxu0 0.0
    %v4868 = vand.u32 %v852, 4294901760
    %v4869 = vsub.f32 %v852, %v4868
    %v4870 = vand.u32 %v4869, 4294901760
    %v4871 = vsub.f32 %v4869, %v4870
    %v4872 = vand.u32 %v4871, 4294901760
    %4873 = vmatpush1.msra.mxu0 %v4872
    %4874 = vmatprep.subr.mxu0 0.0
    %v4875 = vand.u32 %v851, 4294901760
    %v4876 = vsub.f32 %v851, %v4875
    %v4877 = vand.u32 %v4876, 4294901760
    %v4878 = vsub.f32 %v4876, %v4877
    %v4879 = vand.u32 %v4878, 4294901760
    %4880 = vmatpush1.msra.mxu0 %v4879
    %4881 = vmatprep.subr.mxu0 0.0
    %v4882 = vand.u32 %v850, 4294901760
    %v4883 = vsub.f32 %v850, %v4882
    %v4884 = vand.u32 %v4883, 4294901760
    %v4885 = vsub.f32 %v4883, %v4884
    %v4886 = vand.u32 %v4885, 4294901760
    %4887 = vmatpush1.msra.mxu0 %v4886
    %4888 = vmatprep.subr.mxu0 0.0
    %v4889 = vand.u32 %v849, 4294901760
    %v4890 = vsub.f32 %v849, %v4889
    %v4891 = vand.u32 %v4890, 4294901760
    %v4892 = vsub.f32 %v4890, %v4891
    %v4893 = vand.u32 %v4892, 4294901760
    %4894 = vmatpush1.msra.mxu0 %v4893
    %4895 = vmatprep.subr.mxu0 0.0
    %v4896 = vand.u32 %v848, 4294901760
    %v4897 = vsub.f32 %v848, %v4896
    %v4898 = vand.u32 %v4897, 4294901760
    %v4899 = vsub.f32 %v4897, %v4898
    %v4900 = vand.u32 %v4899, 4294901760
    %4901 = vmatpush1.msra.mxu0 %v4900
    %4902 = vmatprep.subr.mxu0 0.0
    %v4903 = vand.u32 %v847, 4294901760
    %v4904 = vsub.f32 %v847, %v4903
    %v4905 = vand.u32 %v4904, 4294901760
    %v4906 = vsub.f32 %v4904, %v4905
    %v4907 = vand.u32 %v4906, 4294901760
    %4908 = vmatpush1.msra.mxu0 %v4907
    %4909 = vmatprep.subr.mxu0 0.0
    %v4910 = vand.u32 %v846, 4294901760
    %v4911 = vsub.f32 %v846, %v4910
    %v4912 = vand.u32 %v4911, 4294901760
    %v4913 = vsub.f32 %v4911, %v4912
    %v4914 = vand.u32 %v4913, 4294901760
    %4915 = vmatpush1.msra.mxu0 %v4914
    %4916 = vmatprep.subr.mxu0 0.0
    %v4917 = vand.u32 %v845, 4294901760
    %v4918 = vsub.f32 %v845, %v4917
    %v4919 = vand.u32 %v4918, 4294901760
    %v4920 = vsub.f32 %v4918, %v4919
    %v4921 = vand.u32 %v4920, 4294901760
    %4922 = vmatpush1.msra.mxu0 %v4921
    %4923 = vmatprep.subr.mxu0 0.0
    %4924 = vmatpush2.msra.mxu0 0.0
    %4925 = vmatprep.subr.mxu0 0.0
    %4926 = vmatpush2.msra.mxu0 0.0
    %4927 = vmatprep.subr.mxu0 0.0
    %4928 = vmatpush2.msra.mxu0 0.0
    %4929 = vmatprep.subr.mxu0 0.0
    %4930 = vmatpush2.msra.mxu0 0.0
    %4931 = vmatprep.subr.mxu0 0.0
    %4932 = vmatpush2.msra.mxu0 0.0
    %4933 = vmatprep.subr.mxu0 0.0
    %4934 = vmatpush2.msra.mxu0 0.0
    %4935 = vmatprep.subr.mxu0 0.0
    %4936 = vmatpush2.msra.mxu0 0.0
    %4937 = vmatprep.subr.mxu0 0.0
    %4938 = vmatpush2.msra.mxu0 0.0
    %4939 = vmatprep.subr.mxu0 0.0
    %4940 = vmatpush2.msra.mxu0 0.0
    %4941 = vmatprep.subr.mxu0 0.0
    %4942 = vmatpush2.msra.mxu0 0.0
    %4943 = vmatprep.subr.mxu0 0.0
    %4944 = vmatpush2.msra.mxu0 0.0
    %4945 = vmatprep.subr.mxu0 0.0
    %4946 = vmatpush2.msra.mxu0 0.0
    %4947 = vmatprep.subr.mxu0 0.0
    %4948 = vmatpush2.msra.mxu0 0.0
    %4949 = vmatprep.subr.mxu0 0.0
    %4950 = vmatpush2.msra.mxu0 0.0
    %4951 = vmatprep.subr.mxu0 0.0
    %4952 = vmatpush2.msra.mxu0 0.0
    %4953 = vmatprep.subr.mxu0 0.0
    %4954 = vmatpush2.msra.mxu0 0.0
    %4955 = vmatprep.mubr.f32.mxu0 0.0
    %v4956 = vand.u32 %v4719, 4294901760
    %4957 = vmatmul.mubr.f32.gmra.mxu0 %v4956
    %v4958 = vpop.f32.mrf.mxu0
    %v4959 = vadd.f32 %v4808, %v4958
    %v4960 = vpop.f32.mrf.mxu0
    %4961 = vdwg.mxu0
    %4962 = vmatprep.subr.mxu0 0.0
    %v4963 = vand.u32 %v860, 4294901760
    %v4964 = vsub.f32 %v860, %v4963
    %4965 = vmatpush1.msra.mxu0 %v4964
    %4966 = vmatprep.subr.mxu0 0.0
    %v4967 = vand.u32 %v859, 4294901760
    %v4968 = vsub.f32 %v859, %v4967
    %4969 = vmatpush1.msra.mxu0 %v4968
    %4970 = vmatprep.subr.mxu0 0.0
    %v4971 = vand.u32 %v858, 4294901760
    %v4972 = vsub.f32 %v858, %v4971
    %4973 = vmatpush1.msra.mxu0 %v4972
    %4974 = vmatprep.subr.mxu0 0.0
    %v4975 = vand.u32 %v857, 4294901760
    %v4976 = vsub.f32 %v857, %v4975
    %4977 = vmatpush1.msra.mxu0 %v4976
    %4978 = vmatprep.subr.mxu0 0.0
    %v4979 = vand.u32 %v856, 4294901760
    %v4980 = vsub.f32 %v856, %v4979
    %4981 = vmatpush1.msra.mxu0 %v4980
    %4982 = vmatprep.subr.mxu0 0.0
    %v4983 = vand.u32 %v855, 4294901760
    %v4984 = vsub.f32 %v855, %v4983
    %4985 = vmatpush1.msra.mxu0 %v4984
    %4986 = vmatprep.subr.mxu0 0.0
    %v4987 = vand.u32 %v854, 4294901760
    %v4988 = vsub.f32 %v854, %v4987
    %4989 = vmatpush1.msra.mxu0 %v4988
    %4990 = vmatprep.subr.mxu0 0.0
    %v4991 = vand.u32 %v853, 4294901760
    %v4992 = vsub.f32 %v853, %v4991
    %4993 = vmatpush1.msra.mxu0 %v4992
    %4994 = vmatprep.subr.mxu0 0.0
    %v4995 = vand.u32 %v852, 4294901760
    %v4996 = vsub.f32 %v852, %v4995
    %4997 = vmatpush1.msra.mxu0 %v4996
    %4998 = vmatprep.subr.mxu0 0.0
    %v4999 = vand.u32 %v851, 4294901760
    %v5000 = vsub.f32 %v851, %v4999
    %5001 = vmatpush1.msra.mxu0 %v5000
    %5002 = vmatprep.subr.mxu0 0.0
    %v5003 = vand.u32 %v850, 4294901760
    %v5004 = vsub.f32 %v850, %v5003
    %5005 = vmatpush1.msra.mxu0 %v5004
    %5006 = vmatprep.subr.mxu0 0.0
    %v5007 = vand.u32 %v849, 4294901760
    %v5008 = vsub.f32 %v849, %v5007
    %5009 = vmatpush1.msra.mxu0 %v5008
    %5010 = vmatprep.subr.mxu0 0.0
    %v5011 = vand.u32 %v848, 4294901760
    %v5012 = vsub.f32 %v848, %v5011
    %5013 = vmatpush1.msra.mxu0 %v5012
    %5014 = vmatprep.subr.mxu0 0.0
    %v5015 = vand.u32 %v847, 4294901760
    %v5016 = vsub.f32 %v847, %v5015
    %5017 = vmatpush1.msra.mxu0 %v5016
    %5018 = vmatprep.subr.mxu0 0.0
    %v5019 = vand.u32 %v846, 4294901760
    %v5020 = vsub.f32 %v846, %v5019
    %5021 = vmatpush1.msra.mxu0 %v5020
    %5022 = vmatprep.subr.mxu0 0.0
    %v5023 = vand.u32 %v845, 4294901760
    %v5024 = vsub.f32 %v845, %v5023
    %5025 = vmatpush1.msra.mxu0 %v5024
    %5026 = vmatprep.subr.mxu0 0.0
    %5027 = vmatpush2.msra.mxu0 0.0
    %5028 = vmatprep.subr.mxu0 0.0
    %5029 = vmatpush2.msra.mxu0 0.0
    %5030 = vmatprep.subr.mxu0 0.0
    %5031 = vmatpush2.msra.mxu0 0.0
    %5032 = vmatprep.subr.mxu0 0.0
    %5033 = vmatpush2.msra.mxu0 0.0
    %5034 = vmatprep.subr.mxu0 0.0
    %5035 = vmatpush2.msra.mxu0 0.0
    %5036 = vmatprep.subr.mxu0 0.0
    %5037 = vmatpush2.msra.mxu0 0.0
    %5038 = vmatprep.subr.mxu0 0.0
    %5039 = vmatpush2.msra.mxu0 0.0
    %5040 = vmatprep.subr.mxu0 0.0
    %5041 = vmatpush2.msra.mxu0 0.0
    %5042 = vmatprep.subr.mxu0 0.0
    %5043 = vmatpush2.msra.mxu0 0.0
    %5044 = vmatprep.subr.mxu0 0.0
    %5045 = vmatpush2.msra.mxu0 0.0
    %5046 = vmatprep.subr.mxu0 0.0
    %5047 = vmatpush2.msra.mxu0 0.0
    %5048 = vmatprep.subr.mxu0 0.0
    %5049 = vmatpush2.msra.mxu0 0.0
    %5050 = vmatprep.subr.mxu0 0.0
    %5051 = vmatpush2.msra.mxu0 0.0
    %5052 = vmatprep.subr.mxu0 0.0
    %5053 = vmatpush2.msra.mxu0 0.0
    %5054 = vmatprep.subr.mxu0 0.0
    %5055 = vmatpush2.msra.mxu0 0.0
    %5056 = vmatprep.subr.mxu0 0.0
    %5057 = vmatpush2.msra.mxu0 0.0
    %5058 = vmatprep.mubr.f32.mxu0 0.0
    %v5059 = vand.u32 %v4719, 4294901760
    %v5060 = vsub.f32 %v4719, %v5059
    %5061 = vmatmul.mubr.f32.gmra.mxu0 %v5060
    %v5062 = vpop.f32.mrf.mxu0
    %v5063 = vadd.f32 %v4959, %v5062
    %v5064 = vpop.f32.mrf.mxu0
    %5065 = vdwg.mxu0
    %5066 = vmatprep.subr.mxu0 0.0
    %v5067 = vand.u32 %v860, 4294901760
    %5068 = vmatpush1.msra.mxu0 %v5067
    %5069 = vmatprep.subr.mxu0 0.0
    %v5070 = vand.u32 %v859, 4294901760
    %5071 = vmatpush1.msra.mxu0 %v5070
    %5072 = vmatprep.subr.mxu0 0.0
    %v5073 = vand.u32 %v858, 4294901760
    %5074 = vmatpush1.msra.mxu0 %v5073
    %5075 = vmatprep.subr.mxu0 0.0
    %v5076 = vand.u32 %v857, 4294901760
    %5077 = vmatpush1.msra.mxu0 %v5076
    %5078 = vmatprep.subr.mxu0 0.0
    %v5079 = vand.u32 %v856, 4294901760
    %5080 = vmatpush1.msra.mxu0 %v5079
    %5081 = vmatprep.subr.mxu0 0.0
    %v5082 = vand.u32 %v855, 4294901760
    %5083 = vmatpush1.msra.mxu0 %v5082
    %5084 = vmatprep.subr.mxu0 0.0
    %v5085 = vand.u32 %v854, 4294901760
    %5086 = vmatpush1.msra.mxu0 %v5085
    %5087 = vmatprep.subr.mxu0 0.0
    %v5088 = vand.u32 %v853, 4294901760
    %5089 = vmatpush1.msra.mxu0 %v5088
    %5090 = vmatprep.subr.mxu0 0.0
    %v5091 = vand.u32 %v852, 4294901760
    %5092 = vmatpush1.msra.mxu0 %v5091
    %5093 = vmatprep.subr.mxu0 0.0
    %v5094 = vand.u32 %v851, 4294901760
    %5095 = vmatpush1.msra.mxu0 %v5094
    %5096 = vmatprep.subr.mxu0 0.0
    %v5097 = vand.u32 %v850, 4294901760
    %5098 = vmatpush1.msra.mxu0 %v5097
    %5099 = vmatprep.subr.mxu0 0.0
    %v5100 = vand.u32 %v849, 4294901760
    %5101 = vmatpush1.msra.mxu0 %v5100
    %5102 = vmatprep.subr.mxu0 0.0
    %v5103 = vand.u32 %v848, 4294901760
    %5104 = vmatpush1.msra.mxu0 %v5103
    %5105 = vmatprep.subr.mxu0 0.0
    %v5106 = vand.u32 %v847, 4294901760
    %5107 = vmatpush1.msra.mxu0 %v5106
    %5108 = vmatprep.subr.mxu0 0.0
    %v5109 = vand.u32 %v846, 4294901760
    %5110 = vmatpush1.msra.mxu0 %v5109
    %5111 = vmatprep.subr.mxu0 0.0
    %v5112 = vand.u32 %v845, 4294901760
    %5113 = vmatpush1.msra.mxu0 %v5112
    %5114 = vmatprep.subr.mxu0 0.0
    %5115 = vmatpush2.msra.mxu0 0.0
    %5116 = vmatprep.subr.mxu0 0.0
    %5117 = vmatpush2.msra.mxu0 0.0
    %5118 = vmatprep.subr.mxu0 0.0
    %5119 = vmatpush2.msra.mxu0 0.0
    %5120 = vmatprep.subr.mxu0 0.0
    %5121 = vmatpush2.msra.mxu0 0.0
    %5122 = vmatprep.subr.mxu0 0.0
    %5123 = vmatpush2.msra.mxu0 0.0
    %5124 = vmatprep.subr.mxu0 0.0
    %5125 = vmatpush2.msra.mxu0 0.0
    %5126 = vmatprep.subr.mxu0 0.0
    %5127 = vmatpush2.msra.mxu0 0.0
    %5128 = vmatprep.subr.mxu0 0.0
    %5129 = vmatpush2.msra.mxu0 0.0
    %5130 = vmatprep.subr.mxu0 0.0
    %5131 = vmatpush2.msra.mxu0 0.0
    %5132 = vmatprep.subr.mxu0 0.0
    %5133 = vmatpush2.msra.mxu0 0.0
    %5134 = vmatprep.subr.mxu0 0.0
    %5135 = vmatpush2.msra.mxu0 0.0
    %5136 = vmatprep.subr.mxu0 0.0
    %5137 = vmatpush2.msra.mxu0 0.0
    %5138 = vmatprep.subr.mxu0 0.0
    %5139 = vmatpush2.msra.mxu0 0.0
    %5140 = vmatprep.subr.mxu0 0.0
    %5141 = vmatpush2.msra.mxu0 0.0
    %5142 = vmatprep.subr.mxu0 0.0
    %5143 = vmatpush2.msra.mxu0 0.0
    %5144 = vmatprep.subr.mxu0 0.0
    %5145 = vmatpush2.msra.mxu0 0.0
    %5146 = vmatprep.mubr.f32.mxu0 0.0
    %v5147 = vand.u32 %v4719, 4294901760
    %v5148 = vsub.f32 %v4719, %v5147
    %v5149 = vand.u32 %v5148, 4294901760
    %5150 = vmatmul.mubr.f32.gmra.mxu0 %v5149
    %v5151 = vpop.f32.mrf.mxu0
    %v5152 = vadd.f32 %v5063, %v5151
    %v5153 = vpop.f32.mrf.mxu0
    %5154 = vdwg.mxu0
    %5155 = vmatprep.subr.mxu0 0.0
    %v5156 = vand.u32 %v860, 4294901760
    %v5157 = vsub.f32 %v860, %v5156
    %v5158 = vand.u32 %v5157, 4294901760
    %5159 = vmatpush1.msra.mxu0 %v5158
    %5160 = vmatprep.subr.mxu0 0.0
    %v5161 = vand.u32 %v859, 4294901760
    %v5162 = vsub.f32 %v859, %v5161
    %v5163 = vand.u32 %v5162, 4294901760
    %5164 = vmatpush1.msra.mxu0 %v5163
    %5165 = vmatprep.subr.mxu0 0.0
    %v5166 = vand.u32 %v858, 4294901760
    %v5167 = vsub.f32 %v858, %v5166
    %v5168 = vand.u32 %v5167, 4294901760
    %5169 = vmatpush1.msra.mxu0 %v5168
    %5170 = vmatprep.subr.mxu0 0.0
    %v5171 = vand.u32 %v857, 4294901760
    %v5172 = vsub.f32 %v857, %v5171
    %v5173 = vand.u32 %v5172, 4294901760
    %5174 = vmatpush1.msra.mxu0 %v5173
    %5175 = vmatprep.subr.mxu0 0.0
    %v5176 = vand.u32 %v856, 4294901760
    %v5177 = vsub.f32 %v856, %v5176
    %v5178 = vand.u32 %v5177, 4294901760
    %5179 = vmatpush1.msra.mxu0 %v5178
    %5180 = vmatprep.subr.mxu0 0.0
    %v5181 = vand.u32 %v855, 4294901760
    %v5182 = vsub.f32 %v855, %v5181
    %v5183 = vand.u32 %v5182, 4294901760
    %5184 = vmatpush1.msra.mxu0 %v5183
    %5185 = vmatprep.subr.mxu0 0.0
    %v5186 = vand.u32 %v854, 4294901760
    %v5187 = vsub.f32 %v854, %v5186
    %v5188 = vand.u32 %v5187, 4294901760
    %5189 = vmatpush1.msra.mxu0 %v5188
    %5190 = vmatprep.subr.mxu0 0.0
    %v5191 = vand.u32 %v853, 4294901760
    %v5192 = vsub.f32 %v853, %v5191
    %v5193 = vand.u32 %v5192, 4294901760
    %5194 = vmatpush1.msra.mxu0 %v5193
    %5195 = vmatprep.subr.mxu0 0.0
    %v5196 = vand.u32 %v852, 4294901760
    %v5197 = vsub.f32 %v852, %v5196
    %v5198 = vand.u32 %v5197, 4294901760
    %5199 = vmatpush1.msra.mxu0 %v5198
    %5200 = vmatprep.subr.mxu0 0.0
    %v5201 = vand.u32 %v851, 4294901760
    %v5202 = vsub.f32 %v851, %v5201
    %v5203 = vand.u32 %v5202, 4294901760
    %5204 = vmatpush1.msra.mxu0 %v5203
    %5205 = vmatprep.subr.mxu0 0.0
    %v5206 = vand.u32 %v850, 4294901760
    %v5207 = vsub.f32 %v850, %v5206
    %v5208 = vand.u32 %v5207, 4294901760
    %5209 = vmatpush1.msra.mxu0 %v5208
    %5210 = vmatprep.subr.mxu0 0.0
    %v5211 = vand.u32 %v849, 4294901760
    %v5212 = vsub.f32 %v849, %v5211
    %v5213 = vand.u32 %v5212, 4294901760
    %5214 = vmatpush1.msra.mxu0 %v5213
    %5215 = vmatprep.subr.mxu0 0.0
    %v5216 = vand.u32 %v848, 4294901760
    %v5217 = vsub.f32 %v848, %v5216
    %v5218 = vand.u32 %v5217, 4294901760
    %5219 = vmatpush1.msra.mxu0 %v5218
    %5220 = vmatprep.subr.mxu0 0.0
    %v5221 = vand.u32 %v847, 4294901760
    %v5222 = vsub.f32 %v847, %v5221
    %v5223 = vand.u32 %v5222, 4294901760
    %5224 = vmatpush1.msra.mxu0 %v5223
    %5225 = vmatprep.subr.mxu0 0.0
    %v5226 = vand.u32 %v846, 4294901760
    %v5227 = vsub.f32 %v846, %v5226
    %v5228 = vand.u32 %v5227, 4294901760
    %5229 = vmatpush1.msra.mxu0 %v5228
    %5230 = vmatprep.subr.mxu0 0.0
    %v5231 = vand.u32 %v845, 4294901760
    %v5232 = vsub.f32 %v845, %v5231
    %v5233 = vand.u32 %v5232, 4294901760
    %5234 = vmatpush1.msra.mxu0 %v5233
    %5235 = vmatprep.subr.mxu0 0.0
    %5236 = vmatpush2.msra.mxu0 0.0
    %5237 = vmatprep.subr.mxu0 0.0
    %5238 = vmatpush2.msra.mxu0 0.0
    %5239 = vmatprep.subr.mxu0 0.0
    %5240 = vmatpush2.msra.mxu0 0.0
    %5241 = vmatprep.subr.mxu0 0.0
    %5242 = vmatpush2.msra.mxu0 0.0
    %5243 = vmatprep.subr.mxu0 0.0
    %5244 = vmatpush2.msra.mxu0 0.0
    %5245 = vmatprep.subr.mxu0 0.0
    %5246 = vmatpush2.msra.mxu0 0.0
    %5247 = vmatprep.subr.mxu0 0.0
    %5248 = vmatpush2.msra.mxu0 0.0
    %5249 = vmatprep.subr.mxu0 0.0
    %5250 = vmatpush2.msra.mxu0 0.0
    %5251 = vmatprep.subr.mxu0 0.0
    %5252 = vmatpush2.msra.mxu0 0.0
    %5253 = vmatprep.subr.mxu0 0.0
    %5254 = vmatpush2.msra.mxu0 0.0
    %5255 = vmatprep.subr.mxu0 0.0
    %5256 = vmatpush2.msra.mxu0 0.0
    %5257 = vmatprep.subr.mxu0 0.0
    %5258 = vmatpush2.msra.mxu0 0.0
    %5259 = vmatprep.subr.mxu0 0.0
    %5260 = vmatpush2.msra.mxu0 0.0
    %5261 = vmatprep.subr.mxu0 0.0
    %5262 = vmatpush2.msra.mxu0 0.0
    %5263 = vmatprep.subr.mxu0 0.0
    %5264 = vmatpush2.msra.mxu0 0.0
    %5265 = vmatprep.subr.mxu0 0.0
    %5266 = vmatpush2.msra.mxu0 0.0
    %5267 = vmatprep.mubr.f32.mxu0 0.0
    %v5268 = vand.u32 %v4719, 4294901760
    %5269 = vmatmul.mubr.f32.gmra.mxu0 %v5268
    %v5270 = vpop.f32.mrf.mxu0
    %v5271 = vadd.f32 %v5152, %v5270
    %v5272 = vpop.f32.mrf.mxu0
    %5273 = vdwg.mxu0
    %5274 = vmatprep.subr.mxu0 0.0
    %v5275 = vand.u32 %v860, 4294901760
    %5276 = vmatpush1.msra.mxu0 %v5275
    %5277 = vmatprep.subr.mxu0 0.0
    %v5278 = vand.u32 %v859, 4294901760
    %5279 = vmatpush1.msra.mxu0 %v5278
    %5280 = vmatprep.subr.mxu0 0.0
    %v5281 = vand.u32 %v858, 4294901760
    %5282 = vmatpush1.msra.mxu0 %v5281
    %5283 = vmatprep.subr.mxu0 0.0
    %v5284 = vand.u32 %v857, 4294901760
    %5285 = vmatpush1.msra.mxu0 %v5284
    %5286 = vmatprep.subr.mxu0 0.0
    %v5287 = vand.u32 %v856, 4294901760
    %5288 = vmatpush1.msra.mxu0 %v5287
    %5289 = vmatprep.subr.mxu0 0.0
    %v5290 = vand.u32 %v855, 4294901760
    %5291 = vmatpush1.msra.mxu0 %v5290
    %5292 = vmatprep.subr.mxu0 0.0
    %v5293 = vand.u32 %v854, 4294901760
    %5294 = vmatpush1.msra.mxu0 %v5293
    %5295 = vmatprep.subr.mxu0 0.0
    %v5296 = vand.u32 %v853, 4294901760
    %5297 = vmatpush1.msra.mxu0 %v5296
    %5298 = vmatprep.subr.mxu0 0.0
    %v5299 = vand.u32 %v852, 4294901760
    %5300 = vmatpush1.msra.mxu0 %v5299
    %5301 = vmatprep.subr.mxu0 0.0
    %v5302 = vand.u32 %v851, 4294901760
    %5303 = vmatpush1.msra.mxu0 %v5302
    %5304 = vmatprep.subr.mxu0 0.0
    %v5305 = vand.u32 %v850, 4294901760
    %5306 = vmatpush1.msra.mxu0 %v5305
    %5307 = vmatprep.subr.mxu0 0.0
    %v5308 = vand.u32 %v849, 4294901760
    %5309 = vmatpush1.msra.mxu0 %v5308
    %5310 = vmatprep.subr.mxu0 0.0
    %v5311 = vand.u32 %v848, 4294901760
    %5312 = vmatpush1.msra.mxu0 %v5311
    %5313 = vmatprep.subr.mxu0 0.0
    %v5314 = vand.u32 %v847, 4294901760
    %5315 = vmatpush1.msra.mxu0 %v5314
    %5316 = vmatprep.subr.mxu0 0.0
    %v5317 = vand.u32 %v846, 4294901760
    %5318 = vmatpush1.msra.mxu0 %v5317
    %5319 = vmatprep.subr.mxu0 0.0
    %v5320 = vand.u32 %v845, 4294901760
    %5321 = vmatpush1.msra.mxu0 %v5320
    %5322 = vmatprep.subr.mxu0 0.0
    %5323 = vmatpush2.msra.mxu0 0.0
    %5324 = vmatprep.subr.mxu0 0.0
    %5325 = vmatpush2.msra.mxu0 0.0
    %5326 = vmatprep.subr.mxu0 0.0
    %5327 = vmatpush2.msra.mxu0 0.0
    %5328 = vmatprep.subr.mxu0 0.0
    %5329 = vmatpush2.msra.mxu0 0.0
    %5330 = vmatprep.subr.mxu0 0.0
    %5331 = vmatpush2.msra.mxu0 0.0
    %5332 = vmatprep.subr.mxu0 0.0
    %5333 = vmatpush2.msra.mxu0 0.0
    %5334 = vmatprep.subr.mxu0 0.0
    %5335 = vmatpush2.msra.mxu0 0.0
    %5336 = vmatprep.subr.mxu0 0.0
    %5337 = vmatpush2.msra.mxu0 0.0
    %5338 = vmatprep.subr.mxu0 0.0
    %5339 = vmatpush2.msra.mxu0 0.0
    %5340 = vmatprep.subr.mxu0 0.0
    %5341 = vmatpush2.msra.mxu0 0.0
    %5342 = vmatprep.subr.mxu0 0.0
    %5343 = vmatpush2.msra.mxu0 0.0
    %5344 = vmatprep.subr.mxu0 0.0
    %5345 = vmatpush2.msra.mxu0 0.0
    %5346 = vmatprep.subr.mxu0 0.0
    %5347 = vmatpush2.msra.mxu0 0.0
    %5348 = vmatprep.subr.mxu0 0.0
    %5349 = vmatpush2.msra.mxu0 0.0
    %5350 = vmatprep.subr.mxu0 0.0
    %5351 = vmatpush2.msra.mxu0 0.0
    %5352 = vmatprep.subr.mxu0 0.0
    %5353 = vmatpush2.msra.mxu0 0.0
    %5354 = vmatprep.mubr.f32.mxu0 0.0
    %v5355 = vand.u32 %v4719, 4294901760
    %5356 = vmatmul.mubr.f32.gmra.mxu0 %v5355
    %v5357 = vpop.f32.mrf.mxu0
    %v5358 = vadd.f32 %v5271, %v5357
    %v5359 = vpop.f32.mrf.mxu0
    %5360 = vdwg.mxu0
    %v5361 = vadd.f32 %v842, %v5358
    %v5362 = vtanh.pop %v5361
    %v5363 = vld [vmem:[%s4] sm:$0x1]
    %v5365 = vlaneseq
    %v5366 = vshrl.u32 %v5365, 7
    %v5367 = vsub.s32 0, %v5366
    %v5368 = vrot.slane %v5363, %v5367
    %v5370 = vmul.f32 %v5362, %v5368
    %5371 = vadd.xlane.f32.xlu0 %v5370
    %v5372 = vpop.xlane.xlu0 %5371
    %v5373 = vld [vmem:[#allocation2] sm:$0x1]
    %v5375 = vlaneseq
    %v5376 = vshrl.u32 %v5375, 7
    %v5377 = vsub.s32 0, %v5376
    %v5378 = vrot.slane %v5373, %v5377
    %v5380 = vadd.f32 %v5372, %v5378
    %vm5381 = vcmask 7168
    %5382 = vst.msk [vmem:[%s6] sm:$0xff] %vm5381, %v5380
    // Predicated region
    $region30: #{weather_rnn_forward.1} parent=1 // pred_check
      _
    $region31: #{weather_rnn_forward.1} parent=1 // pred_check_branch
      %5384 = sbr.rel (0) target = $region33
    $region32: #{weather_rnn_forward.1} parent=1 // pred_region
      _
    $region33: #{weather_rnn_forward.1} parent=1 // pred_fallthru
      _
    // Predicated region
    $region34: #{weather_rnn_forward.1} parent=1 // pred_check
      _
    $region35: #{weather_rnn_forward.1} parent=1 // pred_check_branch
      %5386 = sbr.rel (0) target = $region37
    $region36: #{weather_rnn_forward.1} parent=1 // pred_region
      _
    $region37: #{weather_rnn_forward.1} parent=1 // pred_fallthru
      _
    %5387 = vsyncpa [#allocation4], 1

</llo_original>
